<compile_context>
chip_gen: v5e
topology: v5e:2x2
jax: 0.10.0
libtpu: 0.0.40
codegen_flags: <defaults>
</compile_context>

<pallas_src>
import functools

import jax
import jax.numpy as jnp
from jax import lax
from jax.experimental import pallas as pl
from jax.experimental.pallas import tpu as pltpu


# ----------------------------- hparams ------------------------------------
class HParams:
    nerf_point_encode = 4          # -> input_ch = 4 * 2 * 3 = 24
    nerf_dir_encode = 2            # -> input_ch_views = 2 * 2 * 3 = 12
    nerf_network_depth = 4         # D
    nerf_channels = 32             # C
    nerf_skips = (1,)              # skip connection after layer 1
    nerf_view_dirs = True          # use_viewdirs


HP = HParams()
INPUT_CH = HP.nerf_point_encode * 2 * 3          # 24
INPUT_CH_VIEWS = HP.nerf_dir_encode * 2 * 3      # 12
D = HP.nerf_network_depth                        # 4
C = HP.nerf_channels                             # 32
C_HALF = C // 2                                  # 16
SKIPS = tuple(HP.nerf_skips)

LANE = 128
GROUP = LANE // C                                # 4 rays folded per 128-lane row
PTS_LANES = GROUP * INPUT_CH                     # 96
VIEW_LANES = GROUP * INPUT_CH_VIEWS              # 48
OUT_LANES = GROUP * 4                            # 16 ([r,g,b,a] per folded ray)
RAY_GRANULE = GROUP * 8                          # 32 rays = one (8, 128) sublane tile

assert GROUP * C == LANE
assert PTS_LANES <= LANE and VIEW_LANES <= LANE and OUT_LANES <= LANE
# feature/alpha heads take a C-wide input in the torch module, so a skip after
# the final pts layer would be shape-invalid there as well.
assert (D - 1) not in SKIPS
assert HP.nerf_view_dirs  # TODO(synk): use_viewdirs=False branch not implemented (torch source references an undefined `h` there)


# --------------------------- parameter init -------------------------------
def init_params(key):
    """Deterministic synthetic parameters.  Weights are (in, out), biases (1, out)."""
    params = {}

    def linear(key, fan_in, fan_out):
        kw, kb = jax.random.split(key)
        scale = 1.0 / jnp.sqrt(jnp.float32(fan_in))
        w = jax.random.uniform(kw, (fan_in, fan_out), jnp.float32, -scale, scale)
        b = jax.random.uniform(kb, (1, fan_out), jnp.float32, -scale, scale)
        return w, b

    keys = jax.random.split(key, D + 4)

    pts_w, pts_b = [], []
    for i in range(D):
        if i == 0:
            fan_in = INPUT_CH
        elif (i - 1) in SKIPS:
            fan_in = C + INPUT_CH
        else:
            fan_in = C
        w, b = linear(keys[i], fan_in, C)
        pts_w.append(w)
        pts_b.append(b)
    params["pts_w"] = pts_w
    params["pts_b"] = pts_b

    params["feature_w"], params["feature_b"] = linear(keys[D], C, C)
    params["alpha_w"], params["alpha_b"] = linear(keys[D + 1], C, 1)
    params["views_w"], params["views_b"] = linear(keys[D + 2], INPUT_CH_VIEWS + C, C_HALF)
    params["rgb_w"], params["rgb_b"] = linear(keys[D + 3], C_HALF, 3)
    return params


# ---------------------- packed-weight layout (static) ----------------------
def _round_up(x, m):
    return ((x + m - 1) // m) * m


def _build_layout():
    """Row layout of the single packed (W_ROWS, 128) weight buffer.

    Each segment is (row_offset, k_rows) where k_rows is the K of the matmul
    that consumes it:
      * LANE (128) when the LHS is a folded (T, 128) activation,
      * GROUP*input_ch when the LHS is a folded input stream.
    Segment sizes are rounded to multiples of 16 rows so every slice start is
    sublane-aligned even for bf16 (16 packed rows per vreg).
    """
    meta = {}
    off = 0

    def seg(name, k_rows):
        nonlocal off
        meta[name] = (off, k_rows)
        off += _round_up(k_rows, 16)

    seg("l0", PTS_LANES)
    for i in range(1, D):
        if (i - 1) in SKIPS:
            seg(f"l{i}_skip", PTS_LANES)
        seg(f"l{i}_act", LANE)
    seg("feat", LANE)
    seg("views_feat", LANE)
    seg("views_dir", VIEW_LANES)
    seg("rgb", LANE)
    seg("alpha", LANE)
    return meta, off


META, W_ROWS = _build_layout()
B_ROWS = _round_up(D + 3, 8)


def pack_params(params):
    """Pack all weights into one bf16 (W_ROWS, 128) block-diagonal buffer and
    all biases into one f32 (B_ROWS, 128) buffer.  Call once."""
    w = jnp.zeros((W_ROWS, LANE), jnp.float32)

    def put(w, name, mat, in_pitch, out_pitch, out_off=0):
        off, _ = META[name]
        r, c = mat.shape
        m = mat.astype(jnp.float32)
        for g in range(GROUP):
            w = w.at[off + g * in_pitch:off + g * in_pitch + r,
                     g * out_pitch + out_off:g * out_pitch + out_off + c].set(m)
        return w

    for i in range(D):
        wi = params["pts_w"][i]
        if i == 0:
            w = put(w, "l0", wi, INPUT_CH, C)
        elif (i - 1) in SKIPS:
            # cat([points, p]) @ W == points @ W[:input_ch] + p @ W[input_ch:]
            w = put(w, f"l{i}_skip", wi[:INPUT_CH], INPUT_CH, C)
            w = put(w, f"l{i}_act", wi[INPUT_CH:], C, C)
        else:
            w = put(w, f"l{i}_act", wi, C, C)

    w = put(w, "feat", params["feature_w"], C, C)
    # cat([feature, views]) @ views_w == feature @ vw[:C] + views @ vw[C:]
    vw = params["views_w"]
    w = put(w, "views_feat", vw[:C], C, C)
    w = put(w, "views_dir", vw[C:], INPUT_CH_VIEWS, C)
    # Fused head, compacted output lanes: rgb of folded ray g -> cols 4g..4g+2
    # (LHS = h, valid at lanes [32g : 32g+16]); alpha -> col 4g+3 (LHS = p).
    w = put(w, "rgb", params["rgb_w"], C, 4)
    w = put(w, "alpha", params["alpha_w"], C, 4, out_off=3)

    b = jnp.zeros((B_ROWS, LANE), jnp.float32)
    for g in range(GROUP):
        for i in range(D):
            b = b.at[i, g * C:(g + 1) * C].set(params["pts_b"][i][0])
        b = b.at[D, g * C:(g + 1) * C].set(params["feature_b"][0])
        b = b.at[D + 1, g * C:g * C + C_HALF].set(params["views_b"][0])
        b = b.at[D + 2, g * 4:g * 4 + 3].set(params["rgb_b"][0])
        b = b.at[D + 2, g * 4 + 3].set(params["alpha_b"][0, 0])

    return w.astype(jnp.bfloat16), b


# ------------------- probe: single-buffered resident inputs -----------------
def _buffered_resident_supported():
    """Check whether pipeline_mode=pl.Buffered(1) works on this JAX build."""
    try:
        spec = pl.BlockSpec((8, LANE), lambda i: (0, 0), pipeline_mode=pl.Buffered(1))

        def _k(x_ref, o_ref):
            o_ref[...] = x_ref[...] + 1.0

        f = pl.pallas_call(
            _k,
            grid=(2,),
            in_specs=[spec],
            out_specs=pl.BlockSpec((8, LANE), lambda i: (0, 0)),
            out_shape=jax.ShapeDtypeStruct((8, LANE), jnp.float32),
        )
        jax.block_until_ready(f(jnp.zeros((8, LANE), jnp.float32)))
        return True
    except Exception:
        return False


_BUFFERED_OK = _buffered_resident_supported()


def _resident_spec(shape):
    """Constant-index (resident) input stream; single-buffered when supported."""
    idx = lambda i: (0, 0)
    if _BUFFERED_OK:
        return pl.BlockSpec(shape, idx, pipeline_mode=pl.Buffered(1))
    return pl.BlockSpec(shape, idx)


# ------------------------------ kernel -------------------------------------
def nerf_kernel(pts_ref, views_ref, w_ref, b_ref, out_ref):
    bf16 = jnp.bfloat16

    def wseg(name):
        off, rows = META[name]
        return w_ref[pl.ds(off, rows), :]          # bf16 (rows, 128), aligned static slice

    def bias(j):
        return b_ref[pl.ds(j, 1), :]               # f32 (1, 128)

    def mm(x, name):
        # bf16 x bf16 -> f32 accumulation: single MXU pass per 128x128 tile.
        return jnp.dot(x, wseg(name), preferred_element_type=jnp.float32)

    pts = pts_ref[...].astype(bf16)                # (T, 96)  4 rays/row
    views = views_ref[...].astype(bf16)            # (T, 48)

    # pts_linears + relu; skip connection realised as additive split weights.
    p = None
    for i in range(D):
        if i == 0:
            acc = mm(pts, "l0")
        elif (i - 1) in SKIPS:
            acc = mm(pts, f"l{i}_skip") + mm(p, f"l{i}_act")
        else:
            acc = mm(p, f"l{i}_act")
        # bias add + relu in f32 on the VPU (v5e has no bf16 VALU).
        p = jnp.maximum(acc + bias(i), 0.0).astype(bf16)       # (T, 128)

    feat = (mm(p, "feat") + bias(D)).astype(bf16)              # (T, 128)
    h = jnp.maximum(mm(feat, "views_feat") + mm(views, "views_dir") + bias(D + 1),
                    0.0).astype(bf16)                          # (T, 128)

    # Fused rgb(h) + alpha(p) head with compacted output columns:
    # folded ray g -> lanes [4g, 4g+3] carry [r, g, b, a]; lanes >= 16 are 0.
    rgba = mm(h, "rgb") + mm(p, "alpha") + bias(D + 2)         # (T, 128) f32
    out_ref[...] = rgba[:, :OUT_LANES].astype(out_ref.dtype)   # (T, 16)


# ------------------------------ wrapper -------------------------------------
@functools.partial(jax.jit, static_argnames=("tile_rays",))
def nerf_forward(points, views, w_packed, b_packed, *, tile_rays=2048):
    """points: (N, 24) f32, views: (N, 12) f32 -> (rgb (N,3), alpha (N,1)) f32."""
    assert points.shape[1] == INPUT_CH and views.shape[1] == INPUT_CH_VIEWS
    N = points.shape[0]

    # tile_rays: sweep 1024-8192 on v5e/v6e (raise vmem_limit_bytes past ~4 MiB
    # per 1024 rays if you go big); keep modest on v7x so the grid has >=4
    # steps for megacore.  Must be a multiple of 32 rays (4-ray fold x 8 sublanes).
    tile_rays = _round_up(min(tile_rays, _round_up(N, RAY_GRANULE)), RAY_GRANULE)
    n_pad = _round_up(N, tile_rays)
    if n_pad != N:                                  # remainder handling
        points = jnp.pad(points, ((0, n_pad - N), (0, 0)))
        views = jnp.pad(views, ((0, n_pad - N), (0, 0)))

    rows = n_pad // GROUP                           # folded rows (4 rays each)
    tile_r = tile_rays // GROUP
    # Free reshapes: ray 4r+g lands at lanes [g*24, g*24+24) / [g*12, g*12+12).
    pts_f = points.reshape(rows, PTS_LANES)
    views_f = views.reshape(rows, VIEW_LANES)

    in_specs = [
        pl.BlockSpec((tile_r, PTS_LANES), lambda i: (i, 0)),
        pl.BlockSpec((tile_r, VIEW_LANES), lambda i: (i, 0)),
        _resident_spec((W_ROWS, LANE)),             # resident packed bf16 weights
        _resident_spec((B_ROWS, LANE)),             # resident packed f32 biases
    ]
    out_specs = pl.BlockSpec((tile_r, OUT_LANES), lambda i: (i, 0))
    out_shape = jax.ShapeDtypeStruct((rows, OUT_LANES), jnp.float32)

    out = pl.pallas_call(
        nerf_kernel,
        grid_spec=pltpu.PrefetchScalarGridSpec(
            num_scalar_prefetch=0,
            grid=(rows // tile_r,),
            in_specs=in_specs,
            out_specs=out_specs,
        ),
        out_shape=out_shape,
        compiler_params=pltpu.CompilerParams(
            dimension_semantics=("parallel",),      # megacore sharding on v7x
            vmem_limit_bytes=48 * 1024 * 1024,
        ),
    )(pts_f, views_f, w_packed, b_packed)

    rgba = out.reshape(n_pad, 4)[:N]                # free reshape, drop pad rays
    return rgba[:, :3], rgba[:, 3:4]


# --------------------------- pure-JAX references -----------------------------
def nerf_reference(points, views, params, dot_dtype=None):
    """Module-faithful forward.  dot_dtype=None -> pure f32 (HIGHEST precision);
    dot_dtype=bf16 -> precision-matched to the kernel (bf16 operands, f32 acc)."""
    if dot_dtype is None:
        def dot(x, w):
            return jnp.dot(x, w, precision=lax.Precision.HIGHEST,
                           preferred_element_type=jnp.float32)
    else:
        def dot(x, w):
            return jnp.dot(x.astype(dot_dtype), w.astype(dot_dtype),
                           preferred_element_type=jnp.float32)

    p = points
    for i in range(D):
        p = jnp.maximum(dot(p, params["pts_w"][i]) + params["pts_b"][i], 0.0)
        if i in SKIPS:
            p = jnp.concatenate([points, p], axis=-1)
    alpha = dot(p, params["alpha_w"]) + params["alpha_b"]
    feature = dot(p, params["feature_w"]) + params["feature_b"]
    h = jnp.concatenate([feature, views], axis=-1)
    h = jnp.maximum(dot(h, params["views_w"]) + params["views_b"], 0.0)
    rgb = dot(h, params["rgb_w"]) + params["rgb_b"]
    return rgb, alpha


# -------------------------------- main ---------------------------------------
if __name__ == "__main__":
    key = jax.random.PRNGKey(0)
    kp, kv, kw = jax.random.split(key, 3)

    N = 8192                       # 4 grid steps at the default tile_rays=2048
    points = jax.random.normal(kp, (N, INPUT_CH), jnp.float32)
    views = jax.random.normal(kv, (N, INPUT_CH_VIEWS), jnp.float32)
    params = init_params(kw)

    w_packed, b_packed = pack_params(params)        # one-time packing
    rgb, alpha = nerf_forward(points, views, w_packed, b_packed)
    jax.block_until_ready((rgb, alpha))

    # Tight check against a precision-matched reference (bf16 operands, f32 acc).
    rgb_bf, alpha_bf = nerf_reference(points, views, params, dot_dtype=jnp.bfloat16)
    assert jnp.allclose(rgb, rgb_bf, atol=1e-3, rtol=1e-3)
    assert jnp.allclose(alpha, alpha_bf, atol=1e-3, rtol=1e-3)

    # Loose check against the pure-f32 module reference (bf16 MXU vs f32 math).
    rgb_f32, alpha_f32 = nerf_reference(points, views, params)
    assert jnp.allclose(rgb, rgb_f32, atol=5e-2, rtol=5e-2)
    assert jnp.allclose(alpha, alpha_f32, atol=5e-2, rtol=5e-2)

    # Remainder handling: N not a multiple of the tile / 4-ray fold.
    M = 1000
    rgb_m, alpha_m = nerf_forward(points[:M], views[:M], w_packed, b_packed)
    jax.block_until_ready((rgb_m, alpha_m))
    assert rgb_m.shape == (M, 3) and alpha_m.shape == (M, 1)
    assert jnp.allclose(rgb_m, rgb_bf[:M], atol=1e-3, rtol=1e-3)
    assert jnp.allclose(alpha_m, alpha_bf[:M], atol=1e-3, rtol=1e-3)

    print("KERNEL_OK")
</pallas_src>

<mosaic_0001>
module attributes {stable_mosaic.version = 11 : i64} {
  func.func @_k(%arg0: i32, %arg1: memref<8x128xf32, #tpu.memory_space<vmem>>, %arg2: memref<8x128xf32, #tpu.memory_space<vmem>>) attributes {dimension_semantics = [#tpu.dimension_semantics<arbitrary>], iteration_bounds = array<i64: 2>, scalar_prefetch = 0 : i64, scratch_operands = 0 : i64, tpu.core_type = #tpu.core_type<tc>, window_params = [{pipeline_mode = #tpu.pipeline_mode<synchronous>, transform_indices = @transform_0, window_bounds = array<i64: 8, 128>}, {pipeline_mode = #tpu.pipeline_mode<synchronous>, transform_indices = @transform_1, window_bounds = array<i64: 8, 128>}]} {
    %c0 = arith.constant 0 : index
    %c0_0 = arith.constant 0 : index
    %0 = vector.load %arg1[%c0, %c0_0] : memref<8x128xf32, #tpu.memory_space<vmem>>, vector<8x128xf32>
    %cst = arith.constant 1.000000e+00 : f32
    %1 = vector.broadcast %cst : f32 to vector<8x128xf32>
    %2 = arith.addf %0, %1 : vector<8x128xf32>
    %c0_1 = arith.constant 0 : index
    %c0_2 = arith.constant 0 : index
    %3 = vector.load %arg2[%c0_1, %c0_2] : memref<8x128xf32, #tpu.memory_space<vmem>>, vector<8x128xf32>
    tpu.vector_store %arg2[%c0_1, %c0_2], %2 {strides = array<i32>} : memref<8x128xf32, #tpu.memory_space<vmem>>, vector<8x128xf32>,
    return
  }
  func.func @transform_0(%arg0: i32) -> (i32, i32) {
    %c0_i32 = arith.constant 0 : i32
    %c0_i32_0 = arith.constant 0 : i32
    %c0_i32_1 = arith.constant 0 : i32
    return %c0_i32, %c0_i32_0 : i32, i32
  }
  func.func @transform_1(%arg0: i32) -> (i32, i32) {
    %c0_i32 = arith.constant 0 : i32
    %c0_i32_0 = arith.constant 0 : i32
    %c0_i32_1 = arith.constant 0 : i32
    return %c0_i32, %c0_i32_0 : i32, i32
  }
}

module attributes {stable_mosaic.version = 11 : i64} {
  func.func @nerf_kernel(%arg0: i32, %arg1: memref<512x96xf32, #tpu.memory_space<vmem>>, %arg2: memref<512x48xf32, #tpu.memory_space<vmem>>, %arg3: memref<1136x128xbf16, #tpu.memory_space<vmem>>, %arg4: memref<8x128xf32, #tpu.memory_space<vmem>>, %arg5: memref<512x16xf32, #tpu.memory_space<vmem>>) attributes {dimension_semantics = [#tpu.dimension_semantics<parallel>], iteration_bounds = array<i64: 4>, scalar_prefetch = 0 : i64, scratch_operands = 0 : i64, tpu.core_type = #tpu.core_type<tc>, window_params = [{transform_indices = @transform_0, window_bounds = array<i64: 512, 96>}, {transform_indices = @transform_1, window_bounds = array<i64: 512, 48>}, {pipeline_mode = #tpu.pipeline_mode<synchronous>, transform_indices = @transform_2, window_bounds = array<i64: 1136, 128>}, {pipeline_mode = #tpu.pipeline_mode<synchronous>, transform_indices = @transform_3, window_bounds = array<i64: 8, 128>}, {transform_indices = @transform_4, window_bounds = array<i64: 512, 16>}]} {
    %c0 = arith.constant 0 : index
    %c0_0 = arith.constant 0 : index
    %0 = vector.load %arg1[%c0, %c0_0] : memref<512x96xf32, #tpu.memory_space<vmem>>, vector<512x96xf32>
    %1 = arith.truncf %0 : vector<512x96xf32> to vector<512x96xbf16>
    %c0_1 = arith.constant 0 : index
    %c0_2 = arith.constant 0 : index
    %2 = vector.load %arg2[%c0_1, %c0_2] : memref<512x48xf32, #tpu.memory_space<vmem>>, vector<512x48xf32>
    %3 = arith.truncf %2 : vector<512x48xf32> to vector<512x48xbf16>
    %c0_3 = arith.constant 0 : index
    %c0_4 = arith.constant 0 : index
    %4 = vector.load %arg3[%c0_3, %c0_4] : memref<1136x128xbf16, #tpu.memory_space<vmem>>, vector<96x128xbf16>
    %cst = arith.constant dense<0.000000e+00> : vector<512x128xf32>
    %5 = tpu.matmul %1, %4, %cst {dimension_numbers = #tpu.dot_dimension_numbers<[1], [0], [0], [1], [0, 0, 1, 1], [], []>} : vector<512x96xbf16>, vector<96x128xbf16>, vector<512x128xf32> -> vector<512x128xf32>
    %c0_5 = arith.constant 0 : index
    %c0_6 = arith.constant 0 : index
    %6 = vector.load %arg4[%c0_5, %c0_6] : memref<8x128xf32, #tpu.memory_space<vmem>>, vector<1x128xf32>
    %7 = vector.broadcast %6 : vector<1x128xf32> to vector<512x128xf32>
    %8 = arith.addf %5, %7 : vector<512x128xf32>
    %cst_7 = arith.constant 0.000000e+00 : f32
    %9 = vector.broadcast %cst_7 : f32 to vector<512x128xf32>
    %10 = arith.maximumf %8, %9 : vector<512x128xf32>
    %11 = arith.truncf %10 : vector<512x128xf32> to vector<512x128xbf16>
    %c96 = arith.constant 96 : index
    %c0_8 = arith.constant 0 : index
    %12 = vector.load %arg3[%c96, %c0_8] : memref<1136x128xbf16, #tpu.memory_space<vmem>>, vector<128x128xbf16>
    %cst_9 = arith.constant dense<0.000000e+00> : vector<512x128xf32>
    %13 = tpu.matmul %11, %12, %cst_9 {dimension_numbers = #tpu.dot_dimension_numbers<[1], [0], [0], [1], [0, 0, 1, 1], [], []>} : vector<512x128xbf16>, vector<128x128xbf16>, vector<512x128xf32> -> vector<512x128xf32>
    %c1 = arith.constant 1 : index
    %c0_10 = arith.constant 0 : index
    %14 = vector.load %arg4[%c1, %c0_10] : memref<8x128xf32, #tpu.memory_space<vmem>>, vector<1x128xf32>
    %15 = vector.broadcast %14 : vector<1x128xf32> to vector<512x128xf32>
    %16 = arith.addf %13, %15 : vector<512x128xf32>
    %cst_11 = arith.constant 0.000000e+00 : f32
    %17 = vector.broadcast %cst_11 : f32 to vector<512x128xf32>
    %18 = arith.maximumf %16, %17 : vector<512x128xf32>
    %19 = arith.truncf %18 : vector<512x128xf32> to vector<512x128xbf16>
    %c224 = arith.constant 224 : index
    %c0_12 = arith.constant 0 : index
    %20 = vector.load %arg3[%c224, %c0_12] : memref<1136x128xbf16, #tpu.memory_space<vmem>>, vector<96x128xbf16>
    %cst_13 = arith.constant dense<0.000000e+00> : vector<512x128xf32>
    %21 = tpu.matmul %1, %20, %cst_13 {dimension_numbers = #tpu.dot_dimension_numbers<[1], [0], [0], [1], [0, 0, 1, 1], [], []>} : vector<512x96xbf16>, vector<96x128xbf16>, vector<512x128xf32> -> vector<512x128xf32>
    %c320 = arith.constant 320 : index
    %c0_14 = arith.constant 0 : index
    %22 = vector.load %arg3[%c320, %c0_14] : memref<1136x128xbf16, #tpu.memory_space<vmem>>, vector<128x128xbf16>
    %cst_15 = arith.constant dense<0.000000e+00> : vector<512x128xf32>
    %23 = tpu.matmul %19, %22, %cst_15 {dimension_numbers = #tpu.dot_dimension_numbers<[1], [0], [0], [1], [0, 0, 1, 1], [], []>} : vector<512x128xbf16>, vector<128x128xbf16>, vector<512x128xf32> -> vector<512x128xf32>
    %24 = arith.addf %21, %23 : vector<512x128xf32>
    %c2 = arith.constant 2 : index
    %c0_16 = arith.constant 0 : index
    %25 = vector.load %arg4[%c2, %c0_16] : memref<8x128xf32, #tpu.memory_space<vmem>>, vector<1x128xf32>
    %26 = vector.broadcast %25 : vector<1x128xf32> to vector<512x128xf32>
    %27 = arith.addf %24, %26 : vector<512x128xf32>
    %cst_17 = arith.constant 0.000000e+00 : f32
    %28 = vector.broadcast %cst_17 : f32 to vector<512x128xf32>
    %29 = arith.maximumf %27, %28 : vector<512x128xf32>
    %30 = arith.truncf %29 : vector<512x128xf32> to vector<512x128xbf16>
    %c448 = arith.constant 448 : index
    %c0_18 = arith.constant 0 : index
    %31 = vector.load %arg3[%c448, %c0_18] : memref<1136x128xbf16, #tpu.memory_space<vmem>>, vector<128x128xbf16>
    %cst_19 = arith.constant dense<0.000000e+00> : vector<512x128xf32>
    %32 = tpu.matmul %30, %31, %cst_19 {dimension_numbers = #tpu.dot_dimension_numbers<[1], [0], [0], [1], [0, 0, 1, 1], [], []>} : vector<512x128xbf16>, vector<128x128xbf16>, vector<512x128xf32> -> vector<512x128xf32>
    %c3 = arith.constant 3 : index
    %c0_20 = arith.constant 0 : index
    %33 = vector.load %arg4[%c3, %c0_20] : memref<8x128xf32, #tpu.memory_space<vmem>>, vector<1x128xf32>
    %34 = vector.broadcast %33 : vector<1x128xf32> to vector<512x128xf32>
    %35 = arith.addf %32, %34 : vector<512x128xf32>
    %cst_21 = arith.constant 0.000000e+00 : f32
    %36 = vector.broadcast %cst_21 : f32 to vector<512x128xf32>
    %37 = arith.maximumf %35, %36 : vector<512x128xf32>
    %38 = arith.truncf %37 : vector<512x128xf32> to vector<512x128xbf16>
    %c576 = arith.constant 576 : index
    %c0_22 = arith.constant 0 : index
    %39 = vector.load %arg3[%c576, %c0_22] : memref<1136x128xbf16, #tpu.memory_space<vmem>>, vector<128x128xbf16>
    %cst_23 = arith.constant dense<0.000000e+00> : vector<512x128xf32>
    %40 = tpu.matmul %38, %39, %cst_23 {dimension_numbers = #tpu.dot_dimension_numbers<[1], [0], [0], [1], [0, 0, 1, 1], [], []>} : vector<512x128xbf16>, vector<128x128xbf16>, vector<512x128xf32> -> vector<512x128xf32>
    %c4 = arith.constant 4 : index
    %c0_24 = arith.constant 0 : index
    %41 = vector.load %arg4[%c4, %c0_24] : memref<8x128xf32, #tpu.memory_space<vmem>>, vector<1x128xf32>
    %42 = vector.broadcast %41 : vector<1x128xf32> to vector<512x128xf32>
    %43 = arith.addf %40, %42 : vector<512x128xf32>
    %44 = arith.truncf %43 : vector<512x128xf32> to vector<512x128xbf16>
    %c704 = arith.constant 704 : index
    %c0_25 = arith.constant 0 : index
    %45 = vector.load %arg3[%c704, %c0_25] : memref<1136x128xbf16, #tpu.memory_space<vmem>>, vector<128x128xbf16>
    %cst_26 = arith.constant dense<0.000000e+00> : vector<512x128xf32>
    %46 = tpu.matmul %44, %45, %cst_26 {dimension_numbers = #tpu.dot_dimension_numbers<[1], [0], [0], [1], [0, 0, 1, 1], [], []>} : vector<512x128xbf16>, vector<128x128xbf16>, vector<512x128xf32> -> vector<512x128xf32>
    %c832 = arith.constant 832 : index
    %c0_27 = arith.constant 0 : index
    %47 = vector.load %arg3[%c832, %c0_27] : memref<1136x128xbf16, #tpu.memory_space<vmem>>, vector<48x128xbf16>
    %cst_28 = arith.constant dense<0.000000e+00> : vector<512x128xf32>
    %48 = tpu.matmul %3, %47, %cst_28 {dimension_numbers = #tpu.dot_dimension_numbers<[1], [0], [0], [1], [0, 0, 1, 1], [], []>} : vector<512x48xbf16>, vector<48x128xbf16>, vector<512x128xf32> -> vector<512x128xf32>
    %49 = arith.addf %46, %48 : vector<512x128xf32>
    %c5 = arith.constant 5 : index
    %c0_29 = arith.constant 0 : index
    %50 = vector.load %arg4[%c5, %c0_29] : memref<8x128xf32, #tpu.memory_space<vmem>>, vector<1x128xf32>
    %51 = vector.broadcast %50 : vector<1x128xf32> to vector<512x128xf32>
    %52 = arith.addf %49, %51 : vector<512x128xf32>
    %cst_30 = arith.constant 0.000000e+00 : f32
    %53 = vector.broadcast %cst_30 : f32 to vector<512x128xf32>
    %54 = arith.maximumf %52, %53 : vector<512x128xf32>
    %55 = arith.truncf %54 : vector<512x128xf32> to vector<512x128xbf16>
    %c880 = arith.constant 880 : index
    %c0_31 = arith.constant 0 : index
    %56 = vector.load %arg3[%c880, %c0_31] : memref<1136x128xbf16, #tpu.memory_space<vmem>>, vector<128x128xbf16>
    %cst_32 = arith.constant dense<0.000000e+00> : vector<512x128xf32>
    %57 = tpu.matmul %55, %56, %cst_32 {dimension_numbers = #tpu.dot_dimension_numbers<[1], [0], [0], [1], [0, 0, 1, 1], [], []>} : vector<512x128xbf16>, vector<128x128xbf16>, vector<512x128xf32> -> vector<512x128xf32>
    %c1008 = arith.constant 1008 : index
    %c0_33 = arith.constant 0 : index
    %58 = vector.load %arg3[%c1008, %c0_33] : memref<1136x128xbf16, #tpu.memory_space<vmem>>, vector<128x128xbf16>
    %cst_34 = arith.constant dense<0.000000e+00> : vector<512x128xf32>
    %59 = tpu.matmul %38, %58, %cst_34 {dimension_numbers = #tpu.dot_dimension_numbers<[1], [0], [0], [1], [0, 0, 1, 1], [], []>} : vector<512x128xbf16>, vector<128x128xbf16>, vector<512x128xf32> -> vector<512x128xf32>
    %60 = arith.addf %57, %59 : vector<512x128xf32>
    %c6 = arith.constant 6 : index
    %c0_35 = arith.constant 0 : index
    %61 = vector.load %arg4[%c6, %c0_35] : memref<8x128xf32, #tpu.memory_space<vmem>>, vector<1x128xf32>
    %62 = vector.broadcast %61 : vector<1x128xf32> to vector<512x128xf32>
    %63 = arith.addf %60, %62 : vector<512x128xf32>
    %64 = vector.extract_strided_slice %63 {offsets = [0, 0], sizes = [512, 16], strides = [1, 1]} : vector<512x128xf32> to vector<512x16xf32>
    %c0_36 = arith.constant 0 : index
    %c0_37 = arith.constant 0 : index
    %65 = vector.load %arg5[%c0_36, %c0_37] : memref<512x16xf32, #tpu.memory_space<vmem>>, vector<512x16xf32>
    tpu.vector_store %arg5[%c0_36, %c0_37], %64 {strides = array<i32>} : memref<512x16xf32, #tpu.memory_space<vmem>>, vector<512x16xf32>,
    return
  }
  func.func @transform_0(%arg0: i32) -> (i32, i32) {
    %c0_i32 = arith.constant 0 : i32
    %c0_i32_0 = arith.constant 0 : i32
    return %arg0, %c0_i32 : i32, i32
  }
  func.func @transform_1(%arg0: i32) -> (i32, i32) {
    %c0_i32 = arith.constant 0 : i32
    %c0_i32_0 = arith.constant 0 : i32
    return %arg0, %c0_i32 : i32, i32
  }
  func.func @transform_2(%arg0: i32) -> (i32, i32) {
    %c0_i32 = arith.constant 0 : i32
    %c0_i32_0 = arith.constant 0 : i32
    %c0_i32_1 = arith.constant 0 : i32
    return %c0_i32, %c0_i32_0 : i32, i32
  }
  func.func @transform_3(%arg0: i32) -> (i32, i32) {
    %c0_i32 = arith.constant 0 : i32
    %c0_i32_0 = arith.constant 0 : i32
    %c0_i32_1 = arith.constant 0 : i32
    return %c0_i32, %c0_i32_0 : i32, i32
  }
  func.func @transform_4(%arg0: i32) -> (i32, i32) {
    %c0_i32 = arith.constant 0 : i32
    %c0_i32_0 = arith.constant 0 : i32
    return %arg0, %c0_i32 : i32, i32
  }
}

</mosaic_0001>

<llo_original>
// kernel: tpu_custom_call.1
$region0: #{tpu_custom_call.1}
  #allocation0 [shape = 'u32[]', space=smem, size = 0x4, offset = 0x4, fixed_abs, tag = 'smem constant byte address 0x4 - core index']
  #allocation1 [shape = 'u32[72,128]{1,0:T(1,128)}', space=vmem, size = 0x9000, scoped, tag = 'internal scratch']
  %s0 = inlined_call_operand.hbm [shape: f32[8,128], index: 0, kind: input, shape index: {}]
  %s1 = inlined_call_operand.hbm [shape: f32[8,128], index: 1, kind: output, shape index: {}]
  %s2 = sld [smem:[#allocation0]]
  $region41: #{tpu_custom_call.1} parent=0
    _
  %s4 = ssub.s32 1, %s2
  %s5 = scalar_select 0, %s4, %s2
  $region1: #{tpu_custom_call.1} parent=0
    #allocation2 [shape = 'u8[4096]{0}', space=vmem, size = 0x1000, scoped, tag = 'input window, operand 0, single buffered']
    #allocation3 [shape = 's32[2]{0}', space=sflag, size = 0x8, scoped, tag = 'scoped memory for tpu_custom_call.1']
    #allocation4 [shape = 's32[2]{0}', space=sflag, size = 0x8, scoped, tag = 'scoped memory for tpu_custom_call.1']
    #allocation5 [shape = 'u8[4096]{0}', space=vmem, size = 0x1000, scoped, tag = 'output window, operand 0, single buffered']
    %6 = vsyncpa [#allocation3], 0
    %7 = vsyncpa [#allocation4], 0
    loop: start=0, step=1, limit=4
    $region2: #{tpu_custom_call.1} parent=1 // loop_pre_header
      _
    $region3: #{tpu_custom_call.1} parent=1 // loop_header
      %s9 = sphi 0, %s13
      %p10 = scmp.ge.s32.totalorder %s9, 4
      %s17 = sphi 0, %s17
      %s19 = sphi 0, %s17
      %s20 = sphi 0, %s19
      %s34 = sphi 0, %s20
      %s38 = sphi 0, %s38
      %s40 = sphi 0, %s38
      %s41 = sphi 0, %s40
      %s55 = sphi 0, %s41
    $region4: #{tpu_custom_call.1} parent=1 // loop_header_branch
      %12 = sbr.rel (%p10) target = $region8
    $region5: #{tpu_custom_call.1} parent=1 // loop_body
      %s14 = ssub.s32 %s9, 1
      %s15 = ssub.s32 %s9, 2
      %s16 = sadd.s32 %s9, 1
      %s18 = sadd.s32 %s17, 1
      %p21 = scmp.eq.s32.totalorder %s9, 1
      %p22 = scmp.ne.s32.totalorder %s17, %s19
      %p23 = scmp.eq.s32.totalorder %s9, 0
      %p24 = por %p22, %p23
      %p25 = scmp.ne.s32.totalorder %s17, %s19
      %p26 = scmp.eq.s32.totalorder %s14, 1
      %p27 = por %p25, %p26
      %p28 = scmp.ne.s32.totalorder %s19, %s20
      %p29 = scmp.eq.s32.totalorder %s14, 0
      %p30 = por %p28, %p29
      %p31 = scmp.ne.s32.totalorder %s19, %s20
      %p32 = scmp.eq.s32.totalorder %s15, 1
      %p33 = por %p31, %p32
      %p35 = scmp.ne.s32.totalorder %s20, %s34
      %p36 = scmp.eq.s32.totalorder %s15, 0
      %p37 = por %p35, %p36
      %s39 = sadd.s32 %s38, 1
      %p42 = scmp.eq.s32.totalorder %s9, 1
      %p43 = scmp.ne.s32.totalorder %s38, %s40
      %p44 = scmp.eq.s32.totalorder %s9, 0
      %p45 = por %p43, %p44
      %p46 = scmp.ne.s32.totalorder %s38, %s40
      %p47 = scmp.eq.s32.totalorder %s14, 1
      %p48 = por %p46, %p47
      %p49 = scmp.ne.s32.totalorder %s40, %s41
      %p50 = scmp.eq.s32.totalorder %s14, 0
      %p51 = por %p49, %p50
      %p52 = scmp.ne.s32.totalorder %s40, %s41
      %p53 = scmp.eq.s32.totalorder %s15, 1
      %p54 = por %p52, %p53
      %p56 = scmp.ne.s32.totalorder %s41, %s55
      %p57 = scmp.eq.s32.totalorder %s15, 0
      %p58 = por %p56, %p57
      %p59 = scmp.le.s32.totalorder 1, %s9
      %p60 = scmp.lt.s32.totalorder %s9, 3
      %p61 = pnand %p59, %p60
      %p62 = pneg %p61
      // Predicated region
      $region9: #{tpu_custom_call.1} parent=5 // pred_check
        _
      $region10: #{tpu_custom_call.1} parent=5 // pred_check_branch
        %64 = sbr.rel (%p61) target = $region12
      $region11: #{tpu_custom_call.1} parent=5 // pred_region
        %s65 = ssub.s32 %s9, 1
        // Predicated region
        $region13: #{tpu_custom_call.1} parent=11 // pred_check
          %p66 = pneg %p30
        $region14: #{tpu_custom_call.1} parent=11 // pred_check_branch
          %68 = sbr.rel (%p66) target = $region16
        $region15: #{tpu_custom_call.1} parent=11 // pred_region
          %70 = vsyncadd [#allocation3], 0
          %s72 = sshll.u32 %s0, 4
          %s73 = int_to_ptr.hbm [resolvable:$true] %s72
          %s74 = sshll.u32 [#allocation2], 4
          %s75 = int_to_ptr.vmem [resolvable:$true] %s74
          %77 = dma.hbm_to_vmem [thread:$0]  %s73, 128, %s75, [#allocation3]
        $region16: #{tpu_custom_call.1} parent=11 // pred_fallthru
          _
      $region12: #{tpu_custom_call.1} parent=5 // pred_fallthru
        _
      %p78 = scmp.lt.s32.totalorder %s9, 2
      // Predicated region
      $region17: #{tpu_custom_call.1} parent=5 // pred_check
        %p79 = pneg %p78
      $region18: #{tpu_custom_call.1} parent=5 // pred_check_branch
        %81 = sbr.rel (%p79) target = $region20
      $region19: #{tpu_custom_call.1} parent=5 // pred_region
        _
      $region20: #{tpu_custom_call.1} parent=5 // pred_fallthru
        _
      %p82 = scmp.le.s32.totalorder 1, %s9
      %p83 = scmp.lt.s32.totalorder %s9, 3
      %p84 = pnand %p82, %p83
      %p85 = pneg %p84
      // Predicated region
      $region21: #{tpu_custom_call.1} parent=5 // pred_check
        _
      $region22: #{tpu_custom_call.1} parent=5 // pred_check_branch
        %87 = sbr.rel (%p84) target = $region24
      $region23: #{tpu_custom_call.1} parent=5 // pred_region
        %s88 = ssub.s32 %s9, 1
        // Predicated region
        $region25: #{tpu_custom_call.1} parent=23 // pred_check
          %p89 = pneg %p30
        $region26: #{tpu_custom_call.1} parent=23 // pred_check_branch
          %91 = sbr.rel (%p89) target = $region28
        $region27: #{tpu_custom_call.1} parent=23 // pred_region
          %93 = dma.done [#allocation3], 128
        $region28: #{tpu_custom_call.1} parent=23 // pred_fallthru
          _
        %p94 = pneg %p30
        %p95 = pneg %p27
        %p96 = pneg %p51
        %p97 = pneg %p48
        %v98 = vld [vmem:[#allocation2] sm:$0xff]
        %v99 = vadd.f32 %v98, 1.0
        %100 = vst [vmem:[#allocation5] sm:$0xff] %v99
        // Predicated region
        $region29: #{tpu_custom_call.1} parent=23 // pred_check
          %p101 = pneg %p48
        $region30: #{tpu_custom_call.1} parent=23 // pred_check_branch
          %103 = sbr.rel (%p101) target = $region32
        $region31: #{tpu_custom_call.1} parent=23 // pred_region
          %105 = vsyncadd [#allocation4], 0
          %s107 = sshll.u32 [#allocation5], 4
          %s108 = int_to_ptr.vmem [resolvable:$true] %s107
          %s109 = sshll.u32 %s1, 4
          %s110 = int_to_ptr.hbm [resolvable:$true] %s109
          %112 = dma.vmem_to_hbm [thread:$0]  %s108, 128, %s110, [#allocation4]
        $region32: #{tpu_custom_call.1} parent=23 // pred_fallthru
          _
        // Predicated region
        $region33: #{tpu_custom_call.1} parent=23 // pred_check
          %p113 = pneg %p48
        $region34: #{tpu_custom_call.1} parent=23 // pred_check_branch
          %115 = sbr.rel (%p113) target = $region36
        $region35: #{tpu_custom_call.1} parent=23 // pred_region
          %117 = dma.done [#allocation4], 128
        $region36: #{tpu_custom_call.1} parent=23 // pred_fallthru
          _
      $region24: #{tpu_custom_call.1} parent=5 // pred_fallthru
        _
      %p118 = scmp.le.s32.totalorder 2, %s9
      // Predicated region
      $region37: #{tpu_custom_call.1} parent=5 // pred_check
        %p119 = pneg %p118
      $region38: #{tpu_custom_call.1} parent=5 // pred_check_branch
        %121 = sbr.rel (%p119) target = $region40
      $region39: #{tpu_custom_call.1} parent=5 // pred_region
        %s122 = ssub.s32 %s9, 2
      $region40: #{tpu_custom_call.1} parent=5 // pred_fallthru
        _
    $region6: #{tpu_custom_call.1} parent=1 // loop_footer
      %s13 = sadd.s32 1, %s9
    $region7: #{tpu_custom_call.1} parent=1 // loop_footer_branch
      %8 = sbr.rel target = $region3
    $region8: #{tpu_custom_call.1} parent=1 // loop_exit
      _
    %123 = vsyncpa [#allocation3], 1
    %s124 = scalar_lea.sflag [#allocation3], 1
    %125 = vsyncpa %s124, 1
    %126 = vsyncpa [#allocation4], 1
    %s127 = scalar_lea.sflag [#allocation4], 1
    %128 = vsyncpa %s127, 1

// kernel: nerf_forward.1
$region0: #{nerf_forward.1}
  #allocation0 [shape = 'u32[]', space=smem, size = 0x4, offset = 0x4, fixed_abs, tag = 'smem constant byte address 0x4 - core index']
  #allocation1 [shape = 'u32[72,128]{1,0:T(1,128)}', space=vmem, size = 0x9000, scoped, tag = 'internal scratch']
  %s0 = inlined_call_operand.vmem [shape: f32[2048,96], index: 0, kind: input, shape index: {}]
  %s1 = inlined_call_operand.vmem [shape: f32[2048,48], index: 1, kind: input, shape index: {}]
  %s2 = inlined_call_operand.vmem [shape: bf16[1136,128], index: 2, kind: input, shape index: {}]
  %s3 = inlined_call_operand.vmem [shape: f32[8,128], index: 3, kind: input, shape index: {}]
  %s4 = inlined_call_operand.vmem [shape: f32[2048,16], index: 4, kind: output, shape index: {}]
  %s5 = sld [smem:[#allocation0]]
  $region49: #{nerf_forward.1} parent=0
    _
  %s7 = ssub.s32 1, %s5
  %s8 = scalar_select 0, %s7, %s5
  loop: start=0, step=1, limit=6
  $region2: #{nerf_forward.1} parent=0 // loop_pre_header
    _
  $region3: #{nerf_forward.1} parent=0 // loop_header
    %s10 = sphi 0, %s14
    %p11 = scmp.ge.s32.totalorder %s10, 6
    %s20 = sphi 0, %s22
    %s23 = sphi 0, %s20
    %s24 = sphi 0, %s23
    %s40 = sphi 0, %s24
    %s46 = sphi 0, %s48
    %s49 = sphi 0, %s46
    %s50 = sphi 0, %s49
    %s66 = sphi 0, %s50
    %s70 = sphi 0, %s70
    %s72 = sphi 0, %s70
    %s73 = sphi 0, %s72
    %s87 = sphi 0, %s73
    %s91 = sphi 0, %s91
    %s93 = sphi 0, %s91
    %s94 = sphi 0, %s93
    %s108 = sphi 0, %s94
    %s114 = sphi 0, %s116
    %s117 = sphi 0, %s114
    %s118 = sphi 0, %s117
    %s134 = sphi 0, %s118
  $region4: #{nerf_forward.1} parent=0 // loop_header_branch
    %13 = sbr.rel (%p11) target = $region8
  $region5: #{nerf_forward.1} parent=0 // loop_body
    %s15 = ssub.s32 %s10, 1
    %s16 = ssub.s32 %s10, 2
    %s17 = sadd.s32 %s10, 1
    %s18 = ssub.s32 %s10, %s17
    %p19 = scmp.eq.s32.totalorder %s18, 0
    %s21 = sadd.s32 %s20, 1
    %s22 = scalar_select %p19, %s20, %s21
    %p25 = pneg %p19
    %p26 = scmp.eq.s32.totalorder %s10, 3
    %p27 = por %p25, %p26
    %p28 = scmp.ne.s32.totalorder %s20, %s23
    %p29 = scmp.eq.s32.totalorder %s10, 0
    %p30 = por %p28, %p29
    %p31 = scmp.ne.s32.totalorder %s20, %s23
    %p32 = scmp.eq.s32.totalorder %s15, 3
    %p33 = por %p31, %p32
    %p34 = scmp.ne.s32.totalorder %s23, %s24
    %p35 = scmp.eq.s32.totalorder %s15, 0
    %p36 = por %p34, %p35
    %p37 = scmp.ne.s32.totalorder %s23, %s24
    %p38 = scmp.eq.s32.totalorder %s16, 3
    %p39 = por %p37, %p38
    %p41 = scmp.ne.s32.totalorder %s24, %s40
    %p42 = scmp.eq.s32.totalorder %s16, 0
    %p43 = por %p41, %p42
    %s44 = ssub.s32 %s10, %s17
    %p45 = scmp.eq.s32.totalorder %s44, 0
    %s47 = sadd.s32 %s46, 1
    %s48 = scalar_select %p45, %s46, %s47
    %p51 = pneg %p45
    %p52 = scmp.eq.s32.totalorder %s10, 3
    %p53 = por %p51, %p52
    %p54 = scmp.ne.s32.totalorder %s46, %s49
    %p55 = scmp.eq.s32.totalorder %s10, 0
    %p56 = por %p54, %p55
    %p57 = scmp.ne.s32.totalorder %s46, %s49
    %p58 = scmp.eq.s32.totalorder %s15, 3
    %p59 = por %p57, %p58
    %p60 = scmp.ne.s32.totalorder %s49, %s50
    %p61 = scmp.eq.s32.totalorder %s15, 0
    %p62 = por %p60, %p61
    %p63 = scmp.ne.s32.totalorder %s49, %s50
    %p64 = scmp.eq.s32.totalorder %s16, 3
    %p65 = por %p63, %p64
    %p67 = scmp.ne.s32.totalorder %s50, %s66
    %p68 = scmp.eq.s32.totalorder %s16, 0
    %p69 = por %p67, %p68
    %s71 = sadd.s32 %s70, 1
    %p74 = scmp.eq.s32.totalorder %s10, 3
    %p75 = scmp.ne.s32.totalorder %s70, %s72
    %p76 = scmp.eq.s32.totalorder %s10, 0
    %p77 = por %p75, %p76
    %p78 = scmp.ne.s32.totalorder %s70, %s72
    %p79 = scmp.eq.s32.totalorder %s15, 3
    %p80 = por %p78, %p79
    %p81 = scmp.ne.s32.totalorder %s72, %s73
    %p82 = scmp.eq.s32.totalorder %s15, 0
    %p83 = por %p81, %p82
    %p84 = scmp.ne.s32.totalorder %s72, %s73
    %p85 = scmp.eq.s32.totalorder %s16, 3
    %p86 = por %p84, %p85
    %p88 = scmp.ne.s32.totalorder %s73, %s87
    %p89 = scmp.eq.s32.totalorder %s16, 0
    %p90 = por %p88, %p89
    %s92 = sadd.s32 %s91, 1
    %p95 = scmp.eq.s32.totalorder %s10, 3
    %p96 = scmp.ne.s32.totalorder %s91, %s93
    %p97 = scmp.eq.s32.totalorder %s10, 0
    %p98 = por %p96, %p97
    %p99 = scmp.ne.s32.totalorder %s91, %s93
    %p100 = scmp.eq.s32.totalorder %s15, 3
    %p101 = por %p99, %p100
    %p102 = scmp.ne.s32.totalorder %s93, %s94
    %p103 = scmp.eq.s32.totalorder %s15, 0
    %p104 = por %p102, %p103
    %p105 = scmp.ne.s32.totalorder %s93, %s94
    %p106 = scmp.eq.s32.totalorder %s16, 3
    %p107 = por %p105, %p106
    %p109 = scmp.ne.s32.totalorder %s94, %s108
    %p110 = scmp.eq.s32.totalorder %s16, 0
    %p111 = por %p109, %p110
    %s112 = ssub.s32 %s10, %s17
    %p113 = scmp.eq.s32.totalorder %s112, 0
    %s115 = sadd.s32 %s114, 1
    %s116 = scalar_select %p113, %s114, %s115
    %p119 = pneg %p113
    %p120 = scmp.eq.s32.totalorder %s10, 3
    %p121 = por %p119, %p120
    %p122 = scmp.ne.s32.totalorder %s114, %s117
    %p123 = scmp.eq.s32.totalorder %s10, 0
    %p124 = por %p122, %p123
    %p125 = scmp.ne.s32.totalorder %s114, %s117
    %p126 = scmp.eq.s32.totalorder %s15, 3
    %p127 = por %p125, %p126
    %p128 = scmp.ne.s32.totalorder %s117, %s118
    %p129 = scmp.eq.s32.totalorder %s15, 0
    %p130 = por %p128, %p129
    %p131 = scmp.ne.s32.totalorder %s117, %s118
    %p132 = scmp.eq.s32.totalorder %s16, 3
    %p133 = por %p131, %p132
    %p135 = scmp.ne.s32.totalorder %s118, %s134
    %p136 = scmp.eq.s32.totalorder %s16, 0
    %p137 = por %p135, %p136
    %p138 = scmp.le.s32.totalorder 1, %s10
    %p139 = scmp.lt.s32.totalorder %s10, 5
    %p140 = pnand %p138, %p139
    %p141 = pneg %p140
    // Predicated region
    $region9: #{nerf_forward.1} parent=5 // pred_check
      _
    $region10: #{nerf_forward.1} parent=5 // pred_check_branch
      %143 = sbr.rel (%p140) target = $region12
    $region11: #{nerf_forward.1} parent=5 // pred_region
      %s144 = ssub.s32 %s10, 1
      // Predicated region
      $region13: #{nerf_forward.1} parent=11 // pred_check
        %p145 = pneg %p83
      $region14: #{nerf_forward.1} parent=11 // pred_check_branch
        %147 = sbr.rel (%p145) target = $region16
      $region15: #{nerf_forward.1} parent=11 // pred_region
        _
      $region16: #{nerf_forward.1} parent=11 // pred_fallthru
        _
      // Predicated region
      $region17: #{nerf_forward.1} parent=11 // pred_check
        %p148 = pneg %p104
      $region18: #{nerf_forward.1} parent=11 // pred_check_branch
        %150 = sbr.rel (%p148) target = $region20
      $region19: #{nerf_forward.1} parent=11 // pred_region
        _
      $region20: #{nerf_forward.1} parent=11 // pred_fallthru
        _
    $region12: #{nerf_forward.1} parent=5 // pred_fallthru
      _
    %p151 = scmp.lt.s32.totalorder %s10, 4
    // Predicated region
    $region21: #{nerf_forward.1} parent=5 // pred_check
      %p152 = pneg %p151
    $region22: #{nerf_forward.1} parent=5 // pred_check_branch
      %154 = sbr.rel (%p152) target = $region24
    $region23: #{nerf_forward.1} parent=5 // pred_region
      // Predicated region
      $region25: #{nerf_forward.1} parent=23 // pred_check
        %p155 = pneg %p30
      $region26: #{nerf_forward.1} parent=23 // pred_check_branch
        %157 = sbr.rel (%p155) target = $region28
      $region27: #{nerf_forward.1} parent=23 // pred_region
        %s158 = smul.u32 64, %s10
        %p159 = scmp.lt.s32.totalorder %s158, 255
        %s160 = scalar_select %p159, %s158, 255
        %s161 = smul.addr %s160, 8
        %s162 = scalar_lea.vmem %s0, %s161
        %s163 = smul.u32 64, %s10
      $region28: #{nerf_forward.1} parent=23 // pred_fallthru
        _
      // Predicated region
      $region29: #{nerf_forward.1} parent=23 // pred_check
        %p164 = pneg %p56
      $region30: #{nerf_forward.1} parent=23 // pred_check_branch
        %166 = sbr.rel (%p164) target = $region32
      $region31: #{nerf_forward.1} parent=23 // pred_region
        %s167 = smul.u32 64, %s10
        %p168 = scmp.lt.s32.totalorder %s167, 255
        %s169 = scalar_select %p168, %s167, 255
        %s170 = smul.addr %s169, 8
        %s171 = scalar_lea.vmem %s1, %s170
        %s172 = smul.u32 64, %s10
      $region32: #{nerf_forward.1} parent=23 // pred_fallthru
        _
    $region24: #{nerf_forward.1} parent=5 // pred_fallthru
      _
    %p173 = scmp.le.s32.totalorder 1, %s10
    %p174 = scmp.lt.s32.totalorder %s10, 5
    %p175 = pnand %p173, %p174
    %p176 = pneg %p175
    // Predicated region
    $region33: #{nerf_forward.1} parent=5 // pred_check
      _
    $region34: #{nerf_forward.1} parent=5 // pred_check_branch
      %178 = sbr.rel (%p175) target = $region36
    $region35: #{nerf_forward.1} parent=5 // pred_region
      %s179 = ssub.s32 %s10, 1
      %s180 = smul.u32 64, %s15
      %p181 = scmp.lt.s32.totalorder %s180, 255
      %s182 = scalar_select %p181, %s180, 255
      %s183 = smul.addr %s182, 8
      %s184 = scalar_lea.vmem %s0, %s183
      %p185 = pneg %p36
      %p186 = pneg %p33
      %s187 = smul.u32 64, %s15
      %p188 = scmp.lt.s32.totalorder %s187, 255
      %s189 = scalar_select %p188, %s187, 255
      %s190 = smul.addr %s189, 8
      %s191 = scalar_lea.vmem %s1, %s190
      %p192 = pneg %p62
      %p193 = pneg %p59
      %p194 = pneg %p83
      %p195 = pneg %p80
      %p196 = pneg %p104
      %p197 = pneg %p101
      %p198 = pneg %p130
      %p199 = pneg %p127
      %s200 = smul.u32 64, %s15
      %p201 = scmp.lt.s32.totalorder %s200, 255
      %s202 = scalar_select %p201, %s200, 255
      %s203 = smul.addr %s202, 8
      %s204 = scalar_lea.vmem %s4, %s203
      %s205 = smul.u32 64, %s15
      %p206 = scmp.lt.s32.totalorder %s205, 255
      %s207 = scalar_select %p206, %s205, 255
      %s208 = smul.addr %s207, 8
      %s209 = scalar_lea.vmem %s0, %s208
      %s210 = smul.u32 64, %s15
      %s211 = smul.u32 64, %s15
      %p212 = scmp.lt.s32.totalorder %s211, 255
      %s213 = scalar_select %p212, %s211, 255
      %s214 = smul.addr %s213, 8
      %s215 = scalar_lea.vmem %s1, %s214
      %s216 = smul.u32 64, %s15
      %s217 = smul.u32 64, %s15
      %p218 = scmp.lt.s32.totalorder %s217, 255
      %s219 = scalar_select %p218, %s217, 255
      %s220 = smul.addr %s219, 8
      %s221 = scalar_lea.vmem %s4, %s220
      %s222 = smul.u32 64, %s15
      %v224 = vld [vmem:[%s209] sm:$0xff]
      %v225 = vld [vmem:[%s209 + $0x8] sm:$0xff]
      %v226 = vld [vmem:[%s209 + $0x10] sm:$0xff]
      %v227 = vld [vmem:[%s209 + $0x18] sm:$0xff]
      %v228 = vld [vmem:[%s209 + $0x20] sm:$0xff]
      %v229 = vld [vmem:[%s209 + $0x28] sm:$0xff]
      %v230 = vld [vmem:[%s209 + $0x30] sm:$0xff]
      %v231 = vld [vmem:[%s209 + $0x38] sm:$0xff]
      %v232 = vld [vmem:[%s209 + $0x40] sm:$0xff]
      %v233 = vld [vmem:[%s209 + $0x48] sm:$0xff]
      %v234 = vld [vmem:[%s209 + $0x50] sm:$0xff]
      %v235 = vld [vmem:[%s209 + $0x58] sm:$0xff]
      %v236 = vld [vmem:[%s209 + $0x60] sm:$0xff]
      %v237 = vld [vmem:[%s209 + $0x68] sm:$0xff]
      %v238 = vld [vmem:[%s209 + $0x70] sm:$0xff]
      %v239 = vld [vmem:[%s209 + $0x78] sm:$0xff]
      %v240 = vld [vmem:[%s209 + $0x80] sm:$0xff]
      %v241 = vld [vmem:[%s209 + $0x88] sm:$0xff]
      %v242 = vld [vmem:[%s209 + $0x90] sm:$0xff]
      %v243 = vld [vmem:[%s209 + $0x98] sm:$0xff]
      %v244 = vld [vmem:[%s209 + $0xa0] sm:$0xff]
      %v245 = vld [vmem:[%s209 + $0xa8] sm:$0xff]
      %v246 = vld [vmem:[%s209 + $0xb0] sm:$0xff]
      %v247 = vld [vmem:[%s209 + $0xb8] sm:$0xff]
      %v248 = vld [vmem:[%s209 + $0xc0] sm:$0xff]
      %v249 = vld [vmem:[%s209 + $0xc8] sm:$0xff]
      %v250 = vld [vmem:[%s209 + $0xd0] sm:$0xff]
      %v251 = vld [vmem:[%s209 + $0xd8] sm:$0xff]
      %v252 = vld [vmem:[%s209 + $0xe0] sm:$0xff]
      %v253 = vld [vmem:[%s209 + $0xe8] sm:$0xff]
      %v254 = vld [vmem:[%s209 + $0xf0] sm:$0xff]
      %v255 = vld [vmem:[%s209 + $0xf8] sm:$0xff]
      %v256 = vld [vmem:[%s209 + $0x100] sm:$0xff]
      %v257 = vld [vmem:[%s209 + $0x108] sm:$0xff]
      %v258 = vld [vmem:[%s209 + $0x110] sm:$0xff]
      %v259 = vld [vmem:[%s209 + $0x118] sm:$0xff]
      %v260 = vld [vmem:[%s209 + $0x120] sm:$0xff]
      %v261 = vld [vmem:[%s209 + $0x128] sm:$0xff]
      %v262 = vld [vmem:[%s209 + $0x130] sm:$0xff]
      %v263 = vld [vmem:[%s209 + $0x138] sm:$0xff]
      %v264 = vld [vmem:[%s209 + $0x140] sm:$0xff]
      %v265 = vld [vmem:[%s209 + $0x148] sm:$0xff]
      %v266 = vld [vmem:[%s209 + $0x150] sm:$0xff]
      %v267 = vld [vmem:[%s209 + $0x158] sm:$0xff]
      %v268 = vld [vmem:[%s209 + $0x160] sm:$0xff]
      %v269 = vld [vmem:[%s209 + $0x168] sm:$0xff]
      %v270 = vld [vmem:[%s209 + $0x170] sm:$0xff]
      %v271 = vld [vmem:[%s209 + $0x178] sm:$0xff]
      %v272 = vld [vmem:[%s209 + $0x180] sm:$0xff]
      %v273 = vld [vmem:[%s209 + $0x188] sm:$0xff]
      %v274 = vld [vmem:[%s209 + $0x190] sm:$0xff]
      %v275 = vld [vmem:[%s209 + $0x198] sm:$0xff]
      %v276 = vld [vmem:[%s209 + $0x1a0] sm:$0xff]
      %v277 = vld [vmem:[%s209 + $0x1a8] sm:$0xff]
      %v278 = vld [vmem:[%s209 + $0x1b0] sm:$0xff]
      %v279 = vld [vmem:[%s209 + $0x1b8] sm:$0xff]
      %v280 = vld [vmem:[%s209 + $0x1c0] sm:$0xff]
      %v281 = vld [vmem:[%s209 + $0x1c8] sm:$0xff]
      %v282 = vld [vmem:[%s209 + $0x1d0] sm:$0xff]
      %v283 = vld [vmem:[%s209 + $0x1d8] sm:$0xff]
      %v284 = vld [vmem:[%s209 + $0x1e0] sm:$0xff]
      %v285 = vld [vmem:[%s209 + $0x1e8] sm:$0xff]
      %v286 = vld [vmem:[%s209 + $0x1f0] sm:$0xff]
      %v287 = vld [vmem:[%s209 + $0x1f8] sm:$0xff]
      %v288 = vpack.c.bf16 %v225, %v224
      %v289 = vpack.c.bf16 %v227, %v226
      %v290 = vpack.c.bf16 %v229, %v228
      %v291 = vpack.c.bf16 %v231, %v230
      %v292 = vpack.c.bf16 %v233, %v232
      %v293 = vpack.c.bf16 %v235, %v234
      %v294 = vpack.c.bf16 %v237, %v236
      %v295 = vpack.c.bf16 %v239, %v238
      %v296 = vpack.c.bf16 %v241, %v240
      %v297 = vpack.c.bf16 %v243, %v242
      %v298 = vpack.c.bf16 %v245, %v244
      %v299 = vpack.c.bf16 %v247, %v246
      %v300 = vpack.c.bf16 %v249, %v248
      %v301 = vpack.c.bf16 %v251, %v250
      %v302 = vpack.c.bf16 %v253, %v252
      %v303 = vpack.c.bf16 %v255, %v254
      %v304 = vpack.c.bf16 %v257, %v256
      %v305 = vpack.c.bf16 %v259, %v258
      %v306 = vpack.c.bf16 %v261, %v260
      %v307 = vpack.c.bf16 %v263, %v262
      %v308 = vpack.c.bf16 %v265, %v264
      %v309 = vpack.c.bf16 %v267, %v266
      %v310 = vpack.c.bf16 %v269, %v268
      %v311 = vpack.c.bf16 %v271, %v270
      %v312 = vpack.c.bf16 %v273, %v272
      %v313 = vpack.c.bf16 %v275, %v274
      %v314 = vpack.c.bf16 %v277, %v276
      %v315 = vpack.c.bf16 %v279, %v278
      %v316 = vpack.c.bf16 %v281, %v280
      %v317 = vpack.c.bf16 %v283, %v282
      %v318 = vpack.c.bf16 %v285, %v284
      %v319 = vpack.c.bf16 %v287, %v286
      %v320 = vld [vmem:[%s215] sm:$0xff]
      %v321 = vld [vmem:[%s215 + $0x8] sm:$0xff]
      %v322 = vld [vmem:[%s215 + $0x10] sm:$0xff]
      %v323 = vld [vmem:[%s215 + $0x18] sm:$0xff]
      %v324 = vld [vmem:[%s215 + $0x20] sm:$0xff]
      %v325 = vld [vmem:[%s215 + $0x28] sm:$0xff]
      %v326 = vld [vmem:[%s215 + $0x30] sm:$0xff]
      %v327 = vld [vmem:[%s215 + $0x38] sm:$0xff]
      %v328 = vld [vmem:[%s215 + $0x40] sm:$0xff]
      %v329 = vld [vmem:[%s215 + $0x48] sm:$0xff]
      %v330 = vld [vmem:[%s215 + $0x50] sm:$0xff]
      %v331 = vld [vmem:[%s215 + $0x58] sm:$0xff]
      %v332 = vld [vmem:[%s215 + $0x60] sm:$0xff]
      %v333 = vld [vmem:[%s215 + $0x68] sm:$0xff]
      %v334 = vld [vmem:[%s215 + $0x70] sm:$0xff]
      %v335 = vld [vmem:[%s215 + $0x78] sm:$0xff]
      %v336 = vld [vmem:[%s215 + $0x80] sm:$0xff]
      %v337 = vld [vmem:[%s215 + $0x88] sm:$0xff]
      %v338 = vld [vmem:[%s215 + $0x90] sm:$0xff]
      %v339 = vld [vmem:[%s215 + $0x98] sm:$0xff]
      %v340 = vld [vmem:[%s215 + $0xa0] sm:$0xff]
      %v341 = vld [vmem:[%s215 + $0xa8] sm:$0xff]
      %v342 = vld [vmem:[%s215 + $0xb0] sm:$0xff]
      %v343 = vld [vmem:[%s215 + $0xb8] sm:$0xff]
      %v344 = vld [vmem:[%s215 + $0xc0] sm:$0xff]
      %v345 = vld [vmem:[%s215 + $0xc8] sm:$0xff]
      %v346 = vld [vmem:[%s215 + $0xd0] sm:$0xff]
      %v347 = vld [vmem:[%s215 + $0xd8] sm:$0xff]
      %v348 = vld [vmem:[%s215 + $0xe0] sm:$0xff]
      %v349 = vld [vmem:[%s215 + $0xe8] sm:$0xff]
      %v350 = vld [vmem:[%s215 + $0xf0] sm:$0xff]
      %v351 = vld [vmem:[%s215 + $0xf8] sm:$0xff]
      %v352 = vld [vmem:[%s215 + $0x100] sm:$0xff]
      %v353 = vld [vmem:[%s215 + $0x108] sm:$0xff]
      %v354 = vld [vmem:[%s215 + $0x110] sm:$0xff]
      %v355 = vld [vmem:[%s215 + $0x118] sm:$0xff]
      %v356 = vld [vmem:[%s215 + $0x120] sm:$0xff]
      %v357 = vld [vmem:[%s215 + $0x128] sm:$0xff]
      %v358 = vld [vmem:[%s215 + $0x130] sm:$0xff]
      %v359 = vld [vmem:[%s215 + $0x138] sm:$0xff]
      %v360 = vld [vmem:[%s215 + $0x140] sm:$0xff]
      %v361 = vld [vmem:[%s215 + $0x148] sm:$0xff]
      %v362 = vld [vmem:[%s215 + $0x150] sm:$0xff]
      %v363 = vld [vmem:[%s215 + $0x158] sm:$0xff]
      %v364 = vld [vmem:[%s215 + $0x160] sm:$0xff]
      %v365 = vld [vmem:[%s215 + $0x168] sm:$0xff]
      %v366 = vld [vmem:[%s215 + $0x170] sm:$0xff]
      %v367 = vld [vmem:[%s215 + $0x178] sm:$0xff]
      %v368 = vld [vmem:[%s215 + $0x180] sm:$0xff]
      %v369 = vld [vmem:[%s215 + $0x188] sm:$0xff]
      %v370 = vld [vmem:[%s215 + $0x190] sm:$0xff]
      %v371 = vld [vmem:[%s215 + $0x198] sm:$0xff]
      %v372 = vld [vmem:[%s215 + $0x1a0] sm:$0xff]
      %v373 = vld [vmem:[%s215 + $0x1a8] sm:$0xff]
      %v374 = vld [vmem:[%s215 + $0x1b0] sm:$0xff]
      %v375 = vld [vmem:[%s215 + $0x1b8] sm:$0xff]
      %v376 = vld [vmem:[%s215 + $0x1c0] sm:$0xff]
      %v377 = vld [vmem:[%s215 + $0x1c8] sm:$0xff]
      %v378 = vld [vmem:[%s215 + $0x1d0] sm:$0xff]
      %v379 = vld [vmem:[%s215 + $0x1d8] sm:$0xff]
      %v380 = vld [vmem:[%s215 + $0x1e0] sm:$0xff]
      %v381 = vld [vmem:[%s215 + $0x1e8] sm:$0xff]
      %v382 = vld [vmem:[%s215 + $0x1f0] sm:$0xff]
      %v383 = vld [vmem:[%s215 + $0x1f8] sm:$0xff]
      %v384 = vpack.c.bf16 %v321, %v320
      %v385 = vpack.c.bf16 %v323, %v322
      %v386 = vpack.c.bf16 %v325, %v324
      %v387 = vpack.c.bf16 %v327, %v326
      %v388 = vpack.c.bf16 %v329, %v328
      %v389 = vpack.c.bf16 %v331, %v330
      %v390 = vpack.c.bf16 %v333, %v332
      %v391 = vpack.c.bf16 %v335, %v334
      %v392 = vpack.c.bf16 %v337, %v336
      %v393 = vpack.c.bf16 %v339, %v338
      %v394 = vpack.c.bf16 %v341, %v340
      %v395 = vpack.c.bf16 %v343, %v342
      %v396 = vpack.c.bf16 %v345, %v344
      %v397 = vpack.c.bf16 %v347, %v346
      %v398 = vpack.c.bf16 %v349, %v348
      %v399 = vpack.c.bf16 %v351, %v350
      %v400 = vpack.c.bf16 %v353, %v352
      %v401 = vpack.c.bf16 %v355, %v354
      %v402 = vpack.c.bf16 %v357, %v356
      %v403 = vpack.c.bf16 %v359, %v358
      %v404 = vpack.c.bf16 %v361, %v360
      %v405 = vpack.c.bf16 %v363, %v362
      %v406 = vpack.c.bf16 %v365, %v364
      %v407 = vpack.c.bf16 %v367, %v366
      %v408 = vpack.c.bf16 %v369, %v368
      %v409 = vpack.c.bf16 %v371, %v370
      %v410 = vpack.c.bf16 %v373, %v372
      %v411 = vpack.c.bf16 %v375, %v374
      %v412 = vpack.c.bf16 %v377, %v376
      %v413 = vpack.c.bf16 %v379, %v378
      %v414 = vpack.c.bf16 %v381, %v380
      %v415 = vpack.c.bf16 %v383, %v382
      %v416 = vld [vmem:[%s2] sm:$0xf]
      %v417 = vld [vmem:[%s2 + $0x4] sm:$0xf]
      %v418 = vld [vmem:[%s2 + $0x8] sm:$0xf]
      %v419 = vld [vmem:[%s2 + $0xc] sm:$0xf]
      %v420 = vld [vmem:[%s2 + $0x10] sm:$0xf]
      %v421 = vld [vmem:[%s2 + $0x14] sm:$0xf]
      %v422 = vld [vmem:[%s2 + $0x18] sm:$0xf]
      %v423 = vld [vmem:[%s2 + $0x1c] sm:$0xf]
      %v424 = vld [vmem:[%s2 + $0x20] sm:$0xf]
      %v425 = vld [vmem:[%s2 + $0x24] sm:$0xf]
      %v426 = vld [vmem:[%s2 + $0x28] sm:$0xf]
      %v427 = vld [vmem:[%s2 + $0x2c] sm:$0xf]
      %v428 = vld [vmem:[%s3] sm:$0x1]
      %v429 = vperm.slane %v428, 0
      %v442 = vunpack.c.l.b16 %v416
      %v443 = vunpack.c.l.b16 %v417
      %v444 = vunpack.c.l.b16 %v418
      %v445 = vunpack.c.l.b16 %v419
      %v446 = vunpack.c.l.b16 %v420
      %v447 = vunpack.c.l.b16 %v421
      %v448 = vunpack.c.l.b16 %v422
      %v449 = vunpack.c.l.b16 %v423
      %v450 = vunpack.c.l.b16 %v424
      %v451 = vunpack.c.l.b16 %v425
      %v452 = vunpack.c.l.b16 %v426
      %v453 = vunpack.c.l.b16 %v427
      %v454 = vpack.c.b16 %v443, %v442
      %v455 = vpack.c.b16 %v445, %v444
      %v456 = vpack.c.b16 %v447, %v446
      %v457 = vpack.c.b16 %v449, %v448
      %v458 = vpack.c.b16 %v451, %v450
      %v459 = vpack.c.b16 %v453, %v452
      %vm466 = vcmask 785408
      %v468 = vsel %vm466, %v288, 0
      %v471 = vsel %vm466, %v289, 0
      %v474 = vsel %vm466, %v290, 0
      %v477 = vsel %vm466, %v291, 0
      %v480 = vsel %vm466, %v292, 0
      %v483 = vsel %vm466, %v293, 0
      %v486 = vsel %vm466, %v294, 0
      %v489 = vsel %vm466, %v295, 0
      %v492 = vsel %vm466, %v296, 0
      %v495 = vsel %vm466, %v297, 0
      %v498 = vsel %vm466, %v298, 0
      %v501 = vsel %vm466, %v299, 0
      %v504 = vsel %vm466, %v300, 0
      %v507 = vsel %vm466, %v301, 0
      %v510 = vsel %vm466, %v302, 0
      %v513 = vsel %vm466, %v303, 0
      %v516 = vsel %vm466, %v304, 0
      %v519 = vsel %vm466, %v305, 0
      %v522 = vsel %vm466, %v306, 0
      %v525 = vsel %vm466, %v307, 0
      %v528 = vsel %vm466, %v308, 0
      %v531 = vsel %vm466, %v309, 0
      %v534 = vsel %vm466, %v310, 0
      %v537 = vsel %vm466, %v311, 0
      %v540 = vsel %vm466, %v312, 0
      %v543 = vsel %vm466, %v313, 0
      %v546 = vsel %vm466, %v314, 0
      %v549 = vsel %vm466, %v315, 0
      %v552 = vsel %vm466, %v316, 0
      %v555 = vsel %vm466, %v317, 0
      %v558 = vsel %vm466, %v318, 0
      %v561 = vsel %vm466, %v319, 0
      %563 = vmatpush.bf16.msra.mxu0 0
      %564 = vmatpush.bf16.msra.mxu0 0
      %565 = vmatpush.bf16.msra.mxu0 %v459
      %566 = vmatpush.bf16.msra.mxu0 %v458
      %567 = vmatpush.bf16.msra.mxu0 %v457
      %568 = vmatpush.bf16.msra.mxu0 %v456
      %569 = vmatpush.bf16.msra.mxu0 %v455
      %570 = vmatpush.bf16.msra.mxu0 %v454
      %571 = vmatmul.bf16.gmra.mxu0 %v468
      %v572 = vpop.f32.mrf.mxu0
      %v573 = vadd.f32 %v429, %v572
      %v574 = vpop.f32.mrf.mxu0
      %v575 = vadd.f32 %v429, %v574
      %576 = vmatmul.bf16.gmra.mxu0 %v471
      %v577 = vpop.f32.mrf.mxu0
      %v578 = vadd.f32 %v429, %v577
      %v579 = vpop.f32.mrf.mxu0
      %v580 = vadd.f32 %v429, %v579
      %581 = vmatmul.bf16.gmra.mxu0 %v474
      %v582 = vpop.f32.mrf.mxu0
      %v583 = vadd.f32 %v429, %v582
      %v584 = vpop.f32.mrf.mxu0
      %v585 = vadd.f32 %v429, %v584
      %586 = vmatmul.bf16.gmra.mxu0 %v477
      %v587 = vpop.f32.mrf.mxu0
      %v588 = vadd.f32 %v429, %v587
      %v589 = vpop.f32.mrf.mxu0
      %v590 = vadd.f32 %v429, %v589
      %591 = vmatmul.bf16.gmra.mxu0 %v480
      %v592 = vpop.f32.mrf.mxu0
      %v593 = vadd.f32 %v429, %v592
      %v594 = vpop.f32.mrf.mxu0
      %v595 = vadd.f32 %v429, %v594
      %596 = vmatmul.bf16.gmra.mxu0 %v483
      %v597 = vpop.f32.mrf.mxu0
      %v598 = vadd.f32 %v429, %v597
      %v599 = vpop.f32.mrf.mxu0
      %v600 = vadd.f32 %v429, %v599
      %601 = vmatmul.bf16.gmra.mxu0 %v486
      %v602 = vpop.f32.mrf.mxu0
      %v603 = vadd.f32 %v429, %v602
      %v604 = vpop.f32.mrf.mxu0
      %v605 = vadd.f32 %v429, %v604
      %606 = vmatmul.bf16.gmra.mxu0 %v489
      %v607 = vpop.f32.mrf.mxu0
      %v608 = vadd.f32 %v429, %v607
      %v609 = vpop.f32.mrf.mxu0
      %v610 = vadd.f32 %v429, %v609
      %611 = vmatmul.bf16.gmra.mxu0 %v492
      %v612 = vpop.f32.mrf.mxu0
      %v613 = vadd.f32 %v429, %v612
      %v614 = vpop.f32.mrf.mxu0
      %v615 = vadd.f32 %v429, %v614
      %616 = vmatmul.bf16.gmra.mxu0 %v495
      %v617 = vpop.f32.mrf.mxu0
      %v618 = vadd.f32 %v429, %v617
      %v619 = vpop.f32.mrf.mxu0
      %v620 = vadd.f32 %v429, %v619
      %621 = vmatmul.bf16.gmra.mxu0 %v498
      %v622 = vpop.f32.mrf.mxu0
      %v623 = vadd.f32 %v429, %v622
      %v624 = vpop.f32.mrf.mxu0
      %v625 = vadd.f32 %v429, %v624
      %626 = vmatmul.bf16.gmra.mxu0 %v501
      %v627 = vpop.f32.mrf.mxu0
      %v628 = vadd.f32 %v429, %v627
      %v629 = vpop.f32.mrf.mxu0
      %v630 = vadd.f32 %v429, %v629
      %631 = vmatmul.bf16.gmra.mxu0 %v504
      %v632 = vpop.f32.mrf.mxu0
      %v633 = vadd.f32 %v429, %v632
      %v634 = vpop.f32.mrf.mxu0
      %v635 = vadd.f32 %v429, %v634
      %636 = vmatmul.bf16.gmra.mxu0 %v507
      %v637 = vpop.f32.mrf.mxu0
      %v638 = vadd.f32 %v429, %v637
      %v639 = vpop.f32.mrf.mxu0
      %v640 = vadd.f32 %v429, %v639
      %641 = vmatmul.bf16.gmra.mxu0 %v510
      %v642 = vpop.f32.mrf.mxu0
      %v643 = vadd.f32 %v429, %v642
      %v644 = vpop.f32.mrf.mxu0
      %v645 = vadd.f32 %v429, %v644
      %646 = vmatmul.bf16.gmra.mxu0 %v513
      %v647 = vpop.f32.mrf.mxu0
      %v648 = vadd.f32 %v429, %v647
      %v649 = vpop.f32.mrf.mxu0
      %v650 = vadd.f32 %v429, %v649
      %651 = vmatmul.bf16.gmra.mxu0 %v516
      %v652 = vpop.f32.mrf.mxu0
      %v653 = vadd.f32 %v429, %v652
      %v654 = vpop.f32.mrf.mxu0
      %v655 = vadd.f32 %v429, %v654
      %656 = vmatmul.bf16.gmra.mxu0 %v519
      %v657 = vpop.f32.mrf.mxu0
      %v658 = vadd.f32 %v429, %v657
      %v659 = vpop.f32.mrf.mxu0
      %v660 = vadd.f32 %v429, %v659
      %661 = vmatmul.bf16.gmra.mxu0 %v522
      %v662 = vpop.f32.mrf.mxu0
      %v663 = vadd.f32 %v429, %v662
      %v664 = vpop.f32.mrf.mxu0
      %v665 = vadd.f32 %v429, %v664
      %666 = vmatmul.bf16.gmra.mxu0 %v525
      %v667 = vpop.f32.mrf.mxu0
      %v668 = vadd.f32 %v429, %v667
      %v669 = vpop.f32.mrf.mxu0
      %v670 = vadd.f32 %v429, %v669
      %671 = vmatmul.bf16.gmra.mxu0 %v528
      %v672 = vpop.f32.mrf.mxu0
      %v673 = vadd.f32 %v429, %v672
      %v674 = vpop.f32.mrf.mxu0
      %v675 = vadd.f32 %v429, %v674
      %676 = vmatmul.bf16.gmra.mxu0 %v531
      %v677 = vpop.f32.mrf.mxu0
      %v678 = vadd.f32 %v429, %v677
      %v679 = vpop.f32.mrf.mxu0
      %v680 = vadd.f32 %v429, %v679
      %681 = vmatmul.bf16.gmra.mxu0 %v534
      %v682 = vpop.f32.mrf.mxu0
      %v683 = vadd.f32 %v429, %v682
      %v684 = vpop.f32.mrf.mxu0
      %v685 = vadd.f32 %v429, %v684
      %686 = vmatmul.bf16.gmra.mxu0 %v537
      %v687 = vpop.f32.mrf.mxu0
      %v688 = vadd.f32 %v429, %v687
      %v689 = vpop.f32.mrf.mxu0
      %v690 = vadd.f32 %v429, %v689
      %691 = vmatmul.bf16.gmra.mxu0 %v540
      %v692 = vpop.f32.mrf.mxu0
      %v693 = vadd.f32 %v429, %v692
      %v694 = vpop.f32.mrf.mxu0
      %v695 = vadd.f32 %v429, %v694
      %696 = vmatmul.bf16.gmra.mxu0 %v543
      %v697 = vpop.f32.mrf.mxu0
      %v698 = vadd.f32 %v429, %v697
      %v699 = vpop.f32.mrf.mxu0
      %v700 = vadd.f32 %v429, %v699
      %701 = vmatmul.bf16.gmra.mxu0 %v546
      %v702 = vpop.f32.mrf.mxu0
      %v703 = vadd.f32 %v429, %v702
      %v704 = vpop.f32.mrf.mxu0
      %v705 = vadd.f32 %v429, %v704
      %706 = vmatmul.bf16.gmra.mxu0 %v549
      %v707 = vpop.f32.mrf.mxu0
      %v708 = vadd.f32 %v429, %v707
      %v709 = vpop.f32.mrf.mxu0
      %v710 = vadd.f32 %v429, %v709
      %711 = vmatmul.bf16.gmra.mxu0 %v552
      %v712 = vpop.f32.mrf.mxu0
      %v713 = vadd.f32 %v429, %v712
      %v714 = vpop.f32.mrf.mxu0
      %v715 = vadd.f32 %v429, %v714
      %716 = vmatmul.bf16.gmra.mxu0 %v555
      %v717 = vpop.f32.mrf.mxu0
      %v718 = vadd.f32 %v429, %v717
      %v719 = vpop.f32.mrf.mxu0
      %v720 = vadd.f32 %v429, %v719
      %721 = vmatmul.bf16.gmra.mxu0 %v558
      %v722 = vpop.f32.mrf.mxu0
      %v723 = vadd.f32 %v429, %v722
      %v724 = vpop.f32.mrf.mxu0
      %v725 = vadd.f32 %v429, %v724
      %726 = vmatmul.bf16.gmra.mxu0 %v561
      %v727 = vpop.f32.mrf.mxu0
      %v728 = vadd.f32 %v429, %v727
      %v729 = vpop.f32.mrf.mxu0
      %v730 = vadd.f32 %v429, %v729
      %731 = vdwg.mxu0
      %v732 = vmax.f32 %v573, 0.0
      %v733 = vmax.f32 %v575, 0.0
      %v734 = vmax.f32 %v578, 0.0
      %v735 = vmax.f32 %v580, 0.0
      %v736 = vmax.f32 %v583, 0.0
      %v737 = vmax.f32 %v585, 0.0
      %v738 = vmax.f32 %v588, 0.0
      %v739 = vmax.f32 %v590, 0.0
      %v740 = vmax.f32 %v593, 0.0
      %v741 = vmax.f32 %v595, 0.0
      %v742 = vmax.f32 %v598, 0.0
      %v743 = vmax.f32 %v600, 0.0
      %v744 = vmax.f32 %v603, 0.0
      %v745 = vmax.f32 %v605, 0.0
      %v746 = vmax.f32 %v608, 0.0
      %v747 = vmax.f32 %v610, 0.0
      %v748 = vmax.f32 %v613, 0.0
      %v749 = vmax.f32 %v615, 0.0
      %v750 = vmax.f32 %v618, 0.0
      %v751 = vmax.f32 %v620, 0.0
      %v752 = vmax.f32 %v623, 0.0
      %v753 = vmax.f32 %v625, 0.0
      %v754 = vmax.f32 %v628, 0.0
      %v755 = vmax.f32 %v630, 0.0
      %v756 = vmax.f32 %v633, 0.0
      %v757 = vmax.f32 %v635, 0.0
      %v758 = vmax.f32 %v638, 0.0
      %v759 = vmax.f32 %v640, 0.0
      %v760 = vmax.f32 %v643, 0.0
      %v761 = vmax.f32 %v645, 0.0
      %v762 = vmax.f32 %v648, 0.0
      %v763 = vmax.f32 %v650, 0.0
      %v764 = vmax.f32 %v653, 0.0
      %v765 = vmax.f32 %v655, 0.0
      %v766 = vmax.f32 %v658, 0.0
      %v767 = vmax.f32 %v660, 0.0
      %v768 = vmax.f32 %v663, 0.0
      %v769 = vmax.f32 %v665, 0.0
      %v770 = vmax.f32 %v668, 0.0
      %v771 = vmax.f32 %v670, 0.0
      %v772 = vmax.f32 %v673, 0.0
      %v773 = vmax.f32 %v675, 0.0
      %v774 = vmax.f32 %v678, 0.0
      %v775 = vmax.f32 %v680, 0.0
      %v776 = vmax.f32 %v683, 0.0
      %v777 = vmax.f32 %v685, 0.0
      %v778 = vmax.f32 %v688, 0.0
      %v779 = vmax.f32 %v690, 0.0
      %v780 = vmax.f32 %v693, 0.0
      %v781 = vmax.f32 %v695, 0.0
      %v782 = vmax.f32 %v698, 0.0
      %v783 = vmax.f32 %v700, 0.0
      %v784 = vmax.f32 %v703, 0.0
      %v785 = vmax.f32 %v705, 0.0
      %v786 = vmax.f32 %v708, 0.0
      %v787 = vmax.f32 %v710, 0.0
      %v788 = vmax.f32 %v713, 0.0
      %v789 = vmax.f32 %v715, 0.0
      %v790 = vmax.f32 %v718, 0.0
      %v791 = vmax.f32 %v720, 0.0
      %v792 = vmax.f32 %v723, 0.0
      %v793 = vmax.f32 %v725, 0.0
      %v794 = vmax.f32 %v728, 0.0
      %v795 = vmax.f32 %v730, 0.0
      %v796 = vpack.c.bf16 %v733, %v732
      %v797 = vpack.c.bf16 %v735, %v734
      %v798 = vpack.c.bf16 %v737, %v736
      %v799 = vpack.c.bf16 %v739, %v738
      %v800 = vpack.c.bf16 %v741, %v740
      %v801 = vpack.c.bf16 %v743, %v742
      %v802 = vpack.c.bf16 %v745, %v744
      %v803 = vpack.c.bf16 %v747, %v746
      %v804 = vpack.c.bf16 %v749, %v748
      %v805 = vpack.c.bf16 %v751, %v750
      %v806 = vpack.c.bf16 %v753, %v752
      %v807 = vpack.c.bf16 %v755, %v754
      %v808 = vpack.c.bf16 %v757, %v756
      %v809 = vpack.c.bf16 %v759, %v758
      %v810 = vpack.c.bf16 %v761, %v760
      %v811 = vpack.c.bf16 %v763, %v762
      %v812 = vpack.c.bf16 %v765, %v764
      %v813 = vpack.c.bf16 %v767, %v766
      %v814 = vpack.c.bf16 %v769, %v768
      %v815 = vpack.c.bf16 %v771, %v770
      %v816 = vpack.c.bf16 %v773, %v772
      %v817 = vpack.c.bf16 %v775, %v774
      %v818 = vpack.c.bf16 %v777, %v776
      %v819 = vpack.c.bf16 %v779, %v778
      %v820 = vpack.c.bf16 %v781, %v780
      %v821 = vpack.c.bf16 %v783, %v782
      %v822 = vpack.c.bf16 %v785, %v784
      %v823 = vpack.c.bf16 %v787, %v786
      %v824 = vpack.c.bf16 %v789, %v788
      %v825 = vpack.c.bf16 %v791, %v790
      %v826 = vpack.c.bf16 %v793, %v792
      %v827 = vpack.c.bf16 %v795, %v794
      %v828 = vld [vmem:[%s2 + $0x30] sm:$0xf]
      %v829 = vld [vmem:[%s2 + $0x34] sm:$0xf]
      %v830 = vld [vmem:[%s2 + $0x38] sm:$0xf]
      %v831 = vld [vmem:[%s2 + $0x3c] sm:$0xf]
      %v832 = vld [vmem:[%s2 + $0x40] sm:$0xf]
      %v833 = vld [vmem:[%s2 + $0x44] sm:$0xf]
      %v834 = vld [vmem:[%s2 + $0x48] sm:$0xf]
      %v835 = vld [vmem:[%s2 + $0x4c] sm:$0xf]
      %v836 = vld [vmem:[%s2 + $0x50] sm:$0xf]
      %v837 = vld [vmem:[%s2 + $0x54] sm:$0xf]
      %v838 = vld [vmem:[%s2 + $0x58] sm:$0xf]
      %v839 = vld [vmem:[%s2 + $0x5c] sm:$0xf]
      %v840 = vld [vmem:[%s2 + $0x60] sm:$0xf]
      %v841 = vld [vmem:[%s2 + $0x64] sm:$0xf]
      %v842 = vld [vmem:[%s2 + $0x68] sm:$0xf]
      %v843 = vld [vmem:[%s2 + $0x6c] sm:$0xf]
      %v844 = vld [vmem:[%s3 + $0x1] sm:$0x1]
      %v845 = vperm.slane %v844, 0
      %v862 = vunpack.c.l.b16 %v828
      %v863 = vunpack.c.l.b16 %v829
      %v864 = vunpack.c.l.b16 %v830
      %v865 = vunpack.c.l.b16 %v831
      %v866 = vunpack.c.l.b16 %v832
      %v867 = vunpack.c.l.b16 %v833
      %v868 = vunpack.c.l.b16 %v834
      %v869 = vunpack.c.l.b16 %v835
      %v870 = vunpack.c.l.b16 %v836
      %v871 = vunpack.c.l.b16 %v837
      %v872 = vunpack.c.l.b16 %v838
      %v873 = vunpack.c.l.b16 %v839
      %v874 = vunpack.c.l.b16 %v840
      %v875 = vunpack.c.l.b16 %v841
      %v876 = vunpack.c.l.b16 %v842
      %v877 = vunpack.c.l.b16 %v843
      %v878 = vpack.c.b16 %v863, %v862
      %v879 = vpack.c.b16 %v865, %v864
      %v880 = vpack.c.b16 %v867, %v866
      %v881 = vpack.c.b16 %v869, %v868
      %v882 = vpack.c.b16 %v871, %v870
      %v883 = vpack.c.b16 %v873, %v872
      %v884 = vpack.c.b16 %v875, %v874
      %v885 = vpack.c.b16 %v877, %v876
      %894 = vmatpush.bf16.msra.mxu0 %v885
      %895 = vmatpush.bf16.msra.mxu0 %v884
      %896 = vmatpush.bf16.msra.mxu0 %v883
      %897 = vmatpush.bf16.msra.mxu0 %v882
      %898 = vmatpush.bf16.msra.mxu0 %v881
      %899 = vmatpush.bf16.msra.mxu0 %v880
      %900 = vmatpush.bf16.msra.mxu0 %v879
      %901 = vmatpush.bf16.msra.mxu0 %v878
      %902 = vmatmul.bf16.gmra.mxu0 %v796
      %v903 = vpop.f32.mrf.mxu0
      %v904 = vadd.f32 %v845, %v903
      %v905 = vpop.f32.mrf.mxu0
      %v906 = vadd.f32 %v845, %v905
      %907 = vmatmul.bf16.gmra.mxu0 %v797
      %v908 = vpop.f32.mrf.mxu0
      %v909 = vadd.f32 %v845, %v908
      %v910 = vpop.f32.mrf.mxu0
      %v911 = vadd.f32 %v845, %v910
      %912 = vmatmul.bf16.gmra.mxu0 %v798
      %v913 = vpop.f32.mrf.mxu0
      %v914 = vadd.f32 %v845, %v913
      %v915 = vpop.f32.mrf.mxu0
      %v916 = vadd.f32 %v845, %v915
      %917 = vmatmul.bf16.gmra.mxu0 %v799
      %v918 = vpop.f32.mrf.mxu0
      %v919 = vadd.f32 %v845, %v918
      %v920 = vpop.f32.mrf.mxu0
      %v921 = vadd.f32 %v845, %v920
      %922 = vmatmul.bf16.gmra.mxu0 %v800
      %v923 = vpop.f32.mrf.mxu0
      %v924 = vadd.f32 %v845, %v923
      %v925 = vpop.f32.mrf.mxu0
      %v926 = vadd.f32 %v845, %v925
      %927 = vmatmul.bf16.gmra.mxu0 %v801
      %v928 = vpop.f32.mrf.mxu0
      %v929 = vadd.f32 %v845, %v928
      %v930 = vpop.f32.mrf.mxu0
      %v931 = vadd.f32 %v845, %v930
      %932 = vmatmul.bf16.gmra.mxu0 %v802
      %v933 = vpop.f32.mrf.mxu0
      %v934 = vadd.f32 %v845, %v933
      %v935 = vpop.f32.mrf.mxu0
      %v936 = vadd.f32 %v845, %v935
      %937 = vmatmul.bf16.gmra.mxu0 %v803
      %v938 = vpop.f32.mrf.mxu0
      %v939 = vadd.f32 %v845, %v938
      %v940 = vpop.f32.mrf.mxu0
      %v941 = vadd.f32 %v845, %v940
      %942 = vmatmul.bf16.gmra.mxu0 %v804
      %v943 = vpop.f32.mrf.mxu0
      %v944 = vadd.f32 %v845, %v943
      %v945 = vpop.f32.mrf.mxu0
      %v946 = vadd.f32 %v845, %v945
      %947 = vmatmul.bf16.gmra.mxu0 %v805
      %v948 = vpop.f32.mrf.mxu0
      %v949 = vadd.f32 %v845, %v948
      %v950 = vpop.f32.mrf.mxu0
      %v951 = vadd.f32 %v845, %v950
      %952 = vmatmul.bf16.gmra.mxu0 %v806
      %v953 = vpop.f32.mrf.mxu0
      %v954 = vadd.f32 %v845, %v953
      %v955 = vpop.f32.mrf.mxu0
      %v956 = vadd.f32 %v845, %v955
      %957 = vmatmul.bf16.gmra.mxu0 %v807
      %v958 = vpop.f32.mrf.mxu0
      %v959 = vadd.f32 %v845, %v958
      %v960 = vpop.f32.mrf.mxu0
      %v961 = vadd.f32 %v845, %v960
      %962 = vmatmul.bf16.gmra.mxu0 %v808
      %v963 = vpop.f32.mrf.mxu0
      %v964 = vadd.f32 %v845, %v963
      %v965 = vpop.f32.mrf.mxu0
      %v966 = vadd.f32 %v845, %v965
      %967 = vmatmul.bf16.gmra.mxu0 %v809
      %v968 = vpop.f32.mrf.mxu0
      %v969 = vadd.f32 %v845, %v968
      %v970 = vpop.f32.mrf.mxu0
      %v971 = vadd.f32 %v845, %v970
      %972 = vmatmul.bf16.gmra.mxu0 %v810
      %v973 = vpop.f32.mrf.mxu0
      %v974 = vadd.f32 %v845, %v973
      %v975 = vpop.f32.mrf.mxu0
      %v976 = vadd.f32 %v845, %v975
      %977 = vmatmul.bf16.gmra.mxu0 %v811
      %v978 = vpop.f32.mrf.mxu0
      %v979 = vadd.f32 %v845, %v978
      %v980 = vpop.f32.mrf.mxu0
      %v981 = vadd.f32 %v845, %v980
      %982 = vmatmul.bf16.gmra.mxu0 %v812
      %v983 = vpop.f32.mrf.mxu0
      %v984 = vadd.f32 %v845, %v983
      %v985 = vpop.f32.mrf.mxu0
      %v986 = vadd.f32 %v845, %v985
      %987 = vmatmul.bf16.gmra.mxu0 %v813
      %v988 = vpop.f32.mrf.mxu0
      %v989 = vadd.f32 %v845, %v988
      %v990 = vpop.f32.mrf.mxu0
      %v991 = vadd.f32 %v845, %v990
      %992 = vmatmul.bf16.gmra.mxu0 %v814
      %v993 = vpop.f32.mrf.mxu0
      %v994 = vadd.f32 %v845, %v993
      %v995 = vpop.f32.mrf.mxu0
      %v996 = vadd.f32 %v845, %v995
      %997 = vmatmul.bf16.gmra.mxu0 %v815
      %v998 = vpop.f32.mrf.mxu0
      %v999 = vadd.f32 %v845, %v998
      %v1000 = vpop.f32.mrf.mxu0
      %v1001 = vadd.f32 %v845, %v1000
      %1002 = vmatmul.bf16.gmra.mxu0 %v816
      %v1003 = vpop.f32.mrf.mxu0
      %v1004 = vadd.f32 %v845, %v1003
      %v1005 = vpop.f32.mrf.mxu0
      %v1006 = vadd.f32 %v845, %v1005
      %1007 = vmatmul.bf16.gmra.mxu0 %v817
      %v1008 = vpop.f32.mrf.mxu0
      %v1009 = vadd.f32 %v845, %v1008
      %v1010 = vpop.f32.mrf.mxu0
      %v1011 = vadd.f32 %v845, %v1010
      %1012 = vmatmul.bf16.gmra.mxu0 %v818
      %v1013 = vpop.f32.mrf.mxu0
      %v1014 = vadd.f32 %v845, %v1013
      %v1015 = vpop.f32.mrf.mxu0
      %v1016 = vadd.f32 %v845, %v1015
      %1017 = vmatmul.bf16.gmra.mxu0 %v819
      %v1018 = vpop.f32.mrf.mxu0
      %v1019 = vadd.f32 %v845, %v1018
      %v1020 = vpop.f32.mrf.mxu0
      %v1021 = vadd.f32 %v845, %v1020
      %1022 = vmatmul.bf16.gmra.mxu0 %v820
      %v1023 = vpop.f32.mrf.mxu0
      %v1024 = vadd.f32 %v845, %v1023
      %v1025 = vpop.f32.mrf.mxu0
      %v1026 = vadd.f32 %v845, %v1025
      %1027 = vmatmul.bf16.gmra.mxu0 %v821
      %v1028 = vpop.f32.mrf.mxu0
      %v1029 = vadd.f32 %v845, %v1028
      %v1030 = vpop.f32.mrf.mxu0
      %v1031 = vadd.f32 %v845, %v1030
      %1032 = vmatmul.bf16.gmra.mxu0 %v822
      %v1033 = vpop.f32.mrf.mxu0
      %v1034 = vadd.f32 %v845, %v1033
      %v1035 = vpop.f32.mrf.mxu0
      %v1036 = vadd.f32 %v845, %v1035
      %1037 = vmatmul.bf16.gmra.mxu0 %v823
      %v1038 = vpop.f32.mrf.mxu0
      %v1039 = vadd.f32 %v845, %v1038
      %v1040 = vpop.f32.mrf.mxu0
      %v1041 = vadd.f32 %v845, %v1040
      %1042 = vmatmul.bf16.gmra.mxu0 %v824
      %v1043 = vpop.f32.mrf.mxu0
      %v1044 = vadd.f32 %v845, %v1043
      %v1045 = vpop.f32.mrf.mxu0
      %v1046 = vadd.f32 %v845, %v1045
      %1047 = vmatmul.bf16.gmra.mxu0 %v825
      %v1048 = vpop.f32.mrf.mxu0
      %v1049 = vadd.f32 %v845, %v1048
      %v1050 = vpop.f32.mrf.mxu0
      %v1051 = vadd.f32 %v845, %v1050
      %1052 = vmatmul.bf16.gmra.mxu0 %v826
      %v1053 = vpop.f32.mrf.mxu0
      %v1054 = vadd.f32 %v845, %v1053
      %v1055 = vpop.f32.mrf.mxu0
      %v1056 = vadd.f32 %v845, %v1055
      %1057 = vmatmul.bf16.gmra.mxu0 %v827
      %v1058 = vpop.f32.mrf.mxu0
      %v1059 = vadd.f32 %v845, %v1058
      %v1060 = vpop.f32.mrf.mxu0
      %v1061 = vadd.f32 %v845, %v1060
      %1062 = vdwg.mxu0
      %v1063 = vmax.f32 %v904, 0.0
      %v1064 = vmax.f32 %v906, 0.0
      %v1065 = vmax.f32 %v909, 0.0
      %v1066 = vmax.f32 %v911, 0.0
      %v1067 = vmax.f32 %v914, 0.0
      %v1068 = vmax.f32 %v916, 0.0
      %v1069 = vmax.f32 %v919, 0.0
      %v1070 = vmax.f32 %v921, 0.0
      %v1071 = vmax.f32 %v924, 0.0
      %v1072 = vmax.f32 %v926, 0.0
      %v1073 = vmax.f32 %v929, 0.0
      %v1074 = vmax.f32 %v931, 0.0
      %v1075 = vmax.f32 %v934, 0.0
      %v1076 = vmax.f32 %v936, 0.0
      %v1077 = vmax.f32 %v939, 0.0
      %v1078 = vmax.f32 %v941, 0.0
      %v1079 = vmax.f32 %v944, 0.0
      %v1080 = vmax.f32 %v946, 0.0
      %v1081 = vmax.f32 %v949, 0.0
      %v1082 = vmax.f32 %v951, 0.0
      %v1083 = vmax.f32 %v954, 0.0
      %v1084 = vmax.f32 %v956, 0.0
      %v1085 = vmax.f32 %v959, 0.0
      %v1086 = vmax.f32 %v961, 0.0
      %v1087 = vmax.f32 %v964, 0.0
      %v1088 = vmax.f32 %v966, 0.0
      %v1089 = vmax.f32 %v969, 0.0
      %v1090 = vmax.f32 %v971, 0.0
      %v1091 = vmax.f32 %v974, 0.0
      %v1092 = vmax.f32 %v976, 0.0
      %v1093 = vmax.f32 %v979, 0.0
      %v1094 = vmax.f32 %v981, 0.0
      %v1095 = vmax.f32 %v984, 0.0
      %v1096 = vmax.f32 %v986, 0.0
      %v1097 = vmax.f32 %v989, 0.0
      %v1098 = vmax.f32 %v991, 0.0
      %v1099 = vmax.f32 %v994, 0.0
      %v1100 = vmax.f32 %v996, 0.0
      %v1101 = vmax.f32 %v999, 0.0
      %v1102 = vmax.f32 %v1001, 0.0
      %v1103 = vmax.f32 %v1004, 0.0
      %v1104 = vmax.f32 %v1006, 0.0
      %v1105 = vmax.f32 %v1009, 0.0
      %v1106 = vmax.f32 %v1011, 0.0
      %v1107 = vmax.f32 %v1014, 0.0
      %v1108 = vmax.f32 %v1016, 0.0
      %v1109 = vmax.f32 %v1019, 0.0
      %v1110 = vmax.f32 %v1021, 0.0
      %v1111 = vmax.f32 %v1024, 0.0
      %v1112 = vmax.f32 %v1026, 0.0
      %v1113 = vmax.f32 %v1029, 0.0
      %v1114 = vmax.f32 %v1031, 0.0
      %v1115 = vmax.f32 %v1034, 0.0
      %v1116 = vmax.f32 %v1036, 0.0
      %v1117 = vmax.f32 %v1039, 0.0
      %v1118 = vmax.f32 %v1041, 0.0
      %v1119 = vmax.f32 %v1044, 0.0
      %v1120 = vmax.f32 %v1046, 0.0
      %v1121 = vmax.f32 %v1049, 0.0
      %v1122 = vmax.f32 %v1051, 0.0
      %v1123 = vmax.f32 %v1054, 0.0
      %v1124 = vmax.f32 %v1056, 0.0
      %v1125 = vmax.f32 %v1059, 0.0
      %v1126 = vmax.f32 %v1061, 0.0
      %v1127 = vpack.c.bf16 %v1064, %v1063
      %v1128 = vpack.c.bf16 %v1066, %v1065
      %v1129 = vpack.c.bf16 %v1068, %v1067
      %v1130 = vpack.c.bf16 %v1070, %v1069
      %v1131 = vpack.c.bf16 %v1072, %v1071
      %v1132 = vpack.c.bf16 %v1074, %v1073
      %v1133 = vpack.c.bf16 %v1076, %v1075
      %v1134 = vpack.c.bf16 %v1078, %v1077
      %v1135 = vpack.c.bf16 %v1080, %v1079
      %v1136 = vpack.c.bf16 %v1082, %v1081
      %v1137 = vpack.c.bf16 %v1084, %v1083
      %v1138 = vpack.c.bf16 %v1086, %v1085
      %v1139 = vpack.c.bf16 %v1088, %v1087
      %v1140 = vpack.c.bf16 %v1090, %v1089
      %v1141 = vpack.c.bf16 %v1092, %v1091
      %v1142 = vpack.c.bf16 %v1094, %v1093
      %v1143 = vpack.c.bf16 %v1096, %v1095
      %v1144 = vpack.c.bf16 %v1098, %v1097
      %v1145 = vpack.c.bf16 %v1100, %v1099
      %v1146 = vpack.c.bf16 %v1102, %v1101
      %v1147 = vpack.c.bf16 %v1104, %v1103
      %v1148 = vpack.c.bf16 %v1106, %v1105
      %v1149 = vpack.c.bf16 %v1108, %v1107
      %v1150 = vpack.c.bf16 %v1110, %v1109
      %v1151 = vpack.c.bf16 %v1112, %v1111
      %v1152 = vpack.c.bf16 %v1114, %v1113
      %v1153 = vpack.c.bf16 %v1116, %v1115
      %v1154 = vpack.c.bf16 %v1118, %v1117
      %v1155 = vpack.c.bf16 %v1120, %v1119
      %v1156 = vpack.c.bf16 %v1122, %v1121
      %v1157 = vpack.c.bf16 %v1124, %v1123
      %v1158 = vpack.c.bf16 %v1126, %v1125
      %v1159 = vld [vmem:[%s2 + $0x70] sm:$0xf]
      %v1160 = vld [vmem:[%s2 + $0x74] sm:$0xf]
      %v1161 = vld [vmem:[%s2 + $0x78] sm:$0xf]
      %v1162 = vld [vmem:[%s2 + $0x7c] sm:$0xf]
      %v1163 = vld [vmem:[%s2 + $0x80] sm:$0xf]
      %v1164 = vld [vmem:[%s2 + $0x84] sm:$0xf]
      %v1165 = vld [vmem:[%s2 + $0x88] sm:$0xf]
      %v1166 = vld [vmem:[%s2 + $0x8c] sm:$0xf]
      %v1167 = vld [vmem:[%s2 + $0x90] sm:$0xf]
      %v1168 = vld [vmem:[%s2 + $0x94] sm:$0xf]
      %v1169 = vld [vmem:[%s2 + $0x98] sm:$0xf]
      %v1170 = vld [vmem:[%s2 + $0x9c] sm:$0xf]
      %v1171 = vld [vmem:[%s2 + $0xa0] sm:$0xf]
      %v1172 = vld [vmem:[%s2 + $0xa4] sm:$0xf]
      %v1173 = vld [vmem:[%s2 + $0xa8] sm:$0xf]
      %v1174 = vld [vmem:[%s2 + $0xac] sm:$0xf]
      %v1175 = vld [vmem:[%s2 + $0xb0] sm:$0xf]
      %v1176 = vld [vmem:[%s2 + $0xb4] sm:$0xf]
      %v1177 = vld [vmem:[%s2 + $0xb8] sm:$0xf]
      %v1178 = vld [vmem:[%s2 + $0xbc] sm:$0xf]
      %v1179 = vld [vmem:[%s2 + $0xc0] sm:$0xf]
      %v1180 = vld [vmem:[%s2 + $0xc4] sm:$0xf]
      %v1181 = vld [vmem:[%s2 + $0xc8] sm:$0xf]
      %v1182 = vld [vmem:[%s2 + $0xcc] sm:$0xf]
      %v1183 = vld [vmem:[%s2 + $0xd0] sm:$0xf]
      %v1184 = vld [vmem:[%s2 + $0xd4] sm:$0xf]
      %v1185 = vld [vmem:[%s2 + $0xd8] sm:$0xf]
      %v1186 = vld [vmem:[%s2 + $0xdc] sm:$0xf]
      %v1203 = vunpack.c.l.b16 %v1171
      %v1204 = vunpack.c.l.b16 %v1172
      %v1205 = vunpack.c.l.b16 %v1173
      %v1206 = vunpack.c.l.b16 %v1174
      %v1207 = vunpack.c.l.b16 %v1175
      %v1208 = vunpack.c.l.b16 %v1176
      %v1209 = vunpack.c.l.b16 %v1177
      %v1210 = vunpack.c.l.b16 %v1178
      %v1211 = vunpack.c.l.b16 %v1179
      %v1212 = vunpack.c.l.b16 %v1180
      %v1213 = vunpack.c.l.b16 %v1181
      %v1214 = vunpack.c.l.b16 %v1182
      %v1215 = vunpack.c.l.b16 %v1183
      %v1216 = vunpack.c.l.b16 %v1184
      %v1217 = vunpack.c.l.b16 %v1185
      %v1218 = vunpack.c.l.b16 %v1186
      %v1219 = vpack.c.b16 %v1204, %v1203
      %v1220 = vpack.c.b16 %v1206, %v1205
      %v1221 = vpack.c.b16 %v1208, %v1207
      %v1222 = vpack.c.b16 %v1210, %v1209
      %v1223 = vpack.c.b16 %v1212, %v1211
      %v1224 = vpack.c.b16 %v1214, %v1213
      %v1225 = vpack.c.b16 %v1216, %v1215
      %v1226 = vpack.c.b16 %v1218, %v1217
      %1235 = vmatpush.bf16.msra.mxu0 %v1226
      %1236 = vmatpush.bf16.msra.mxu0 %v1225
      %1237 = vmatpush.bf16.msra.mxu0 %v1224
      %1238 = vmatpush.bf16.msra.mxu0 %v1223
      %1239 = vmatpush.bf16.msra.mxu0 %v1222
      %1240 = vmatpush.bf16.msra.mxu0 %v1221
      %1241 = vmatpush.bf16.msra.mxu0 %v1220
      %1242 = vmatpush.bf16.msra.mxu0 %v1219
      %1243 = vmatmul.bf16.gmra.mxu0 %v1127
      %v1244 = vpop.f32.mrf.mxu0
      %v1245 = vadd.f32 0.0, %v1244
      %v1246 = vpop.f32.mrf.mxu0
      %v1247 = vadd.f32 0.0, %v1246
      %1248 = vmatmul.bf16.gmra.mxu0 %v1128
      %v1249 = vpop.f32.mrf.mxu0
      %v1250 = vadd.f32 0.0, %v1249
      %v1251 = vpop.f32.mrf.mxu0
      %v1252 = vadd.f32 0.0, %v1251
      %1253 = vmatmul.bf16.gmra.mxu0 %v1129
      %v1254 = vpop.f32.mrf.mxu0
      %v1255 = vadd.f32 0.0, %v1254
      %v1256 = vpop.f32.mrf.mxu0
      %v1257 = vadd.f32 0.0, %v1256
      %1258 = vmatmul.bf16.gmra.mxu0 %v1130
      %v1259 = vpop.f32.mrf.mxu0
      %v1260 = vadd.f32 0.0, %v1259
      %v1261 = vpop.f32.mrf.mxu0
      %v1262 = vadd.f32 0.0, %v1261
      %1263 = vmatmul.bf16.gmra.mxu0 %v1131
      %v1264 = vpop.f32.mrf.mxu0
      %v1265 = vadd.f32 0.0, %v1264
      %v1266 = vpop.f32.mrf.mxu0
      %v1267 = vadd.f32 0.0, %v1266
      %1268 = vmatmul.bf16.gmra.mxu0 %v1132
      %v1269 = vpop.f32.mrf.mxu0
      %v1270 = vadd.f32 0.0, %v1269
      %v1271 = vpop.f32.mrf.mxu0
      %v1272 = vadd.f32 0.0, %v1271
      %1273 = vmatmul.bf16.gmra.mxu0 %v1133
      %v1274 = vpop.f32.mrf.mxu0
      %v1275 = vadd.f32 0.0, %v1274
      %v1276 = vpop.f32.mrf.mxu0
      %v1277 = vadd.f32 0.0, %v1276
      %1278 = vmatmul.bf16.gmra.mxu0 %v1134
      %v1279 = vpop.f32.mrf.mxu0
      %v1280 = vadd.f32 0.0, %v1279
      %v1281 = vpop.f32.mrf.mxu0
      %v1282 = vadd.f32 0.0, %v1281
      %1283 = vmatmul.bf16.gmra.mxu0 %v1135
      %v1284 = vpop.f32.mrf.mxu0
      %v1285 = vadd.f32 0.0, %v1284
      %v1286 = vpop.f32.mrf.mxu0
      %v1287 = vadd.f32 0.0, %v1286
      %1288 = vmatmul.bf16.gmra.mxu0 %v1136
      %v1289 = vpop.f32.mrf.mxu0
      %v1290 = vadd.f32 0.0, %v1289
      %v1291 = vpop.f32.mrf.mxu0
      %v1292 = vadd.f32 0.0, %v1291
      %1293 = vmatmul.bf16.gmra.mxu0 %v1137
      %v1294 = vpop.f32.mrf.mxu0
      %v1295 = vadd.f32 0.0, %v1294
      %v1296 = vpop.f32.mrf.mxu0
      %v1297 = vadd.f32 0.0, %v1296
      %1298 = vmatmul.bf16.gmra.mxu0 %v1138
      %v1299 = vpop.f32.mrf.mxu0
      %v1300 = vadd.f32 0.0, %v1299
      %v1301 = vpop.f32.mrf.mxu0
      %v1302 = vadd.f32 0.0, %v1301
      %1303 = vmatmul.bf16.gmra.mxu0 %v1139
      %v1304 = vpop.f32.mrf.mxu0
      %v1305 = vadd.f32 0.0, %v1304
      %v1306 = vpop.f32.mrf.mxu0
      %v1307 = vadd.f32 0.0, %v1306
      %1308 = vmatmul.bf16.gmra.mxu0 %v1140
      %v1309 = vpop.f32.mrf.mxu0
      %v1310 = vadd.f32 0.0, %v1309
      %v1311 = vpop.f32.mrf.mxu0
      %v1312 = vadd.f32 0.0, %v1311
      %1313 = vmatmul.bf16.gmra.mxu0 %v1141
      %v1314 = vpop.f32.mrf.mxu0
      %v1315 = vadd.f32 0.0, %v1314
      %v1316 = vpop.f32.mrf.mxu0
      %v1317 = vadd.f32 0.0, %v1316
      %1318 = vmatmul.bf16.gmra.mxu0 %v1142
      %v1319 = vpop.f32.mrf.mxu0
      %v1320 = vadd.f32 0.0, %v1319
      %v1321 = vpop.f32.mrf.mxu0
      %v1322 = vadd.f32 0.0, %v1321
      %1323 = vmatmul.bf16.gmra.mxu0 %v1143
      %v1324 = vpop.f32.mrf.mxu0
      %v1325 = vadd.f32 0.0, %v1324
      %v1326 = vpop.f32.mrf.mxu0
      %v1327 = vadd.f32 0.0, %v1326
      %1328 = vmatmul.bf16.gmra.mxu0 %v1144
      %v1329 = vpop.f32.mrf.mxu0
      %v1330 = vadd.f32 0.0, %v1329
      %v1331 = vpop.f32.mrf.mxu0
      %v1332 = vadd.f32 0.0, %v1331
      %1333 = vmatmul.bf16.gmra.mxu0 %v1145
      %v1334 = vpop.f32.mrf.mxu0
      %v1335 = vadd.f32 0.0, %v1334
      %v1336 = vpop.f32.mrf.mxu0
      %v1337 = vadd.f32 0.0, %v1336
      %1338 = vmatmul.bf16.gmra.mxu0 %v1146
      %v1339 = vpop.f32.mrf.mxu0
      %v1340 = vadd.f32 0.0, %v1339
      %v1341 = vpop.f32.mrf.mxu0
      %v1342 = vadd.f32 0.0, %v1341
      %1343 = vmatmul.bf16.gmra.mxu0 %v1147
      %v1344 = vpop.f32.mrf.mxu0
      %v1345 = vadd.f32 0.0, %v1344
      %v1346 = vpop.f32.mrf.mxu0
      %v1347 = vadd.f32 0.0, %v1346
      %1348 = vmatmul.bf16.gmra.mxu0 %v1148
      %v1349 = vpop.f32.mrf.mxu0
      %v1350 = vadd.f32 0.0, %v1349
      %v1351 = vpop.f32.mrf.mxu0
      %v1352 = vadd.f32 0.0, %v1351
      %1353 = vmatmul.bf16.gmra.mxu0 %v1149
      %v1354 = vpop.f32.mrf.mxu0
      %v1355 = vadd.f32 0.0, %v1354
      %v1356 = vpop.f32.mrf.mxu0
      %v1357 = vadd.f32 0.0, %v1356
      %1358 = vmatmul.bf16.gmra.mxu0 %v1150
      %v1359 = vpop.f32.mrf.mxu0
      %v1360 = vadd.f32 0.0, %v1359
      %v1361 = vpop.f32.mrf.mxu0
      %v1362 = vadd.f32 0.0, %v1361
      %1363 = vmatmul.bf16.gmra.mxu0 %v1151
      %v1364 = vpop.f32.mrf.mxu0
      %v1365 = vadd.f32 0.0, %v1364
      %v1366 = vpop.f32.mrf.mxu0
      %v1367 = vadd.f32 0.0, %v1366
      %1368 = vmatmul.bf16.gmra.mxu0 %v1152
      %v1369 = vpop.f32.mrf.mxu0
      %v1370 = vadd.f32 0.0, %v1369
      %v1371 = vpop.f32.mrf.mxu0
      %v1372 = vadd.f32 0.0, %v1371
      %1373 = vmatmul.bf16.gmra.mxu0 %v1153
      %v1374 = vpop.f32.mrf.mxu0
      %v1375 = vadd.f32 0.0, %v1374
      %v1376 = vpop.f32.mrf.mxu0
      %v1377 = vadd.f32 0.0, %v1376
      %1378 = vmatmul.bf16.gmra.mxu0 %v1154
      %v1379 = vpop.f32.mrf.mxu0
      %v1380 = vadd.f32 0.0, %v1379
      %v1381 = vpop.f32.mrf.mxu0
      %v1382 = vadd.f32 0.0, %v1381
      %1383 = vmatmul.bf16.gmra.mxu0 %v1155
      %v1384 = vpop.f32.mrf.mxu0
      %v1385 = vadd.f32 0.0, %v1384
      %v1386 = vpop.f32.mrf.mxu0
      %v1387 = vadd.f32 0.0, %v1386
      %1388 = vmatmul.bf16.gmra.mxu0 %v1156
      %v1389 = vpop.f32.mrf.mxu0
      %v1390 = vadd.f32 0.0, %v1389
      %v1391 = vpop.f32.mrf.mxu0
      %v1392 = vadd.f32 0.0, %v1391
      %1393 = vmatmul.bf16.gmra.mxu0 %v1157
      %v1394 = vpop.f32.mrf.mxu0
      %v1395 = vadd.f32 0.0, %v1394
      %v1396 = vpop.f32.mrf.mxu0
      %v1397 = vadd.f32 0.0, %v1396
      %1398 = vmatmul.bf16.gmra.mxu0 %v1158
      %v1399 = vpop.f32.mrf.mxu0
      %v1400 = vadd.f32 0.0, %v1399
      %v1401 = vpop.f32.mrf.mxu0
      %v1402 = vadd.f32 0.0, %v1401
      %1403 = vdwg.mxu0
      %v1416 = vunpack.c.l.b16 %v1159
      %v1417 = vunpack.c.l.b16 %v1160
      %v1418 = vunpack.c.l.b16 %v1161
      %v1419 = vunpack.c.l.b16 %v1162
      %v1420 = vunpack.c.l.b16 %v1163
      %v1421 = vunpack.c.l.b16 %v1164
      %v1422 = vunpack.c.l.b16 %v1165
      %v1423 = vunpack.c.l.b16 %v1166
      %v1424 = vunpack.c.l.b16 %v1167
      %v1425 = vunpack.c.l.b16 %v1168
      %v1426 = vunpack.c.l.b16 %v1169
      %v1427 = vunpack.c.l.b16 %v1170
      %v1428 = vpack.c.b16 %v1417, %v1416
      %v1429 = vpack.c.b16 %v1419, %v1418
      %v1430 = vpack.c.b16 %v1421, %v1420
      %v1431 = vpack.c.b16 %v1423, %v1422
      %v1432 = vpack.c.b16 %v1425, %v1424
      %v1433 = vpack.c.b16 %v1427, %v1426
      %1440 = vmatpush.bf16.msra.mxu0 0
      %1441 = vmatpush.bf16.msra.mxu0 0
      %1442 = vmatpush.bf16.msra.mxu0 %v1433
      %1443 = vmatpush.bf16.msra.mxu0 %v1432
      %1444 = vmatpush.bf16.msra.mxu0 %v1431
      %1445 = vmatpush.bf16.msra.mxu0 %v1430
      %1446 = vmatpush.bf16.msra.mxu0 %v1429
      %1447 = vmatpush.bf16.msra.mxu0 %v1428
      %1448 = vmatmul.bf16.gmra.mxu0 %v468
      %v1449 = vpop.f32.mrf.mxu0
      %v1450 = vadd.f32 %v1245, %v1449
      %v1451 = vpop.f32.mrf.mxu0
      %v1452 = vadd.f32 %v1247, %v1451
      %1453 = vmatmul.bf16.gmra.mxu0 %v471
      %v1454 = vpop.f32.mrf.mxu0
      %v1455 = vadd.f32 %v1250, %v1454
      %v1456 = vpop.f32.mrf.mxu0
      %v1457 = vadd.f32 %v1252, %v1456
      %1458 = vmatmul.bf16.gmra.mxu0 %v474
      %v1459 = vpop.f32.mrf.mxu0
      %v1460 = vadd.f32 %v1255, %v1459
      %v1461 = vpop.f32.mrf.mxu0
      %v1462 = vadd.f32 %v1257, %v1461
      %1463 = vmatmul.bf16.gmra.mxu0 %v477
      %v1464 = vpop.f32.mrf.mxu0
      %v1465 = vadd.f32 %v1260, %v1464
      %v1466 = vpop.f32.mrf.mxu0
      %v1467 = vadd.f32 %v1262, %v1466
      %1468 = vmatmul.bf16.gmra.mxu0 %v480
      %v1469 = vpop.f32.mrf.mxu0
      %v1470 = vadd.f32 %v1265, %v1469
      %v1471 = vpop.f32.mrf.mxu0
      %v1472 = vadd.f32 %v1267, %v1471
      %1473 = vmatmul.bf16.gmra.mxu0 %v483
      %v1474 = vpop.f32.mrf.mxu0
      %v1475 = vadd.f32 %v1270, %v1474
      %v1476 = vpop.f32.mrf.mxu0
      %v1477 = vadd.f32 %v1272, %v1476
      %1478 = vmatmul.bf16.gmra.mxu0 %v486
      %v1479 = vpop.f32.mrf.mxu0
      %v1480 = vadd.f32 %v1275, %v1479
      %v1481 = vpop.f32.mrf.mxu0
      %v1482 = vadd.f32 %v1277, %v1481
      %1483 = vmatmul.bf16.gmra.mxu0 %v489
      %v1484 = vpop.f32.mrf.mxu0
      %v1485 = vadd.f32 %v1280, %v1484
      %v1486 = vpop.f32.mrf.mxu0
      %v1487 = vadd.f32 %v1282, %v1486
      %1488 = vmatmul.bf16.gmra.mxu0 %v492
      %v1489 = vpop.f32.mrf.mxu0
      %v1490 = vadd.f32 %v1285, %v1489
      %v1491 = vpop.f32.mrf.mxu0
      %v1492 = vadd.f32 %v1287, %v1491
      %1493 = vmatmul.bf16.gmra.mxu0 %v495
      %v1494 = vpop.f32.mrf.mxu0
      %v1495 = vadd.f32 %v1290, %v1494
      %v1496 = vpop.f32.mrf.mxu0
      %v1497 = vadd.f32 %v1292, %v1496
      %1498 = vmatmul.bf16.gmra.mxu0 %v498
      %v1499 = vpop.f32.mrf.mxu0
      %v1500 = vadd.f32 %v1295, %v1499
      %v1501 = vpop.f32.mrf.mxu0
      %v1502 = vadd.f32 %v1297, %v1501
      %1503 = vmatmul.bf16.gmra.mxu0 %v501
      %v1504 = vpop.f32.mrf.mxu0
      %v1505 = vadd.f32 %v1300, %v1504
      %v1506 = vpop.f32.mrf.mxu0
      %v1507 = vadd.f32 %v1302, %v1506
      %1508 = vmatmul.bf16.gmra.mxu0 %v504
      %v1509 = vpop.f32.mrf.mxu0
      %v1510 = vadd.f32 %v1305, %v1509
      %v1511 = vpop.f32.mrf.mxu0
      %v1512 = vadd.f32 %v1307, %v1511
      %1513 = vmatmul.bf16.gmra.mxu0 %v507
      %v1514 = vpop.f32.mrf.mxu0
      %v1515 = vadd.f32 %v1310, %v1514
      %v1516 = vpop.f32.mrf.mxu0
      %v1517 = vadd.f32 %v1312, %v1516
      %1518 = vmatmul.bf16.gmra.mxu0 %v510
      %v1519 = vpop.f32.mrf.mxu0
      %v1520 = vadd.f32 %v1315, %v1519
      %v1521 = vpop.f32.mrf.mxu0
      %v1522 = vadd.f32 %v1317, %v1521
      %1523 = vmatmul.bf16.gmra.mxu0 %v513
      %v1524 = vpop.f32.mrf.mxu0
      %v1525 = vadd.f32 %v1320, %v1524
      %v1526 = vpop.f32.mrf.mxu0
      %v1527 = vadd.f32 %v1322, %v1526
      %1528 = vmatmul.bf16.gmra.mxu0 %v516
      %v1529 = vpop.f32.mrf.mxu0
      %v1530 = vadd.f32 %v1325, %v1529
      %v1531 = vpop.f32.mrf.mxu0
      %v1532 = vadd.f32 %v1327, %v1531
      %1533 = vmatmul.bf16.gmra.mxu0 %v519
      %v1534 = vpop.f32.mrf.mxu0
      %v1535 = vadd.f32 %v1330, %v1534
      %v1536 = vpop.f32.mrf.mxu0
      %v1537 = vadd.f32 %v1332, %v1536
      %1538 = vmatmul.bf16.gmra.mxu0 %v522
      %v1539 = vpop.f32.mrf.mxu0
      %v1540 = vadd.f32 %v1335, %v1539
      %v1541 = vpop.f32.mrf.mxu0
      %v1542 = vadd.f32 %v1337, %v1541
      %1543 = vmatmul.bf16.gmra.mxu0 %v525
      %v1544 = vpop.f32.mrf.mxu0
      %v1545 = vadd.f32 %v1340, %v1544
      %v1546 = vpop.f32.mrf.mxu0
      %v1547 = vadd.f32 %v1342, %v1546
      %1548 = vmatmul.bf16.gmra.mxu0 %v528
      %v1549 = vpop.f32.mrf.mxu0
      %v1550 = vadd.f32 %v1345, %v1549
      %v1551 = vpop.f32.mrf.mxu0
      %v1552 = vadd.f32 %v1347, %v1551
      %1553 = vmatmul.bf16.gmra.mxu0 %v531
      %v1554 = vpop.f32.mrf.mxu0
      %v1555 = vadd.f32 %v1350, %v1554
      %v1556 = vpop.f32.mrf.mxu0
      %v1557 = vadd.f32 %v1352, %v1556
      %1558 = vmatmul.bf16.gmra.mxu0 %v534
      %v1559 = vpop.f32.mrf.mxu0
      %v1560 = vadd.f32 %v1355, %v1559
      %v1561 = vpop.f32.mrf.mxu0
      %v1562 = vadd.f32 %v1357, %v1561
      %1563 = vmatmul.bf16.gmra.mxu0 %v537
      %v1564 = vpop.f32.mrf.mxu0
      %v1565 = vadd.f32 %v1360, %v1564
      %v1566 = vpop.f32.mrf.mxu0
      %v1567 = vadd.f32 %v1362, %v1566
      %1568 = vmatmul.bf16.gmra.mxu0 %v540
      %v1569 = vpop.f32.mrf.mxu0
      %v1570 = vadd.f32 %v1365, %v1569
      %v1571 = vpop.f32.mrf.mxu0
      %v1572 = vadd.f32 %v1367, %v1571
      %1573 = vmatmul.bf16.gmra.mxu0 %v543
      %v1574 = vpop.f32.mrf.mxu0
      %v1575 = vadd.f32 %v1370, %v1574
      %v1576 = vpop.f32.mrf.mxu0
      %v1577 = vadd.f32 %v1372, %v1576
      %1578 = vmatmul.bf16.gmra.mxu0 %v546
      %v1579 = vpop.f32.mrf.mxu0
      %v1580 = vadd.f32 %v1375, %v1579
      %v1581 = vpop.f32.mrf.mxu0
      %v1582 = vadd.f32 %v1377, %v1581
      %1583 = vmatmul.bf16.gmra.mxu0 %v549
      %v1584 = vpop.f32.mrf.mxu0
      %v1585 = vadd.f32 %v1380, %v1584
      %v1586 = vpop.f32.mrf.mxu0
      %v1587 = vadd.f32 %v1382, %v1586
      %1588 = vmatmul.bf16.gmra.mxu0 %v552
      %v1589 = vpop.f32.mrf.mxu0
      %v1590 = vadd.f32 %v1385, %v1589
      %v1591 = vpop.f32.mrf.mxu0
      %v1592 = vadd.f32 %v1387, %v1591
      %1593 = vmatmul.bf16.gmra.mxu0 %v555
      %v1594 = vpop.f32.mrf.mxu0
      %v1595 = vadd.f32 %v1390, %v1594
      %v1596 = vpop.f32.mrf.mxu0
      %v1597 = vadd.f32 %v1392, %v1596
      %1598 = vmatmul.bf16.gmra.mxu0 %v558
      %v1599 = vpop.f32.mrf.mxu0
      %v1600 = vadd.f32 %v1395, %v1599
      %v1601 = vpop.f32.mrf.mxu0
      %v1602 = vadd.f32 %v1397, %v1601
      %1603 = vmatmul.bf16.gmra.mxu0 %v561
      %v1604 = vpop.f32.mrf.mxu0
      %v1605 = vadd.f32 %v1400, %v1604
      %v1606 = vpop.f32.mrf.mxu0
      %v1607 = vadd.f32 %v1402, %v1606
      %1608 = vdwg.mxu0
      %v1609 = vld [vmem:[%s3 + $0x2] sm:$0x1]
      %v1610 = vperm.slane %v1609, 0
      %v1611 = vadd.f32 %v1450, %v1610
      %v1612 = vadd.f32 %v1452, %v1610
      %v1613 = vadd.f32 %v1455, %v1610
      %v1614 = vadd.f32 %v1457, %v1610
      %v1615 = vadd.f32 %v1460, %v1610
      %v1616 = vadd.f32 %v1462, %v1610
      %v1617 = vadd.f32 %v1465, %v1610
      %v1618 = vadd.f32 %v1467, %v1610
      %v1619 = vadd.f32 %v1470, %v1610
      %v1620 = vadd.f32 %v1472, %v1610
      %v1621 = vadd.f32 %v1475, %v1610
      %v1622 = vadd.f32 %v1477, %v1610
      %v1623 = vadd.f32 %v1480, %v1610
      %v1624 = vadd.f32 %v1482, %v1610
      %v1625 = vadd.f32 %v1485, %v1610
      %v1626 = vadd.f32 %v1487, %v1610
      %v1627 = vadd.f32 %v1490, %v1610
      %v1628 = vadd.f32 %v1492, %v1610
      %v1629 = vadd.f32 %v1495, %v1610
      %v1630 = vadd.f32 %v1497, %v1610
      %v1631 = vadd.f32 %v1500, %v1610
      %v1632 = vadd.f32 %v1502, %v1610
      %v1633 = vadd.f32 %v1505, %v1610
      %v1634 = vadd.f32 %v1507, %v1610
      %v1635 = vadd.f32 %v1510, %v1610
      %v1636 = vadd.f32 %v1512, %v1610
      %v1637 = vadd.f32 %v1515, %v1610
      %v1638 = vadd.f32 %v1517, %v1610
      %v1639 = vadd.f32 %v1520, %v1610
      %v1640 = vadd.f32 %v1522, %v1610
      %v1641 = vadd.f32 %v1525, %v1610
      %v1642 = vadd.f32 %v1527, %v1610
      %v1643 = vadd.f32 %v1530, %v1610
      %v1644 = vadd.f32 %v1532, %v1610
      %v1645 = vadd.f32 %v1535, %v1610
      %v1646 = vadd.f32 %v1537, %v1610
      %v1647 = vadd.f32 %v1540, %v1610
      %v1648 = vadd.f32 %v1542, %v1610
      %v1649 = vadd.f32 %v1545, %v1610
      %v1650 = vadd.f32 %v1547, %v1610
      %v1651 = vadd.f32 %v1550, %v1610
      %v1652 = vadd.f32 %v1552, %v1610
      %v1653 = vadd.f32 %v1555, %v1610
      %v1654 = vadd.f32 %v1557, %v1610
      %v1655 = vadd.f32 %v1560, %v1610
      %v1656 = vadd.f32 %v1562, %v1610
      %v1657 = vadd.f32 %v1565, %v1610
      %v1658 = vadd.f32 %v1567, %v1610
      %v1659 = vadd.f32 %v1570, %v1610
      %v1660 = vadd.f32 %v1572, %v1610
      %v1661 = vadd.f32 %v1575, %v1610
      %v1662 = vadd.f32 %v1577, %v1610
      %v1663 = vadd.f32 %v1580, %v1610
      %v1664 = vadd.f32 %v1582, %v1610
      %v1665 = vadd.f32 %v1585, %v1610
      %v1666 = vadd.f32 %v1587, %v1610
      %v1667 = vadd.f32 %v1590, %v1610
      %v1668 = vadd.f32 %v1592, %v1610
      %v1669 = vadd.f32 %v1595, %v1610
      %v1670 = vadd.f32 %v1597, %v1610
      %v1671 = vadd.f32 %v1600, %v1610
      %v1672 = vadd.f32 %v1602, %v1610
      %v1673 = vadd.f32 %v1605, %v1610
      %v1674 = vadd.f32 %v1607, %v1610
      %v1675 = vmax.f32 %v1611, 0.0
      %v1676 = vmax.f32 %v1612, 0.0
      %v1677 = vmax.f32 %v1613, 0.0
      %v1678 = vmax.f32 %v1614, 0.0
      %v1679 = vmax.f32 %v1615, 0.0
      %v1680 = vmax.f32 %v1616, 0.0
      %v1681 = vmax.f32 %v1617, 0.0
      %v1682 = vmax.f32 %v1618, 0.0
      %v1683 = vmax.f32 %v1619, 0.0
      %v1684 = vmax.f32 %v1620, 0.0
      %v1685 = vmax.f32 %v1621, 0.0
      %v1686 = vmax.f32 %v1622, 0.0
      %v1687 = vmax.f32 %v1623, 0.0
      %v1688 = vmax.f32 %v1624, 0.0
      %v1689 = vmax.f32 %v1625, 0.0
      %v1690 = vmax.f32 %v1626, 0.0
      %v1691 = vmax.f32 %v1627, 0.0
      %v1692 = vmax.f32 %v1628, 0.0
      %v1693 = vmax.f32 %v1629, 0.0
      %v1694 = vmax.f32 %v1630, 0.0
      %v1695 = vmax.f32 %v1631, 0.0
      %v1696 = vmax.f32 %v1632, 0.0
      %v1697 = vmax.f32 %v1633, 0.0
      %v1698 = vmax.f32 %v1634, 0.0
      %v1699 = vmax.f32 %v1635, 0.0
      %v1700 = vmax.f32 %v1636, 0.0
      %v1701 = vmax.f32 %v1637, 0.0
      %v1702 = vmax.f32 %v1638, 0.0
      %v1703 = vmax.f32 %v1639, 0.0
      %v1704 = vmax.f32 %v1640, 0.0
      %v1705 = vmax.f32 %v1641, 0.0
      %v1706 = vmax.f32 %v1642, 0.0
      %v1707 = vmax.f32 %v1643, 0.0
      %v1708 = vmax.f32 %v1644, 0.0
      %v1709 = vmax.f32 %v1645, 0.0
      %v1710 = vmax.f32 %v1646, 0.0
      %v1711 = vmax.f32 %v1647, 0.0
      %v1712 = vmax.f32 %v1648, 0.0
      %v1713 = vmax.f32 %v1649, 0.0
      %v1714 = vmax.f32 %v1650, 0.0
      %v1715 = vmax.f32 %v1651, 0.0
      %v1716 = vmax.f32 %v1652, 0.0
      %v1717 = vmax.f32 %v1653, 0.0
      %v1718 = vmax.f32 %v1654, 0.0
      %v1719 = vmax.f32 %v1655, 0.0
      %v1720 = vmax.f32 %v1656, 0.0
      %v1721 = vmax.f32 %v1657, 0.0
      %v1722 = vmax.f32 %v1658, 0.0
      %v1723 = vmax.f32 %v1659, 0.0
      %v1724 = vmax.f32 %v1660, 0.0
      %v1725 = vmax.f32 %v1661, 0.0
      %v1726 = vmax.f32 %v1662, 0.0
      %v1727 = vmax.f32 %v1663, 0.0
      %v1728 = vmax.f32 %v1664, 0.0
      %v1729 = vmax.f32 %v1665, 0.0
      %v1730 = vmax.f32 %v1666, 0.0
      %v1731 = vmax.f32 %v1667, 0.0
      %v1732 = vmax.f32 %v1668, 0.0
      %v1733 = vmax.f32 %v1669, 0.0
      %v1734 = vmax.f32 %v1670, 0.0
      %v1735 = vmax.f32 %v1671, 0.0
      %v1736 = vmax.f32 %v1672, 0.0
      %v1737 = vmax.f32 %v1673, 0.0
      %v1738 = vmax.f32 %v1674, 0.0
      %v1739 = vpack.c.bf16 %v1676, %v1675
      %v1740 = vpack.c.bf16 %v1678, %v1677
      %v1741 = vpack.c.bf16 %v1680, %v1679
      %v1742 = vpack.c.bf16 %v1682, %v1681
      %v1743 = vpack.c.bf16 %v1684, %v1683
      %v1744 = vpack.c.bf16 %v1686, %v1685
      %v1745 = vpack.c.bf16 %v1688, %v1687
      %v1746 = vpack.c.bf16 %v1690, %v1689
      %v1747 = vpack.c.bf16 %v1692, %v1691
      %v1748 = vpack.c.bf16 %v1694, %v1693
      %v1749 = vpack.c.bf16 %v1696, %v1695
      %v1750 = vpack.c.bf16 %v1698, %v1697
      %v1751 = vpack.c.bf16 %v1700, %v1699
      %v1752 = vpack.c.bf16 %v1702, %v1701
      %v1753 = vpack.c.bf16 %v1704, %v1703
      %v1754 = vpack.c.bf16 %v1706, %v1705
      %v1755 = vpack.c.bf16 %v1708, %v1707
      %v1756 = vpack.c.bf16 %v1710, %v1709
      %v1757 = vpack.c.bf16 %v1712, %v1711
      %v1758 = vpack.c.bf16 %v1714, %v1713
      %v1759 = vpack.c.bf16 %v1716, %v1715
      %v1760 = vpack.c.bf16 %v1718, %v1717
      %v1761 = vpack.c.bf16 %v1720, %v1719
      %v1762 = vpack.c.bf16 %v1722, %v1721
      %v1763 = vpack.c.bf16 %v1724, %v1723
      %v1764 = vpack.c.bf16 %v1726, %v1725
      %v1765 = vpack.c.bf16 %v1728, %v1727
      %v1766 = vpack.c.bf16 %v1730, %v1729
      %v1767 = vpack.c.bf16 %v1732, %v1731
      %v1768 = vpack.c.bf16 %v1734, %v1733
      %v1769 = vpack.c.bf16 %v1736, %v1735
      %v1770 = vpack.c.bf16 %v1738, %v1737
      %v1771 = vld [vmem:[%s2 + $0xe0] sm:$0xf]
      %v1772 = vld [vmem:[%s2 + $0xe4] sm:$0xf]
      %v1773 = vld [vmem:[%s2 + $0xe8] sm:$0xf]
      %v1774 = vld [vmem:[%s2 + $0xec] sm:$0xf]
      %v1775 = vld [vmem:[%s2 + $0xf0] sm:$0xf]
      %v1776 = vld [vmem:[%s2 + $0xf4] sm:$0xf]
      %v1777 = vld [vmem:[%s2 + $0xf8] sm:$0xf]
      %v1778 = vld [vmem:[%s2 + $0xfc] sm:$0xf]
      %v1779 = vld [vmem:[%s2 + $0x100] sm:$0xf]
      %v1780 = vld [vmem:[%s2 + $0x104] sm:$0xf]
      %v1781 = vld [vmem:[%s2 + $0x108] sm:$0xf]
      %v1782 = vld [vmem:[%s2 + $0x10c] sm:$0xf]
      %v1783 = vld [vmem:[%s2 + $0x110] sm:$0xf]
      %v1784 = vld [vmem:[%s2 + $0x114] sm:$0xf]
      %v1785 = vld [vmem:[%s2 + $0x118] sm:$0xf]
      %v1786 = vld [vmem:[%s2 + $0x11c] sm:$0xf]
      %v1787 = vld [vmem:[%s3 + $0x3] sm:$0x1]
      %v1788 = vperm.slane %v1787, 0
      %v1805 = vunpack.c.l.b16 %v1771
      %v1806 = vunpack.c.l.b16 %v1772
      %v1807 = vunpack.c.l.b16 %v1773
      %v1808 = vunpack.c.l.b16 %v1774
      %v1809 = vunpack.c.l.b16 %v1775
      %v1810 = vunpack.c.l.b16 %v1776
      %v1811 = vunpack.c.l.b16 %v1777
      %v1812 = vunpack.c.l.b16 %v1778
      %v1813 = vunpack.c.l.b16 %v1779
      %v1814 = vunpack.c.l.b16 %v1780
      %v1815 = vunpack.c.l.b16 %v1781
      %v1816 = vunpack.c.l.b16 %v1782
      %v1817 = vunpack.c.l.b16 %v1783
      %v1818 = vunpack.c.l.b16 %v1784
      %v1819 = vunpack.c.l.b16 %v1785
      %v1820 = vunpack.c.l.b16 %v1786
      %v1821 = vpack.c.b16 %v1806, %v1805
      %v1822 = vpack.c.b16 %v1808, %v1807
      %v1823 = vpack.c.b16 %v1810, %v1809
      %v1824 = vpack.c.b16 %v1812, %v1811
      %v1825 = vpack.c.b16 %v1814, %v1813
      %v1826 = vpack.c.b16 %v1816, %v1815
      %v1827 = vpack.c.b16 %v1818, %v1817
      %v1828 = vpack.c.b16 %v1820, %v1819
      %1837 = vmatpush.bf16.msra.mxu0 %v1828
      %1838 = vmatpush.bf16.msra.mxu0 %v1827
      %1839 = vmatpush.bf16.msra.mxu0 %v1826
      %1840 = vmatpush.bf16.msra.mxu0 %v1825
      %1841 = vmatpush.bf16.msra.mxu0 %v1824
      %1842 = vmatpush.bf16.msra.mxu0 %v1823
      %1843 = vmatpush.bf16.msra.mxu0 %v1822
      %1844 = vmatpush.bf16.msra.mxu0 %v1821
      %1845 = vmatmul.bf16.gmra.mxu0 %v1739
      %v1846 = vpop.f32.mrf.mxu0
      %v1847 = vadd.f32 %v1788, %v1846
      %v1848 = vpop.f32.mrf.mxu0
      %v1849 = vadd.f32 %v1788, %v1848
      %1850 = vmatmul.bf16.gmra.mxu0 %v1740
      %v1851 = vpop.f32.mrf.mxu0
      %v1852 = vadd.f32 %v1788, %v1851
      %v1853 = vpop.f32.mrf.mxu0
      %v1854 = vadd.f32 %v1788, %v1853
      %1855 = vmatmul.bf16.gmra.mxu0 %v1741
      %v1856 = vpop.f32.mrf.mxu0
      %v1857 = vadd.f32 %v1788, %v1856
      %v1858 = vpop.f32.mrf.mxu0
      %v1859 = vadd.f32 %v1788, %v1858
      %1860 = vmatmul.bf16.gmra.mxu0 %v1742
      %v1861 = vpop.f32.mrf.mxu0
      %v1862 = vadd.f32 %v1788, %v1861
      %v1863 = vpop.f32.mrf.mxu0
      %v1864 = vadd.f32 %v1788, %v1863
      %1865 = vmatmul.bf16.gmra.mxu0 %v1743
      %v1866 = vpop.f32.mrf.mxu0
      %v1867 = vadd.f32 %v1788, %v1866
      %v1868 = vpop.f32.mrf.mxu0
      %v1869 = vadd.f32 %v1788, %v1868
      %1870 = vmatmul.bf16.gmra.mxu0 %v1744
      %v1871 = vpop.f32.mrf.mxu0
      %v1872 = vadd.f32 %v1788, %v1871
      %v1873 = vpop.f32.mrf.mxu0
      %v1874 = vadd.f32 %v1788, %v1873
      %1875 = vmatmul.bf16.gmra.mxu0 %v1745
      %v1876 = vpop.f32.mrf.mxu0
      %v1877 = vadd.f32 %v1788, %v1876
      %v1878 = vpop.f32.mrf.mxu0
      %v1879 = vadd.f32 %v1788, %v1878
      %1880 = vmatmul.bf16.gmra.mxu0 %v1746
      %v1881 = vpop.f32.mrf.mxu0
      %v1882 = vadd.f32 %v1788, %v1881
      %v1883 = vpop.f32.mrf.mxu0
      %v1884 = vadd.f32 %v1788, %v1883
      %1885 = vmatmul.bf16.gmra.mxu0 %v1747
      %v1886 = vpop.f32.mrf.mxu0
      %v1887 = vadd.f32 %v1788, %v1886
      %v1888 = vpop.f32.mrf.mxu0
      %v1889 = vadd.f32 %v1788, %v1888
      %1890 = vmatmul.bf16.gmra.mxu0 %v1748
      %v1891 = vpop.f32.mrf.mxu0
      %v1892 = vadd.f32 %v1788, %v1891
      %v1893 = vpop.f32.mrf.mxu0
      %v1894 = vadd.f32 %v1788, %v1893
      %1895 = vmatmul.bf16.gmra.mxu0 %v1749
      %v1896 = vpop.f32.mrf.mxu0
      %v1897 = vadd.f32 %v1788, %v1896
      %v1898 = vpop.f32.mrf.mxu0
      %v1899 = vadd.f32 %v1788, %v1898
      %1900 = vmatmul.bf16.gmra.mxu0 %v1750
      %v1901 = vpop.f32.mrf.mxu0
      %v1902 = vadd.f32 %v1788, %v1901
      %v1903 = vpop.f32.mrf.mxu0
      %v1904 = vadd.f32 %v1788, %v1903
      %1905 = vmatmul.bf16.gmra.mxu0 %v1751
      %v1906 = vpop.f32.mrf.mxu0
      %v1907 = vadd.f32 %v1788, %v1906
      %v1908 = vpop.f32.mrf.mxu0
      %v1909 = vadd.f32 %v1788, %v1908
      %1910 = vmatmul.bf16.gmra.mxu0 %v1752
      %v1911 = vpop.f32.mrf.mxu0
      %v1912 = vadd.f32 %v1788, %v1911
      %v1913 = vpop.f32.mrf.mxu0
      %v1914 = vadd.f32 %v1788, %v1913
      %1915 = vmatmul.bf16.gmra.mxu0 %v1753
      %v1916 = vpop.f32.mrf.mxu0
      %v1917 = vadd.f32 %v1788, %v1916
      %v1918 = vpop.f32.mrf.mxu0
      %v1919 = vadd.f32 %v1788, %v1918
      %1920 = vmatmul.bf16.gmra.mxu0 %v1754
      %v1921 = vpop.f32.mrf.mxu0
      %v1922 = vadd.f32 %v1788, %v1921
      %v1923 = vpop.f32.mrf.mxu0
      %v1924 = vadd.f32 %v1788, %v1923
      %1925 = vmatmul.bf16.gmra.mxu0 %v1755
      %v1926 = vpop.f32.mrf.mxu0
      %v1927 = vadd.f32 %v1788, %v1926
      %v1928 = vpop.f32.mrf.mxu0
      %v1929 = vadd.f32 %v1788, %v1928
      %1930 = vmatmul.bf16.gmra.mxu0 %v1756
      %v1931 = vpop.f32.mrf.mxu0
      %v1932 = vadd.f32 %v1788, %v1931
      %v1933 = vpop.f32.mrf.mxu0
      %v1934 = vadd.f32 %v1788, %v1933
      %1935 = vmatmul.bf16.gmra.mxu0 %v1757
      %v1936 = vpop.f32.mrf.mxu0
      %v1937 = vadd.f32 %v1788, %v1936
      %v1938 = vpop.f32.mrf.mxu0
      %v1939 = vadd.f32 %v1788, %v1938
      %1940 = vmatmul.bf16.gmra.mxu0 %v1758
      %v1941 = vpop.f32.mrf.mxu0
      %v1942 = vadd.f32 %v1788, %v1941
      %v1943 = vpop.f32.mrf.mxu0
      %v1944 = vadd.f32 %v1788, %v1943
      %1945 = vmatmul.bf16.gmra.mxu0 %v1759
      %v1946 = vpop.f32.mrf.mxu0
      %v1947 = vadd.f32 %v1788, %v1946
      %v1948 = vpop.f32.mrf.mxu0
      %v1949 = vadd.f32 %v1788, %v1948
      %1950 = vmatmul.bf16.gmra.mxu0 %v1760
      %v1951 = vpop.f32.mrf.mxu0
      %v1952 = vadd.f32 %v1788, %v1951
      %v1953 = vpop.f32.mrf.mxu0
      %v1954 = vadd.f32 %v1788, %v1953
      %1955 = vmatmul.bf16.gmra.mxu0 %v1761
      %v1956 = vpop.f32.mrf.mxu0
      %v1957 = vadd.f32 %v1788, %v1956
      %v1958 = vpop.f32.mrf.mxu0
      %v1959 = vadd.f32 %v1788, %v1958
      %1960 = vmatmul.bf16.gmra.mxu0 %v1762
      %v1961 = vpop.f32.mrf.mxu0
      %v1962 = vadd.f32 %v1788, %v1961
      %v1963 = vpop.f32.mrf.mxu0
      %v1964 = vadd.f32 %v1788, %v1963
      %1965 = vmatmul.bf16.gmra.mxu0 %v1763
      %v1966 = vpop.f32.mrf.mxu0
      %v1967 = vadd.f32 %v1788, %v1966
      %v1968 = vpop.f32.mrf.mxu0
      %v1969 = vadd.f32 %v1788, %v1968
      %1970 = vmatmul.bf16.gmra.mxu0 %v1764
      %v1971 = vpop.f32.mrf.mxu0
      %v1972 = vadd.f32 %v1788, %v1971
      %v1973 = vpop.f32.mrf.mxu0
      %v1974 = vadd.f32 %v1788, %v1973
      %1975 = vmatmul.bf16.gmra.mxu0 %v1765
      %v1976 = vpop.f32.mrf.mxu0
      %v1977 = vadd.f32 %v1788, %v1976
      %v1978 = vpop.f32.mrf.mxu0
      %v1979 = vadd.f32 %v1788, %v1978
      %1980 = vmatmul.bf16.gmra.mxu0 %v1766
      %v1981 = vpop.f32.mrf.mxu0
      %v1982 = vadd.f32 %v1788, %v1981
      %v1983 = vpop.f32.mrf.mxu0
      %v1984 = vadd.f32 %v1788, %v1983
      %1985 = vmatmul.bf16.gmra.mxu0 %v1767
      %v1986 = vpop.f32.mrf.mxu0
      %v1987 = vadd.f32 %v1788, %v1986
      %v1988 = vpop.f32.mrf.mxu0
      %v1989 = vadd.f32 %v1788, %v1988
      %1990 = vmatmul.bf16.gmra.mxu0 %v1768
      %v1991 = vpop.f32.mrf.mxu0
      %v1992 = vadd.f32 %v1788, %v1991
      %v1993 = vpop.f32.mrf.mxu0
      %v1994 = vadd.f32 %v1788, %v1993
      %1995 = vmatmul.bf16.gmra.mxu0 %v1769
      %v1996 = vpop.f32.mrf.mxu0
      %v1997 = vadd.f32 %v1788, %v1996
      %v1998 = vpop.f32.mrf.mxu0
      %v1999 = vadd.f32 %v1788, %v1998
      %2000 = vmatmul.bf16.gmra.mxu0 %v1770
      %v2001 = vpop.f32.mrf.mxu0
      %v2002 = vadd.f32 %v1788, %v2001
      %v2003 = vpop.f32.mrf.mxu0
      %v2004 = vadd.f32 %v1788, %v2003
      %2005 = vdwg.mxu0
      %v2006 = vmax.f32 %v1847, 0.0
      %v2007 = vmax.f32 %v1849, 0.0
      %v2008 = vmax.f32 %v1852, 0.0
      %v2009 = vmax.f32 %v1854, 0.0
      %v2010 = vmax.f32 %v1857, 0.0
      %v2011 = vmax.f32 %v1859, 0.0
      %v2012 = vmax.f32 %v1862, 0.0
      %v2013 = vmax.f32 %v1864, 0.0
      %v2014 = vmax.f32 %v1867, 0.0
      %v2015 = vmax.f32 %v1869, 0.0
      %v2016 = vmax.f32 %v1872, 0.0
      %v2017 = vmax.f32 %v1874, 0.0
      %v2018 = vmax.f32 %v1877, 0.0
      %v2019 = vmax.f32 %v1879, 0.0
      %v2020 = vmax.f32 %v1882, 0.0
      %v2021 = vmax.f32 %v1884, 0.0
      %v2022 = vmax.f32 %v1887, 0.0
      %v2023 = vmax.f32 %v1889, 0.0
      %v2024 = vmax.f32 %v1892, 0.0
      %v2025 = vmax.f32 %v1894, 0.0
      %v2026 = vmax.f32 %v1897, 0.0
      %v2027 = vmax.f32 %v1899, 0.0
      %v2028 = vmax.f32 %v1902, 0.0
      %v2029 = vmax.f32 %v1904, 0.0
      %v2030 = vmax.f32 %v1907, 0.0
      %v2031 = vmax.f32 %v1909, 0.0
      %v2032 = vmax.f32 %v1912, 0.0
      %v2033 = vmax.f32 %v1914, 0.0
      %v2034 = vmax.f32 %v1917, 0.0
      %v2035 = vmax.f32 %v1919, 0.0
      %v2036 = vmax.f32 %v1922, 0.0
      %v2037 = vmax.f32 %v1924, 0.0
      %v2038 = vmax.f32 %v1927, 0.0
      %v2039 = vmax.f32 %v1929, 0.0
      %v2040 = vmax.f32 %v1932, 0.0
      %v2041 = vmax.f32 %v1934, 0.0
      %v2042 = vmax.f32 %v1937, 0.0
      %v2043 = vmax.f32 %v1939, 0.0
      %v2044 = vmax.f32 %v1942, 0.0
      %v2045 = vmax.f32 %v1944, 0.0
      %v2046 = vmax.f32 %v1947, 0.0
      %v2047 = vmax.f32 %v1949, 0.0
      %v2048 = vmax.f32 %v1952, 0.0
      %v2049 = vmax.f32 %v1954, 0.0
      %v2050 = vmax.f32 %v1957, 0.0
      %v2051 = vmax.f32 %v1959, 0.0
      %v2052 = vmax.f32 %v1962, 0.0
      %v2053 = vmax.f32 %v1964, 0.0
      %v2054 = vmax.f32 %v1967, 0.0
      %v2055 = vmax.f32 %v1969, 0.0
      %v2056 = vmax.f32 %v1972, 0.0
      %v2057 = vmax.f32 %v1974, 0.0
      %v2058 = vmax.f32 %v1977, 0.0
      %v2059 = vmax.f32 %v1979, 0.0
      %v2060 = vmax.f32 %v1982, 0.0
      %v2061 = vmax.f32 %v1984, 0.0
      %v2062 = vmax.f32 %v1987, 0.0
      %v2063 = vmax.f32 %v1989, 0.0
      %v2064 = vmax.f32 %v1992, 0.0
      %v2065 = vmax.f32 %v1994, 0.0
      %v2066 = vmax.f32 %v1997, 0.0
      %v2067 = vmax.f32 %v1999, 0.0
      %v2068 = vmax.f32 %v2002, 0.0
      %v2069 = vmax.f32 %v2004, 0.0
      %v2070 = vpack.c.bf16 %v2007, %v2006
      %v2071 = vpack.c.bf16 %v2009, %v2008
      %v2072 = vpack.c.bf16 %v2011, %v2010
      %v2073 = vpack.c.bf16 %v2013, %v2012
      %v2074 = vpack.c.bf16 %v2015, %v2014
      %v2075 = vpack.c.bf16 %v2017, %v2016
      %v2076 = vpack.c.bf16 %v2019, %v2018
      %v2077 = vpack.c.bf16 %v2021, %v2020
      %v2078 = vpack.c.bf16 %v2023, %v2022
      %v2079 = vpack.c.bf16 %v2025, %v2024
      %v2080 = vpack.c.bf16 %v2027, %v2026
      %v2081 = vpack.c.bf16 %v2029, %v2028
      %v2082 = vpack.c.bf16 %v2031, %v2030
      %v2083 = vpack.c.bf16 %v2033, %v2032
      %v2084 = vpack.c.bf16 %v2035, %v2034
      %v2085 = vpack.c.bf16 %v2037, %v2036
      %v2086 = vpack.c.bf16 %v2039, %v2038
      %v2087 = vpack.c.bf16 %v2041, %v2040
      %v2088 = vpack.c.bf16 %v2043, %v2042
      %v2089 = vpack.c.bf16 %v2045, %v2044
      %v2090 = vpack.c.bf16 %v2047, %v2046
      %v2091 = vpack.c.bf16 %v2049, %v2048
      %v2092 = vpack.c.bf16 %v2051, %v2050
      %v2093 = vpack.c.bf16 %v2053, %v2052
      %v2094 = vpack.c.bf16 %v2055, %v2054
      %v2095 = vpack.c.bf16 %v2057, %v2056
      %v2096 = vpack.c.bf16 %v2059, %v2058
      %v2097 = vpack.c.bf16 %v2061, %v2060
      %v2098 = vpack.c.bf16 %v2063, %v2062
      %v2099 = vpack.c.bf16 %v2065, %v2064
      %v2100 = vpack.c.bf16 %v2067, %v2066
      %v2101 = vpack.c.bf16 %v2069, %v2068
      %v2102 = vld [vmem:[%s2 + $0x120] sm:$0xf]
      %v2103 = vld [vmem:[%s2 + $0x124] sm:$0xf]
      %v2104 = vld [vmem:[%s2 + $0x128] sm:$0xf]
      %v2105 = vld [vmem:[%s2 + $0x12c] sm:$0xf]
      %v2106 = vld [vmem:[%s2 + $0x130] sm:$0xf]
      %v2107 = vld [vmem:[%s2 + $0x134] sm:$0xf]
      %v2108 = vld [vmem:[%s2 + $0x138] sm:$0xf]
      %v2109 = vld [vmem:[%s2 + $0x13c] sm:$0xf]
      %v2110 = vld [vmem:[%s2 + $0x140] sm:$0xf]
      %v2111 = vld [vmem:[%s2 + $0x144] sm:$0xf]
      %v2112 = vld [vmem:[%s2 + $0x148] sm:$0xf]
      %v2113 = vld [vmem:[%s2 + $0x14c] sm:$0xf]
      %v2114 = vld [vmem:[%s2 + $0x150] sm:$0xf]
      %v2115 = vld [vmem:[%s2 + $0x154] sm:$0xf]
      %v2116 = vld [vmem:[%s2 + $0x158] sm:$0xf]
      %v2117 = vld [vmem:[%s2 + $0x15c] sm:$0xf]
      %v2118 = vld [vmem:[%s3 + $0x4] sm:$0x1]
      %v2119 = vperm.slane %v2118, 0
      %v2136 = vunpack.c.l.b16 %v2102
      %v2137 = vunpack.c.l.b16 %v2103
      %v2138 = vunpack.c.l.b16 %v2104
      %v2139 = vunpack.c.l.b16 %v2105
      %v2140 = vunpack.c.l.b16 %v2106
      %v2141 = vunpack.c.l.b16 %v2107
      %v2142 = vunpack.c.l.b16 %v2108
      %v2143 = vunpack.c.l.b16 %v2109
      %v2144 = vunpack.c.l.b16 %v2110
      %v2145 = vunpack.c.l.b16 %v2111
      %v2146 = vunpack.c.l.b16 %v2112
      %v2147 = vunpack.c.l.b16 %v2113
      %v2148 = vunpack.c.l.b16 %v2114
      %v2149 = vunpack.c.l.b16 %v2115
      %v2150 = vunpack.c.l.b16 %v2116
      %v2151 = vunpack.c.l.b16 %v2117
      %v2152 = vpack.c.b16 %v2137, %v2136
      %v2153 = vpack.c.b16 %v2139, %v2138
      %v2154 = vpack.c.b16 %v2141, %v2140
      %v2155 = vpack.c.b16 %v2143, %v2142
      %v2156 = vpack.c.b16 %v2145, %v2144
      %v2157 = vpack.c.b16 %v2147, %v2146
      %v2158 = vpack.c.b16 %v2149, %v2148
      %v2159 = vpack.c.b16 %v2151, %v2150
      %2168 = vmatpush.bf16.msra.mxu0 %v2159
      %2169 = vmatpush.bf16.msra.mxu0 %v2158
      %2170 = vmatpush.bf16.msra.mxu0 %v2157
      %2171 = vmatpush.bf16.msra.mxu0 %v2156
      %2172 = vmatpush.bf16.msra.mxu0 %v2155
      %2173 = vmatpush.bf16.msra.mxu0 %v2154
      %2174 = vmatpush.bf16.msra.mxu0 %v2153
      %2175 = vmatpush.bf16.msra.mxu0 %v2152
      %2176 = vmatmul.bf16.gmra.mxu0 %v2070
      %v2177 = vpop.f32.mrf.mxu0
      %v2178 = vadd.f32 %v2119, %v2177
      %v2179 = vpop.f32.mrf.mxu0
      %v2180 = vadd.f32 %v2119, %v2179
      %2181 = vmatmul.bf16.gmra.mxu0 %v2071
      %v2182 = vpop.f32.mrf.mxu0
      %v2183 = vadd.f32 %v2119, %v2182
      %v2184 = vpop.f32.mrf.mxu0
      %v2185 = vadd.f32 %v2119, %v2184
      %2186 = vmatmul.bf16.gmra.mxu0 %v2072
      %v2187 = vpop.f32.mrf.mxu0
      %v2188 = vadd.f32 %v2119, %v2187
      %v2189 = vpop.f32.mrf.mxu0
      %v2190 = vadd.f32 %v2119, %v2189
      %2191 = vmatmul.bf16.gmra.mxu0 %v2073
      %v2192 = vpop.f32.mrf.mxu0
      %v2193 = vadd.f32 %v2119, %v2192
      %v2194 = vpop.f32.mrf.mxu0
      %v2195 = vadd.f32 %v2119, %v2194
      %2196 = vmatmul.bf16.gmra.mxu0 %v2074
      %v2197 = vpop.f32.mrf.mxu0
      %v2198 = vadd.f32 %v2119, %v2197
      %v2199 = vpop.f32.mrf.mxu0
      %v2200 = vadd.f32 %v2119, %v2199
      %2201 = vmatmul.bf16.gmra.mxu0 %v2075
      %v2202 = vpop.f32.mrf.mxu0
      %v2203 = vadd.f32 %v2119, %v2202
      %v2204 = vpop.f32.mrf.mxu0
      %v2205 = vadd.f32 %v2119, %v2204
      %2206 = vmatmul.bf16.gmra.mxu0 %v2076
      %v2207 = vpop.f32.mrf.mxu0
      %v2208 = vadd.f32 %v2119, %v2207
      %v2209 = vpop.f32.mrf.mxu0
      %v2210 = vadd.f32 %v2119, %v2209
      %2211 = vmatmul.bf16.gmra.mxu0 %v2077
      %v2212 = vpop.f32.mrf.mxu0
      %v2213 = vadd.f32 %v2119, %v2212
      %v2214 = vpop.f32.mrf.mxu0
      %v2215 = vadd.f32 %v2119, %v2214
      %2216 = vmatmul.bf16.gmra.mxu0 %v2078
      %v2217 = vpop.f32.mrf.mxu0
      %v2218 = vadd.f32 %v2119, %v2217
      %v2219 = vpop.f32.mrf.mxu0
      %v2220 = vadd.f32 %v2119, %v2219
      %2221 = vmatmul.bf16.gmra.mxu0 %v2079
      %v2222 = vpop.f32.mrf.mxu0
      %v2223 = vadd.f32 %v2119, %v2222
      %v2224 = vpop.f32.mrf.mxu0
      %v2225 = vadd.f32 %v2119, %v2224
      %2226 = vmatmul.bf16.gmra.mxu0 %v2080
      %v2227 = vpop.f32.mrf.mxu0
      %v2228 = vadd.f32 %v2119, %v2227
      %v2229 = vpop.f32.mrf.mxu0
      %v2230 = vadd.f32 %v2119, %v2229
      %2231 = vmatmul.bf16.gmra.mxu0 %v2081
      %v2232 = vpop.f32.mrf.mxu0
      %v2233 = vadd.f32 %v2119, %v2232
      %v2234 = vpop.f32.mrf.mxu0
      %v2235 = vadd.f32 %v2119, %v2234
      %2236 = vmatmul.bf16.gmra.mxu0 %v2082
      %v2237 = vpop.f32.mrf.mxu0
      %v2238 = vadd.f32 %v2119, %v2237
      %v2239 = vpop.f32.mrf.mxu0
      %v2240 = vadd.f32 %v2119, %v2239
      %2241 = vmatmul.bf16.gmra.mxu0 %v2083
      %v2242 = vpop.f32.mrf.mxu0
      %v2243 = vadd.f32 %v2119, %v2242
      %v2244 = vpop.f32.mrf.mxu0
      %v2245 = vadd.f32 %v2119, %v2244
      %2246 = vmatmul.bf16.gmra.mxu0 %v2084
      %v2247 = vpop.f32.mrf.mxu0
      %v2248 = vadd.f32 %v2119, %v2247
      %v2249 = vpop.f32.mrf.mxu0
      %v2250 = vadd.f32 %v2119, %v2249
      %2251 = vmatmul.bf16.gmra.mxu0 %v2085
      %v2252 = vpop.f32.mrf.mxu0
      %v2253 = vadd.f32 %v2119, %v2252
      %v2254 = vpop.f32.mrf.mxu0
      %v2255 = vadd.f32 %v2119, %v2254
      %2256 = vmatmul.bf16.gmra.mxu0 %v2086
      %v2257 = vpop.f32.mrf.mxu0
      %v2258 = vadd.f32 %v2119, %v2257
      %v2259 = vpop.f32.mrf.mxu0
      %v2260 = vadd.f32 %v2119, %v2259
      %2261 = vmatmul.bf16.gmra.mxu0 %v2087
      %v2262 = vpop.f32.mrf.mxu0
      %v2263 = vadd.f32 %v2119, %v2262
      %v2264 = vpop.f32.mrf.mxu0
      %v2265 = vadd.f32 %v2119, %v2264
      %2266 = vmatmul.bf16.gmra.mxu0 %v2088
      %v2267 = vpop.f32.mrf.mxu0
      %v2268 = vadd.f32 %v2119, %v2267
      %v2269 = vpop.f32.mrf.mxu0
      %v2270 = vadd.f32 %v2119, %v2269
      %2271 = vmatmul.bf16.gmra.mxu0 %v2089
      %v2272 = vpop.f32.mrf.mxu0
      %v2273 = vadd.f32 %v2119, %v2272
      %v2274 = vpop.f32.mrf.mxu0
      %v2275 = vadd.f32 %v2119, %v2274
      %2276 = vmatmul.bf16.gmra.mxu0 %v2090
      %v2277 = vpop.f32.mrf.mxu0
      %v2278 = vadd.f32 %v2119, %v2277
      %v2279 = vpop.f32.mrf.mxu0
      %v2280 = vadd.f32 %v2119, %v2279
      %2281 = vmatmul.bf16.gmra.mxu0 %v2091
      %v2282 = vpop.f32.mrf.mxu0
      %v2283 = vadd.f32 %v2119, %v2282
      %v2284 = vpop.f32.mrf.mxu0
      %v2285 = vadd.f32 %v2119, %v2284
      %2286 = vmatmul.bf16.gmra.mxu0 %v2092
      %v2287 = vpop.f32.mrf.mxu0
      %v2288 = vadd.f32 %v2119, %v2287
      %v2289 = vpop.f32.mrf.mxu0
      %v2290 = vadd.f32 %v2119, %v2289
      %2291 = vmatmul.bf16.gmra.mxu0 %v2093
      %v2292 = vpop.f32.mrf.mxu0
      %v2293 = vadd.f32 %v2119, %v2292
      %v2294 = vpop.f32.mrf.mxu0
      %v2295 = vadd.f32 %v2119, %v2294
      %2296 = vmatmul.bf16.gmra.mxu0 %v2094
      %v2297 = vpop.f32.mrf.mxu0
      %v2298 = vadd.f32 %v2119, %v2297
      %v2299 = vpop.f32.mrf.mxu0
      %v2300 = vadd.f32 %v2119, %v2299
      %2301 = vmatmul.bf16.gmra.mxu0 %v2095
      %v2302 = vpop.f32.mrf.mxu0
      %v2303 = vadd.f32 %v2119, %v2302
      %v2304 = vpop.f32.mrf.mxu0
      %v2305 = vadd.f32 %v2119, %v2304
      %2306 = vmatmul.bf16.gmra.mxu0 %v2096
      %v2307 = vpop.f32.mrf.mxu0
      %v2308 = vadd.f32 %v2119, %v2307
      %v2309 = vpop.f32.mrf.mxu0
      %v2310 = vadd.f32 %v2119, %v2309
      %2311 = vmatmul.bf16.gmra.mxu0 %v2097
      %v2312 = vpop.f32.mrf.mxu0
      %v2313 = vadd.f32 %v2119, %v2312
      %v2314 = vpop.f32.mrf.mxu0
      %v2315 = vadd.f32 %v2119, %v2314
      %2316 = vmatmul.bf16.gmra.mxu0 %v2098
      %v2317 = vpop.f32.mrf.mxu0
      %v2318 = vadd.f32 %v2119, %v2317
      %v2319 = vpop.f32.mrf.mxu0
      %v2320 = vadd.f32 %v2119, %v2319
      %2321 = vmatmul.bf16.gmra.mxu0 %v2099
      %v2322 = vpop.f32.mrf.mxu0
      %v2323 = vadd.f32 %v2119, %v2322
      %v2324 = vpop.f32.mrf.mxu0
      %v2325 = vadd.f32 %v2119, %v2324
      %2326 = vmatmul.bf16.gmra.mxu0 %v2100
      %v2327 = vpop.f32.mrf.mxu0
      %v2328 = vadd.f32 %v2119, %v2327
      %v2329 = vpop.f32.mrf.mxu0
      %v2330 = vadd.f32 %v2119, %v2329
      %2331 = vmatmul.bf16.gmra.mxu0 %v2101
      %v2332 = vpop.f32.mrf.mxu0
      %v2333 = vadd.f32 %v2119, %v2332
      %v2334 = vpop.f32.mrf.mxu0
      %v2335 = vadd.f32 %v2119, %v2334
      %2336 = vdwg.mxu0
      %v2337 = vpack.c.bf16 %v2180, %v2178
      %v2338 = vpack.c.bf16 %v2185, %v2183
      %v2339 = vpack.c.bf16 %v2190, %v2188
      %v2340 = vpack.c.bf16 %v2195, %v2193
      %v2341 = vpack.c.bf16 %v2200, %v2198
      %v2342 = vpack.c.bf16 %v2205, %v2203
      %v2343 = vpack.c.bf16 %v2210, %v2208
      %v2344 = vpack.c.bf16 %v2215, %v2213
      %v2345 = vpack.c.bf16 %v2220, %v2218
      %v2346 = vpack.c.bf16 %v2225, %v2223
      %v2347 = vpack.c.bf16 %v2230, %v2228
      %v2348 = vpack.c.bf16 %v2235, %v2233
      %v2349 = vpack.c.bf16 %v2240, %v2238
      %v2350 = vpack.c.bf16 %v2245, %v2243
      %v2351 = vpack.c.bf16 %v2250, %v2248
      %v2352 = vpack.c.bf16 %v2255, %v2253
      %v2353 = vpack.c.bf16 %v2260, %v2258
      %v2354 = vpack.c.bf16 %v2265, %v2263
      %v2355 = vpack.c.bf16 %v2270, %v2268
      %v2356 = vpack.c.bf16 %v2275, %v2273
      %v2357 = vpack.c.bf16 %v2280, %v2278
      %v2358 = vpack.c.bf16 %v2285, %v2283
      %v2359 = vpack.c.bf16 %v2290, %v2288
      %v2360 = vpack.c.bf16 %v2295, %v2293
      %v2361 = vpack.c.bf16 %v2300, %v2298
      %v2362 = vpack.c.bf16 %v2305, %v2303
      %v2363 = vpack.c.bf16 %v2310, %v2308
      %v2364 = vpack.c.bf16 %v2315, %v2313
      %v2365 = vpack.c.bf16 %v2320, %v2318
      %v2366 = vpack.c.bf16 %v2325, %v2323
      %v2367 = vpack.c.bf16 %v2330, %v2328
      %v2368 = vpack.c.bf16 %v2335, %v2333
      %v2369 = vld [vmem:[%s2 + $0x160] sm:$0xf]
      %v2370 = vld [vmem:[%s2 + $0x164] sm:$0xf]
      %v2371 = vld [vmem:[%s2 + $0x168] sm:$0xf]
      %v2372 = vld [vmem:[%s2 + $0x16c] sm:$0xf]
      %v2373 = vld [vmem:[%s2 + $0x170] sm:$0xf]
      %v2374 = vld [vmem:[%s2 + $0x174] sm:$0xf]
      %v2375 = vld [vmem:[%s2 + $0x178] sm:$0xf]
      %v2376 = vld [vmem:[%s2 + $0x17c] sm:$0xf]
      %v2377 = vld [vmem:[%s2 + $0x180] sm:$0xf]
      %v2378 = vld [vmem:[%s2 + $0x184] sm:$0xf]
      %v2379 = vld [vmem:[%s2 + $0x188] sm:$0xf]
      %v2380 = vld [vmem:[%s2 + $0x18c] sm:$0xf]
      %v2381 = vld [vmem:[%s2 + $0x190] sm:$0xf]
      %v2382 = vld [vmem:[%s2 + $0x194] sm:$0xf]
      %v2383 = vld [vmem:[%s2 + $0x198] sm:$0xf]
      %v2384 = vld [vmem:[%s2 + $0x19c] sm:$0xf]
      %v2385 = vld [vmem:[%s2 + $0x1a0] sm:$0xf]
      %v2386 = vld [vmem:[%s2 + $0x1a4] sm:$0xf]
      %v2387 = vld [vmem:[%s2 + $0x1a8] sm:$0xf]
      %v2388 = vld [vmem:[%s2 + $0x1ac] sm:$0xf]
      %v2389 = vld [vmem:[%s2 + $0x1b0] sm:$0xf]
      %v2390 = vld [vmem:[%s2 + $0x1b4] sm:$0xf]
      %v2397 = vunpack.c.l.b16 %v2385
      %v2398 = vunpack.c.l.b16 %v2386
      %v2399 = vunpack.c.l.b16 %v2387
      %v2400 = vunpack.c.l.b16 %v2388
      %v2401 = vunpack.c.l.b16 %v2389
      %v2402 = vunpack.c.l.b16 %v2390
      %v2403 = vpack.c.b16 %v2398, %v2397
      %v2404 = vpack.c.b16 %v2400, %v2399
      %v2405 = vpack.c.b16 %v2402, %v2401
      %vm2409 = vcmask 392192
      %v2411 = vsel %vm2409, %v384, 0
      %v2414 = vsel %vm2409, %v385, 0
      %v2417 = vsel %vm2409, %v386, 0
      %v2420 = vsel %vm2409, %v387, 0
      %v2423 = vsel %vm2409, %v388, 0
      %v2426 = vsel %vm2409, %v389, 0
      %v2429 = vsel %vm2409, %v390, 0
      %v2432 = vsel %vm2409, %v391, 0
      %v2435 = vsel %vm2409, %v392, 0
      %v2438 = vsel %vm2409, %v393, 0
      %v2441 = vsel %vm2409, %v394, 0
      %v2444 = vsel %vm2409, %v395, 0
      %v2447 = vsel %vm2409, %v396, 0
      %v2450 = vsel %vm2409, %v397, 0
      %v2453 = vsel %vm2409, %v398, 0
      %v2456 = vsel %vm2409, %v399, 0
      %v2459 = vsel %vm2409, %v400, 0
      %v2462 = vsel %vm2409, %v401, 0
      %v2465 = vsel %vm2409, %v402, 0
      %v2468 = vsel %vm2409, %v403, 0
      %v2471 = vsel %vm2409, %v404, 0
      %v2474 = vsel %vm2409, %v405, 0
      %v2477 = vsel %vm2409, %v406, 0
      %v2480 = vsel %vm2409, %v407, 0
      %v2483 = vsel %vm2409, %v408, 0
      %v2486 = vsel %vm2409, %v409, 0
      %v2489 = vsel %vm2409, %v410, 0
      %v2492 = vsel %vm2409, %v411, 0
      %v2495 = vsel %vm2409, %v412, 0
      %v2498 = vsel %vm2409, %v413, 0
      %v2501 = vsel %vm2409, %v414, 0
      %v2504 = vsel %vm2409, %v415, 0
      %2506 = vmatpush.bf16.msra.mxu0 0
      %2507 = vmatpush.bf16.msra.mxu0 0
      %2508 = vmatpush.bf16.msra.mxu0 0
      %2509 = vmatpush.bf16.msra.mxu0 0
      %2510 = vmatpush.bf16.msra.mxu0 0
      %2511 = vmatpush.bf16.msra.mxu0 %v2405
      %2512 = vmatpush.bf16.msra.mxu0 %v2404
      %2513 = vmatpush.bf16.msra.mxu0 %v2403
      %2514 = vmatmul.bf16.gmra.mxu0 %v2411
      %v2515 = vpop.f32.mrf.mxu0
      %v2516 = vadd.f32 0.0, %v2515
      %v2517 = vpop.f32.mrf.mxu0
      %v2518 = vadd.f32 0.0, %v2517
      %2519 = vmatmul.bf16.gmra.mxu0 %v2414
      %v2520 = vpop.f32.mrf.mxu0
      %v2521 = vadd.f32 0.0, %v2520
      %v2522 = vpop.f32.mrf.mxu0
      %v2523 = vadd.f32 0.0, %v2522
      %2524 = vmatmul.bf16.gmra.mxu0 %v2417
      %v2525 = vpop.f32.mrf.mxu0
      %v2526 = vadd.f32 0.0, %v2525
      %v2527 = vpop.f32.mrf.mxu0
      %v2528 = vadd.f32 0.0, %v2527
      %2529 = vmatmul.bf16.gmra.mxu0 %v2420
      %v2530 = vpop.f32.mrf.mxu0
      %v2531 = vadd.f32 0.0, %v2530
      %v2532 = vpop.f32.mrf.mxu0
      %v2533 = vadd.f32 0.0, %v2532
      %2534 = vmatmul.bf16.gmra.mxu0 %v2423
      %v2535 = vpop.f32.mrf.mxu0
      %v2536 = vadd.f32 0.0, %v2535
      %v2537 = vpop.f32.mrf.mxu0
      %v2538 = vadd.f32 0.0, %v2537
      %2539 = vmatmul.bf16.gmra.mxu0 %v2426
      %v2540 = vpop.f32.mrf.mxu0
      %v2541 = vadd.f32 0.0, %v2540
      %v2542 = vpop.f32.mrf.mxu0
      %v2543 = vadd.f32 0.0, %v2542
      %2544 = vmatmul.bf16.gmra.mxu0 %v2429
      %v2545 = vpop.f32.mrf.mxu0
      %v2546 = vadd.f32 0.0, %v2545
      %v2547 = vpop.f32.mrf.mxu0
      %v2548 = vadd.f32 0.0, %v2547
      %2549 = vmatmul.bf16.gmra.mxu0 %v2432
      %v2550 = vpop.f32.mrf.mxu0
      %v2551 = vadd.f32 0.0, %v2550
      %v2552 = vpop.f32.mrf.mxu0
      %v2553 = vadd.f32 0.0, %v2552
      %2554 = vmatmul.bf16.gmra.mxu0 %v2435
      %v2555 = vpop.f32.mrf.mxu0
      %v2556 = vadd.f32 0.0, %v2555
      %v2557 = vpop.f32.mrf.mxu0
      %v2558 = vadd.f32 0.0, %v2557
      %2559 = vmatmul.bf16.gmra.mxu0 %v2438
      %v2560 = vpop.f32.mrf.mxu0
      %v2561 = vadd.f32 0.0, %v2560
      %v2562 = vpop.f32.mrf.mxu0
      %v2563 = vadd.f32 0.0, %v2562
      %2564 = vmatmul.bf16.gmra.mxu0 %v2441
      %v2565 = vpop.f32.mrf.mxu0
      %v2566 = vadd.f32 0.0, %v2565
      %v2567 = vpop.f32.mrf.mxu0
      %v2568 = vadd.f32 0.0, %v2567
      %2569 = vmatmul.bf16.gmra.mxu0 %v2444
      %v2570 = vpop.f32.mrf.mxu0
      %v2571 = vadd.f32 0.0, %v2570
      %v2572 = vpop.f32.mrf.mxu0
      %v2573 = vadd.f32 0.0, %v2572
      %2574 = vmatmul.bf16.gmra.mxu0 %v2447
      %v2575 = vpop.f32.mrf.mxu0
      %v2576 = vadd.f32 0.0, %v2575
      %v2577 = vpop.f32.mrf.mxu0
      %v2578 = vadd.f32 0.0, %v2577
      %2579 = vmatmul.bf16.gmra.mxu0 %v2450
      %v2580 = vpop.f32.mrf.mxu0
      %v2581 = vadd.f32 0.0, %v2580
      %v2582 = vpop.f32.mrf.mxu0
      %v2583 = vadd.f32 0.0, %v2582
      %2584 = vmatmul.bf16.gmra.mxu0 %v2453
      %v2585 = vpop.f32.mrf.mxu0
      %v2586 = vadd.f32 0.0, %v2585
      %v2587 = vpop.f32.mrf.mxu0
      %v2588 = vadd.f32 0.0, %v2587
      %2589 = vmatmul.bf16.gmra.mxu0 %v2456
      %v2590 = vpop.f32.mrf.mxu0
      %v2591 = vadd.f32 0.0, %v2590
      %v2592 = vpop.f32.mrf.mxu0
      %v2593 = vadd.f32 0.0, %v2592
      %2594 = vmatmul.bf16.gmra.mxu0 %v2459
      %v2595 = vpop.f32.mrf.mxu0
      %v2596 = vadd.f32 0.0, %v2595
      %v2597 = vpop.f32.mrf.mxu0
      %v2598 = vadd.f32 0.0, %v2597
      %2599 = vmatmul.bf16.gmra.mxu0 %v2462
      %v2600 = vpop.f32.mrf.mxu0
      %v2601 = vadd.f32 0.0, %v2600
      %v2602 = vpop.f32.mrf.mxu0
      %v2603 = vadd.f32 0.0, %v2602
      %2604 = vmatmul.bf16.gmra.mxu0 %v2465
      %v2605 = vpop.f32.mrf.mxu0
      %v2606 = vadd.f32 0.0, %v2605
      %v2607 = vpop.f32.mrf.mxu0
      %v2608 = vadd.f32 0.0, %v2607
      %2609 = vmatmul.bf16.gmra.mxu0 %v2468
      %v2610 = vpop.f32.mrf.mxu0
      %v2611 = vadd.f32 0.0, %v2610
      %v2612 = vpop.f32.mrf.mxu0
      %v2613 = vadd.f32 0.0, %v2612
      %2614 = vmatmul.bf16.gmra.mxu0 %v2471
      %v2615 = vpop.f32.mrf.mxu0
      %v2616 = vadd.f32 0.0, %v2615
      %v2617 = vpop.f32.mrf.mxu0
      %v2618 = vadd.f32 0.0, %v2617
      %2619 = vmatmul.bf16.gmra.mxu0 %v2474
      %v2620 = vpop.f32.mrf.mxu0
      %v2621 = vadd.f32 0.0, %v2620
      %v2622 = vpop.f32.mrf.mxu0
      %v2623 = vadd.f32 0.0, %v2622
      %2624 = vmatmul.bf16.gmra.mxu0 %v2477
      %v2625 = vpop.f32.mrf.mxu0
      %v2626 = vadd.f32 0.0, %v2625
      %v2627 = vpop.f32.mrf.mxu0
      %v2628 = vadd.f32 0.0, %v2627
      %2629 = vmatmul.bf16.gmra.mxu0 %v2480
      %v2630 = vpop.f32.mrf.mxu0
      %v2631 = vadd.f32 0.0, %v2630
      %v2632 = vpop.f32.mrf.mxu0
      %v2633 = vadd.f32 0.0, %v2632
      %2634 = vmatmul.bf16.gmra.mxu0 %v2483
      %v2635 = vpop.f32.mrf.mxu0
      %v2636 = vadd.f32 0.0, %v2635
      %v2637 = vpop.f32.mrf.mxu0
      %v2638 = vadd.f32 0.0, %v2637
      %2639 = vmatmul.bf16.gmra.mxu0 %v2486
      %v2640 = vpop.f32.mrf.mxu0
      %v2641 = vadd.f32 0.0, %v2640
      %v2642 = vpop.f32.mrf.mxu0
      %v2643 = vadd.f32 0.0, %v2642
      %2644 = vmatmul.bf16.gmra.mxu0 %v2489
      %v2645 = vpop.f32.mrf.mxu0
      %v2646 = vadd.f32 0.0, %v2645
      %v2647 = vpop.f32.mrf.mxu0
      %v2648 = vadd.f32 0.0, %v2647
      %2649 = vmatmul.bf16.gmra.mxu0 %v2492
      %v2650 = vpop.f32.mrf.mxu0
      %v2651 = vadd.f32 0.0, %v2650
      %v2652 = vpop.f32.mrf.mxu0
      %v2653 = vadd.f32 0.0, %v2652
      %2654 = vmatmul.bf16.gmra.mxu0 %v2495
      %v2655 = vpop.f32.mrf.mxu0
      %v2656 = vadd.f32 0.0, %v2655
      %v2657 = vpop.f32.mrf.mxu0
      %v2658 = vadd.f32 0.0, %v2657
      %2659 = vmatmul.bf16.gmra.mxu0 %v2498
      %v2660 = vpop.f32.mrf.mxu0
      %v2661 = vadd.f32 0.0, %v2660
      %v2662 = vpop.f32.mrf.mxu0
      %v2663 = vadd.f32 0.0, %v2662
      %2664 = vmatmul.bf16.gmra.mxu0 %v2501
      %v2665 = vpop.f32.mrf.mxu0
      %v2666 = vadd.f32 0.0, %v2665
      %v2667 = vpop.f32.mrf.mxu0
      %v2668 = vadd.f32 0.0, %v2667
      %2669 = vmatmul.bf16.gmra.mxu0 %v2504
      %v2670 = vpop.f32.mrf.mxu0
      %v2671 = vadd.f32 0.0, %v2670
      %v2672 = vpop.f32.mrf.mxu0
      %v2673 = vadd.f32 0.0, %v2672
      %2674 = vdwg.mxu0
      %v2691 = vunpack.c.l.b16 %v2369
      %v2692 = vunpack.c.l.b16 %v2370
      %v2693 = vunpack.c.l.b16 %v2371
      %v2694 = vunpack.c.l.b16 %v2372
      %v2695 = vunpack.c.l.b16 %v2373
      %v2696 = vunpack.c.l.b16 %v2374
      %v2697 = vunpack.c.l.b16 %v2375
      %v2698 = vunpack.c.l.b16 %v2376
      %v2699 = vunpack.c.l.b16 %v2377
      %v2700 = vunpack.c.l.b16 %v2378
      %v2701 = vunpack.c.l.b16 %v2379
      %v2702 = vunpack.c.l.b16 %v2380
      %v2703 = vunpack.c.l.b16 %v2381
      %v2704 = vunpack.c.l.b16 %v2382
      %v2705 = vunpack.c.l.b16 %v2383
      %v2706 = vunpack.c.l.b16 %v2384
      %v2707 = vpack.c.b16 %v2692, %v2691
      %v2708 = vpack.c.b16 %v2694, %v2693
      %v2709 = vpack.c.b16 %v2696, %v2695
      %v2710 = vpack.c.b16 %v2698, %v2697
      %v2711 = vpack.c.b16 %v2700, %v2699
      %v2712 = vpack.c.b16 %v2702, %v2701
      %v2713 = vpack.c.b16 %v2704, %v2703
      %v2714 = vpack.c.b16 %v2706, %v2705
      %2723 = vmatpush.bf16.msra.mxu0 %v2714
      %2724 = vmatpush.bf16.msra.mxu0 %v2713
      %2725 = vmatpush.bf16.msra.mxu0 %v2712
      %2726 = vmatpush.bf16.msra.mxu0 %v2711
      %2727 = vmatpush.bf16.msra.mxu0 %v2710
      %2728 = vmatpush.bf16.msra.mxu0 %v2709
      %2729 = vmatpush.bf16.msra.mxu0 %v2708
      %2730 = vmatpush.bf16.msra.mxu0 %v2707
      %2731 = vmatmul.bf16.gmra.mxu0 %v2337
      %v2732 = vpop.f32.mrf.mxu0
      %v2733 = vadd.f32 %v2516, %v2732
      %v2734 = vpop.f32.mrf.mxu0
      %v2735 = vadd.f32 %v2518, %v2734
      %2736 = vmatmul.bf16.gmra.mxu0 %v2338
      %v2737 = vpop.f32.mrf.mxu0
      %v2738 = vadd.f32 %v2521, %v2737
      %v2739 = vpop.f32.mrf.mxu0
      %v2740 = vadd.f32 %v2523, %v2739
      %2741 = vmatmul.bf16.gmra.mxu0 %v2339
      %v2742 = vpop.f32.mrf.mxu0
      %v2743 = vadd.f32 %v2526, %v2742
      %v2744 = vpop.f32.mrf.mxu0
      %v2745 = vadd.f32 %v2528, %v2744
      %2746 = vmatmul.bf16.gmra.mxu0 %v2340
      %v2747 = vpop.f32.mrf.mxu0
      %v2748 = vadd.f32 %v2531, %v2747
      %v2749 = vpop.f32.mrf.mxu0
      %v2750 = vadd.f32 %v2533, %v2749
      %2751 = vmatmul.bf16.gmra.mxu0 %v2341
      %v2752 = vpop.f32.mrf.mxu0
      %v2753 = vadd.f32 %v2536, %v2752
      %v2754 = vpop.f32.mrf.mxu0
      %v2755 = vadd.f32 %v2538, %v2754
      %2756 = vmatmul.bf16.gmra.mxu0 %v2342
      %v2757 = vpop.f32.mrf.mxu0
      %v2758 = vadd.f32 %v2541, %v2757
      %v2759 = vpop.f32.mrf.mxu0
      %v2760 = vadd.f32 %v2543, %v2759
      %2761 = vmatmul.bf16.gmra.mxu0 %v2343
      %v2762 = vpop.f32.mrf.mxu0
      %v2763 = vadd.f32 %v2546, %v2762
      %v2764 = vpop.f32.mrf.mxu0
      %v2765 = vadd.f32 %v2548, %v2764
      %2766 = vmatmul.bf16.gmra.mxu0 %v2344
      %v2767 = vpop.f32.mrf.mxu0
      %v2768 = vadd.f32 %v2551, %v2767
      %v2769 = vpop.f32.mrf.mxu0
      %v2770 = vadd.f32 %v2553, %v2769
      %2771 = vmatmul.bf16.gmra.mxu0 %v2345
      %v2772 = vpop.f32.mrf.mxu0
      %v2773 = vadd.f32 %v2556, %v2772
      %v2774 = vpop.f32.mrf.mxu0
      %v2775 = vadd.f32 %v2558, %v2774
      %2776 = vmatmul.bf16.gmra.mxu0 %v2346
      %v2777 = vpop.f32.mrf.mxu0
      %v2778 = vadd.f32 %v2561, %v2777
      %v2779 = vpop.f32.mrf.mxu0
      %v2780 = vadd.f32 %v2563, %v2779
      %2781 = vmatmul.bf16.gmra.mxu0 %v2347
      %v2782 = vpop.f32.mrf.mxu0
      %v2783 = vadd.f32 %v2566, %v2782
      %v2784 = vpop.f32.mrf.mxu0
      %v2785 = vadd.f32 %v2568, %v2784
      %2786 = vmatmul.bf16.gmra.mxu0 %v2348
      %v2787 = vpop.f32.mrf.mxu0
      %v2788 = vadd.f32 %v2571, %v2787
      %v2789 = vpop.f32.mrf.mxu0
      %v2790 = vadd.f32 %v2573, %v2789
      %2791 = vmatmul.bf16.gmra.mxu0 %v2349
      %v2792 = vpop.f32.mrf.mxu0
      %v2793 = vadd.f32 %v2576, %v2792
      %v2794 = vpop.f32.mrf.mxu0
      %v2795 = vadd.f32 %v2578, %v2794
      %2796 = vmatmul.bf16.gmra.mxu0 %v2350
      %v2797 = vpop.f32.mrf.mxu0
      %v2798 = vadd.f32 %v2581, %v2797
      %v2799 = vpop.f32.mrf.mxu0
      %v2800 = vadd.f32 %v2583, %v2799
      %2801 = vmatmul.bf16.gmra.mxu0 %v2351
      %v2802 = vpop.f32.mrf.mxu0
      %v2803 = vadd.f32 %v2586, %v2802
      %v2804 = vpop.f32.mrf.mxu0
      %v2805 = vadd.f32 %v2588, %v2804
      %2806 = vmatmul.bf16.gmra.mxu0 %v2352
      %v2807 = vpop.f32.mrf.mxu0
      %v2808 = vadd.f32 %v2591, %v2807
      %v2809 = vpop.f32.mrf.mxu0
      %v2810 = vadd.f32 %v2593, %v2809
      %2811 = vmatmul.bf16.gmra.mxu0 %v2353
      %v2812 = vpop.f32.mrf.mxu0
      %v2813 = vadd.f32 %v2596, %v2812
      %v2814 = vpop.f32.mrf.mxu0
      %v2815 = vadd.f32 %v2598, %v2814
      %2816 = vmatmul.bf16.gmra.mxu0 %v2354
      %v2817 = vpop.f32.mrf.mxu0
      %v2818 = vadd.f32 %v2601, %v2817
      %v2819 = vpop.f32.mrf.mxu0
      %v2820 = vadd.f32 %v2603, %v2819
      %2821 = vmatmul.bf16.gmra.mxu0 %v2355
      %v2822 = vpop.f32.mrf.mxu0
      %v2823 = vadd.f32 %v2606, %v2822
      %v2824 = vpop.f32.mrf.mxu0
      %v2825 = vadd.f32 %v2608, %v2824
      %2826 = vmatmul.bf16.gmra.mxu0 %v2356
      %v2827 = vpop.f32.mrf.mxu0
      %v2828 = vadd.f32 %v2611, %v2827
      %v2829 = vpop.f32.mrf.mxu0
      %v2830 = vadd.f32 %v2613, %v2829
      %2831 = vmatmul.bf16.gmra.mxu0 %v2357
      %v2832 = vpop.f32.mrf.mxu0
      %v2833 = vadd.f32 %v2616, %v2832
      %v2834 = vpop.f32.mrf.mxu0
      %v2835 = vadd.f32 %v2618, %v2834
      %2836 = vmatmul.bf16.gmra.mxu0 %v2358
      %v2837 = vpop.f32.mrf.mxu0
      %v2838 = vadd.f32 %v2621, %v2837
      %v2839 = vpop.f32.mrf.mxu0
      %v2840 = vadd.f32 %v2623, %v2839
      %2841 = vmatmul.bf16.gmra.mxu0 %v2359
      %v2842 = vpop.f32.mrf.mxu0
      %v2843 = vadd.f32 %v2626, %v2842
      %v2844 = vpop.f32.mrf.mxu0
      %v2845 = vadd.f32 %v2628, %v2844
      %2846 = vmatmul.bf16.gmra.mxu0 %v2360
      %v2847 = vpop.f32.mrf.mxu0
      %v2848 = vadd.f32 %v2631, %v2847
      %v2849 = vpop.f32.mrf.mxu0
      %v2850 = vadd.f32 %v2633, %v2849
      %2851 = vmatmul.bf16.gmra.mxu0 %v2361
      %v2852 = vpop.f32.mrf.mxu0
      %v2853 = vadd.f32 %v2636, %v2852
      %v2854 = vpop.f32.mrf.mxu0
      %v2855 = vadd.f32 %v2638, %v2854
      %2856 = vmatmul.bf16.gmra.mxu0 %v2362
      %v2857 = vpop.f32.mrf.mxu0
      %v2858 = vadd.f32 %v2641, %v2857
      %v2859 = vpop.f32.mrf.mxu0
      %v2860 = vadd.f32 %v2643, %v2859
      %2861 = vmatmul.bf16.gmra.mxu0 %v2363
      %v2862 = vpop.f32.mrf.mxu0
      %v2863 = vadd.f32 %v2646, %v2862
      %v2864 = vpop.f32.mrf.mxu0
      %v2865 = vadd.f32 %v2648, %v2864
      %2866 = vmatmul.bf16.gmra.mxu0 %v2364
      %v2867 = vpop.f32.mrf.mxu0
      %v2868 = vadd.f32 %v2651, %v2867
      %v2869 = vpop.f32.mrf.mxu0
      %v2870 = vadd.f32 %v2653, %v2869
      %2871 = vmatmul.bf16.gmra.mxu0 %v2365
      %v2872 = vpop.f32.mrf.mxu0
      %v2873 = vadd.f32 %v2656, %v2872
      %v2874 = vpop.f32.mrf.mxu0
      %v2875 = vadd.f32 %v2658, %v2874
      %2876 = vmatmul.bf16.gmra.mxu0 %v2366
      %v2877 = vpop.f32.mrf.mxu0
      %v2878 = vadd.f32 %v2661, %v2877
      %v2879 = vpop.f32.mrf.mxu0
      %v2880 = vadd.f32 %v2663, %v2879
      %2881 = vmatmul.bf16.gmra.mxu0 %v2367
      %v2882 = vpop.f32.mrf.mxu0
      %v2883 = vadd.f32 %v2666, %v2882
      %v2884 = vpop.f32.mrf.mxu0
      %v2885 = vadd.f32 %v2668, %v2884
      %2886 = vmatmul.bf16.gmra.mxu0 %v2368
      %v2887 = vpop.f32.mrf.mxu0
      %v2888 = vadd.f32 %v2671, %v2887
      %v2889 = vpop.f32.mrf.mxu0
      %v2890 = vadd.f32 %v2673, %v2889
      %2891 = vdwg.mxu0
      %v2892 = vld [vmem:[%s3 + $0x5] sm:$0x1]
      %v2893 = vperm.slane %v2892, 0
      %v2894 = vadd.f32 %v2733, %v2893
      %v2895 = vadd.f32 %v2735, %v2893
      %v2896 = vadd.f32 %v2738, %v2893
      %v2897 = vadd.f32 %v2740, %v2893
      %v2898 = vadd.f32 %v2743, %v2893
      %v2899 = vadd.f32 %v2745, %v2893
      %v2900 = vadd.f32 %v2748, %v2893
      %v2901 = vadd.f32 %v2750, %v2893
      %v2902 = vadd.f32 %v2753, %v2893
      %v2903 = vadd.f32 %v2755, %v2893
      %v2904 = vadd.f32 %v2758, %v2893
      %v2905 = vadd.f32 %v2760, %v2893
      %v2906 = vadd.f32 %v2763, %v2893
      %v2907 = vadd.f32 %v2765, %v2893
      %v2908 = vadd.f32 %v2768, %v2893
      %v2909 = vadd.f32 %v2770, %v2893
      %v2910 = vadd.f32 %v2773, %v2893
      %v2911 = vadd.f32 %v2775, %v2893
      %v2912 = vadd.f32 %v2778, %v2893
      %v2913 = vadd.f32 %v2780, %v2893
      %v2914 = vadd.f32 %v2783, %v2893
      %v2915 = vadd.f32 %v2785, %v2893
      %v2916 = vadd.f32 %v2788, %v2893
      %v2917 = vadd.f32 %v2790, %v2893
      %v2918 = vadd.f32 %v2793, %v2893
      %v2919 = vadd.f32 %v2795, %v2893
      %v2920 = vadd.f32 %v2798, %v2893
      %v2921 = vadd.f32 %v2800, %v2893
      %v2922 = vadd.f32 %v2803, %v2893
      %v2923 = vadd.f32 %v2805, %v2893
      %v2924 = vadd.f32 %v2808, %v2893
      %v2925 = vadd.f32 %v2810, %v2893
      %v2926 = vadd.f32 %v2813, %v2893
      %v2927 = vadd.f32 %v2815, %v2893
      %v2928 = vadd.f32 %v2818, %v2893
      %v2929 = vadd.f32 %v2820, %v2893
      %v2930 = vadd.f32 %v2823, %v2893
      %v2931 = vadd.f32 %v2825, %v2893
      %v2932 = vadd.f32 %v2828, %v2893
      %v2933 = vadd.f32 %v2830, %v2893
      %v2934 = vadd.f32 %v2833, %v2893
      %v2935 = vadd.f32 %v2835, %v2893
      %v2936 = vadd.f32 %v2838, %v2893
      %v2937 = vadd.f32 %v2840, %v2893
      %v2938 = vadd.f32 %v2843, %v2893
      %v2939 = vadd.f32 %v2845, %v2893
      %v2940 = vadd.f32 %v2848, %v2893
      %v2941 = vadd.f32 %v2850, %v2893
      %v2942 = vadd.f32 %v2853, %v2893
      %v2943 = vadd.f32 %v2855, %v2893
      %v2944 = vadd.f32 %v2858, %v2893
      %v2945 = vadd.f32 %v2860, %v2893
      %v2946 = vadd.f32 %v2863, %v2893
      %v2947 = vadd.f32 %v2865, %v2893
      %v2948 = vadd.f32 %v2868, %v2893
      %v2949 = vadd.f32 %v2870, %v2893
      %v2950 = vadd.f32 %v2873, %v2893
      %v2951 = vadd.f32 %v2875, %v2893
      %v2952 = vadd.f32 %v2878, %v2893
      %v2953 = vadd.f32 %v2880, %v2893
      %v2954 = vadd.f32 %v2883, %v2893
      %v2955 = vadd.f32 %v2885, %v2893
      %v2956 = vadd.f32 %v2888, %v2893
      %v2957 = vadd.f32 %v2890, %v2893
      %v2958 = vmax.f32 %v2894, 0.0
      %v2959 = vmax.f32 %v2895, 0.0
      %v2960 = vmax.f32 %v2896, 0.0
      %v2961 = vmax.f32 %v2897, 0.0
      %v2962 = vmax.f32 %v2898, 0.0
      %v2963 = vmax.f32 %v2899, 0.0
      %v2964 = vmax.f32 %v2900, 0.0
      %v2965 = vmax.f32 %v2901, 0.0
      %v2966 = vmax.f32 %v2902, 0.0
      %v2967 = vmax.f32 %v2903, 0.0
      %v2968 = vmax.f32 %v2904, 0.0
      %v2969 = vmax.f32 %v2905, 0.0
      %v2970 = vmax.f32 %v2906, 0.0
      %v2971 = vmax.f32 %v2907, 0.0
      %v2972 = vmax.f32 %v2908, 0.0
      %v2973 = vmax.f32 %v2909, 0.0
      %v2974 = vmax.f32 %v2910, 0.0
      %v2975 = vmax.f32 %v2911, 0.0
      %v2976 = vmax.f32 %v2912, 0.0
      %v2977 = vmax.f32 %v2913, 0.0
      %v2978 = vmax.f32 %v2914, 0.0
      %v2979 = vmax.f32 %v2915, 0.0
      %v2980 = vmax.f32 %v2916, 0.0
      %v2981 = vmax.f32 %v2917, 0.0
      %v2982 = vmax.f32 %v2918, 0.0
      %v2983 = vmax.f32 %v2919, 0.0
      %v2984 = vmax.f32 %v2920, 0.0
      %v2985 = vmax.f32 %v2921, 0.0
      %v2986 = vmax.f32 %v2922, 0.0
      %v2987 = vmax.f32 %v2923, 0.0
      %v2988 = vmax.f32 %v2924, 0.0
      %v2989 = vmax.f32 %v2925, 0.0
      %v2990 = vmax.f32 %v2926, 0.0
      %v2991 = vmax.f32 %v2927, 0.0
      %v2992 = vmax.f32 %v2928, 0.0
      %v2993 = vmax.f32 %v2929, 0.0
      %v2994 = vmax.f32 %v2930, 0.0
      %v2995 = vmax.f32 %v2931, 0.0
      %v2996 = vmax.f32 %v2932, 0.0
      %v2997 = vmax.f32 %v2933, 0.0
      %v2998 = vmax.f32 %v2934, 0.0
      %v2999 = vmax.f32 %v2935, 0.0
      %v3000 = vmax.f32 %v2936, 0.0
      %v3001 = vmax.f32 %v2937, 0.0
      %v3002 = vmax.f32 %v2938, 0.0
      %v3003 = vmax.f32 %v2939, 0.0
      %v3004 = vmax.f32 %v2940, 0.0
      %v3005 = vmax.f32 %v2941, 0.0
      %v3006 = vmax.f32 %v2942, 0.0
      %v3007 = vmax.f32 %v2943, 0.0
      %v3008 = vmax.f32 %v2944, 0.0
      %v3009 = vmax.f32 %v2945, 0.0
      %v3010 = vmax.f32 %v2946, 0.0
      %v3011 = vmax.f32 %v2947, 0.0
      %v3012 = vmax.f32 %v2948, 0.0
      %v3013 = vmax.f32 %v2949, 0.0
      %v3014 = vmax.f32 %v2950, 0.0
      %v3015 = vmax.f32 %v2951, 0.0
      %v3016 = vmax.f32 %v2952, 0.0
      %v3017 = vmax.f32 %v2953, 0.0
      %v3018 = vmax.f32 %v2954, 0.0
      %v3019 = vmax.f32 %v2955, 0.0
      %v3020 = vmax.f32 %v2956, 0.0
      %v3021 = vmax.f32 %v2957, 0.0
      %v3022 = vpack.c.bf16 %v2959, %v2958
      %v3023 = vpack.c.bf16 %v2961, %v2960
      %v3024 = vpack.c.bf16 %v2963, %v2962
      %v3025 = vpack.c.bf16 %v2965, %v2964
      %v3026 = vpack.c.bf16 %v2967, %v2966
      %v3027 = vpack.c.bf16 %v2969, %v2968
      %v3028 = vpack.c.bf16 %v2971, %v2970
      %v3029 = vpack.c.bf16 %v2973, %v2972
      %v3030 = vpack.c.bf16 %v2975, %v2974
      %v3031 = vpack.c.bf16 %v2977, %v2976
      %v3032 = vpack.c.bf16 %v2979, %v2978
      %v3033 = vpack.c.bf16 %v2981, %v2980
      %v3034 = vpack.c.bf16 %v2983, %v2982
      %v3035 = vpack.c.bf16 %v2985, %v2984
      %v3036 = vpack.c.bf16 %v2987, %v2986
      %v3037 = vpack.c.bf16 %v2989, %v2988
      %v3038 = vpack.c.bf16 %v2991, %v2990
      %v3039 = vpack.c.bf16 %v2993, %v2992
      %v3040 = vpack.c.bf16 %v2995, %v2994
      %v3041 = vpack.c.bf16 %v2997, %v2996
      %v3042 = vpack.c.bf16 %v2999, %v2998
      %v3043 = vpack.c.bf16 %v3001, %v3000
      %v3044 = vpack.c.bf16 %v3003, %v3002
      %v3045 = vpack.c.bf16 %v3005, %v3004
      %v3046 = vpack.c.bf16 %v3007, %v3006
      %v3047 = vpack.c.bf16 %v3009, %v3008
      %v3048 = vpack.c.bf16 %v3011, %v3010
      %v3049 = vpack.c.bf16 %v3013, %v3012
      %v3050 = vpack.c.bf16 %v3015, %v3014
      %v3051 = vpack.c.bf16 %v3017, %v3016
      %v3052 = vpack.c.bf16 %v3019, %v3018
      %v3053 = vpack.c.bf16 %v3021, %v3020
      %v3054 = vld [vmem:[%s2 + $0x1b8] sm:$0xf]
      %v3055 = vld [vmem:[%s2 + $0x1bc] sm:$0xf]
      %v3056 = vld [vmem:[%s2 + $0x1c0] sm:$0xf]
      %v3057 = vld [vmem:[%s2 + $0x1c4] sm:$0xf]
      %v3058 = vld [vmem:[%s2 + $0x1c8] sm:$0xf]
      %v3059 = vld [vmem:[%s2 + $0x1cc] sm:$0xf]
      %v3060 = vld [vmem:[%s2 + $0x1d0] sm:$0xf]
      %v3061 = vld [vmem:[%s2 + $0x1d4] sm:$0xf]
      %v3062 = vld [vmem:[%s2 + $0x1d8] sm:$0xf]
      %v3063 = vld [vmem:[%s2 + $0x1dc] sm:$0xf]
      %v3064 = vld [vmem:[%s2 + $0x1e0] sm:$0xf]
      %v3065 = vld [vmem:[%s2 + $0x1e4] sm:$0xf]
      %v3066 = vld [vmem:[%s2 + $0x1e8] sm:$0xf]
      %v3067 = vld [vmem:[%s2 + $0x1ec] sm:$0xf]
      %v3068 = vld [vmem:[%s2 + $0x1f0] sm:$0xf]
      %v3069 = vld [vmem:[%s2 + $0x1f4] sm:$0xf]
      %v3070 = vld [vmem:[%s2 + $0x1f8] sm:$0xf]
      %v3071 = vld [vmem:[%s2 + $0x1fc] sm:$0xf]
      %v3072 = vld [vmem:[%s2 + $0x200] sm:$0xf]
      %v3073 = vld [vmem:[%s2 + $0x204] sm:$0xf]
      %v3074 = vld [vmem:[%s2 + $0x208] sm:$0xf]
      %v3075 = vld [vmem:[%s2 + $0x20c] sm:$0xf]
      %v3076 = vld [vmem:[%s2 + $0x210] sm:$0xf]
      %v3077 = vld [vmem:[%s2 + $0x214] sm:$0xf]
      %v3078 = vld [vmem:[%s2 + $0x218] sm:$0xf]
      %v3079 = vld [vmem:[%s2 + $0x21c] sm:$0xf]
      %v3080 = vld [vmem:[%s2 + $0x220] sm:$0xf]
      %v3081 = vld [vmem:[%s2 + $0x224] sm:$0xf]
      %v3082 = vld [vmem:[%s2 + $0x228] sm:$0xf]
      %v3083 = vld [vmem:[%s2 + $0x22c] sm:$0xf]
      %v3084 = vld [vmem:[%s2 + $0x230] sm:$0xf]
      %v3085 = vld [vmem:[%s2 + $0x234] sm:$0xf]
      %v3102 = vunpack.c.l.b16 %v3070
      %v3103 = vunpack.c.l.b16 %v3071
      %v3104 = vunpack.c.l.b16 %v3072
      %v3105 = vunpack.c.l.b16 %v3073
      %v3106 = vunpack.c.l.b16 %v3074
      %v3107 = vunpack.c.l.b16 %v3075
      %v3108 = vunpack.c.l.b16 %v3076
      %v3109 = vunpack.c.l.b16 %v3077
      %v3110 = vunpack.c.l.b16 %v3078
      %v3111 = vunpack.c.l.b16 %v3079
      %v3112 = vunpack.c.l.b16 %v3080
      %v3113 = vunpack.c.l.b16 %v3081
      %v3114 = vunpack.c.l.b16 %v3082
      %v3115 = vunpack.c.l.b16 %v3083
      %v3116 = vunpack.c.l.b16 %v3084
      %v3117 = vunpack.c.l.b16 %v3085
      %v3118 = vpack.c.b16 %v3103, %v3102
      %v3119 = vpack.c.b16 %v3105, %v3104
      %v3120 = vpack.c.b16 %v3107, %v3106
      %v3121 = vpack.c.b16 %v3109, %v3108
      %v3122 = vpack.c.b16 %v3111, %v3110
      %v3123 = vpack.c.b16 %v3113, %v3112
      %v3124 = vpack.c.b16 %v3115, %v3114
      %v3125 = vpack.c.b16 %v3117, %v3116
      %3134 = vmatpush.bf16.msra.mxu0 %v3125
      %3135 = vmatpush.bf16.msra.mxu0 %v3124
      %3136 = vmatpush.bf16.msra.mxu0 %v3123
      %3137 = vmatpush.bf16.msra.mxu0 %v3122
      %3138 = vmatpush.bf16.msra.mxu0 %v3121
      %3139 = vmatpush.bf16.msra.mxu0 %v3120
      %3140 = vmatpush.bf16.msra.mxu0 %v3119
      %3141 = vmatpush.bf16.msra.mxu0 %v3118
      %3142 = vmatmul.bf16.gmra.mxu0 %v2070
      %v3143 = vpop.f32.mrf.mxu0
      %v3144 = vadd.f32 0.0, %v3143
      %v3145 = vpop.f32.mrf.mxu0
      %v3146 = vadd.f32 0.0, %v3145
      %3147 = vmatmul.bf16.gmra.mxu0 %v2071
      %v3148 = vpop.f32.mrf.mxu0
      %v3149 = vadd.f32 0.0, %v3148
      %v3150 = vpop.f32.mrf.mxu0
      %v3151 = vadd.f32 0.0, %v3150
      %3152 = vmatmul.bf16.gmra.mxu0 %v2072
      %v3153 = vpop.f32.mrf.mxu0
      %v3154 = vadd.f32 0.0, %v3153
      %v3155 = vpop.f32.mrf.mxu0
      %v3156 = vadd.f32 0.0, %v3155
      %3157 = vmatmul.bf16.gmra.mxu0 %v2073
      %v3158 = vpop.f32.mrf.mxu0
      %v3159 = vadd.f32 0.0, %v3158
      %v3160 = vpop.f32.mrf.mxu0
      %v3161 = vadd.f32 0.0, %v3160
      %3162 = vmatmul.bf16.gmra.mxu0 %v2074
      %v3163 = vpop.f32.mrf.mxu0
      %v3164 = vadd.f32 0.0, %v3163
      %v3165 = vpop.f32.mrf.mxu0
      %v3166 = vadd.f32 0.0, %v3165
      %3167 = vmatmul.bf16.gmra.mxu0 %v2075
      %v3168 = vpop.f32.mrf.mxu0
      %v3169 = vadd.f32 0.0, %v3168
      %v3170 = vpop.f32.mrf.mxu0
      %v3171 = vadd.f32 0.0, %v3170
      %3172 = vmatmul.bf16.gmra.mxu0 %v2076
      %v3173 = vpop.f32.mrf.mxu0
      %v3174 = vadd.f32 0.0, %v3173
      %v3175 = vpop.f32.mrf.mxu0
      %v3176 = vadd.f32 0.0, %v3175
      %3177 = vmatmul.bf16.gmra.mxu0 %v2077
      %v3178 = vpop.f32.mrf.mxu0
      %v3179 = vadd.f32 0.0, %v3178
      %v3180 = vpop.f32.mrf.mxu0
      %v3181 = vadd.f32 0.0, %v3180
      %3182 = vmatmul.bf16.gmra.mxu0 %v2078
      %v3183 = vpop.f32.mrf.mxu0
      %v3184 = vadd.f32 0.0, %v3183
      %v3185 = vpop.f32.mrf.mxu0
      %v3186 = vadd.f32 0.0, %v3185
      %3187 = vmatmul.bf16.gmra.mxu0 %v2079
      %v3188 = vpop.f32.mrf.mxu0
      %v3189 = vadd.f32 0.0, %v3188
      %v3190 = vpop.f32.mrf.mxu0
      %v3191 = vadd.f32 0.0, %v3190
      %3192 = vmatmul.bf16.gmra.mxu0 %v2080
      %v3193 = vpop.f32.mrf.mxu0
      %v3194 = vadd.f32 0.0, %v3193
      %v3195 = vpop.f32.mrf.mxu0
      %v3196 = vadd.f32 0.0, %v3195
      %3197 = vmatmul.bf16.gmra.mxu0 %v2081
      %v3198 = vpop.f32.mrf.mxu0
      %v3199 = vadd.f32 0.0, %v3198
      %v3200 = vpop.f32.mrf.mxu0
      %v3201 = vadd.f32 0.0, %v3200
      %3202 = vmatmul.bf16.gmra.mxu0 %v2082
      %v3203 = vpop.f32.mrf.mxu0
      %v3204 = vadd.f32 0.0, %v3203
      %v3205 = vpop.f32.mrf.mxu0
      %v3206 = vadd.f32 0.0, %v3205
      %3207 = vmatmul.bf16.gmra.mxu0 %v2083
      %v3208 = vpop.f32.mrf.mxu0
      %v3209 = vadd.f32 0.0, %v3208
      %v3210 = vpop.f32.mrf.mxu0
      %v3211 = vadd.f32 0.0, %v3210
      %3212 = vmatmul.bf16.gmra.mxu0 %v2084
      %v3213 = vpop.f32.mrf.mxu0
      %v3214 = vadd.f32 0.0, %v3213
      %v3215 = vpop.f32.mrf.mxu0
      %v3216 = vadd.f32 0.0, %v3215
      %3217 = vmatmul.bf16.gmra.mxu0 %v2085
      %v3218 = vpop.f32.mrf.mxu0
      %v3219 = vadd.f32 0.0, %v3218
      %v3220 = vpop.f32.mrf.mxu0
      %v3221 = vadd.f32 0.0, %v3220
      %3222 = vmatmul.bf16.gmra.mxu0 %v2086
      %v3223 = vpop.f32.mrf.mxu0
      %v3224 = vadd.f32 0.0, %v3223
      %v3225 = vpop.f32.mrf.mxu0
      %v3226 = vadd.f32 0.0, %v3225
      %3227 = vmatmul.bf16.gmra.mxu0 %v2087
      %v3228 = vpop.f32.mrf.mxu0
      %v3229 = vadd.f32 0.0, %v3228
      %v3230 = vpop.f32.mrf.mxu0
      %v3231 = vadd.f32 0.0, %v3230
      %3232 = vmatmul.bf16.gmra.mxu0 %v2088
      %v3233 = vpop.f32.mrf.mxu0
      %v3234 = vadd.f32 0.0, %v3233
      %v3235 = vpop.f32.mrf.mxu0
      %v3236 = vadd.f32 0.0, %v3235
      %3237 = vmatmul.bf16.gmra.mxu0 %v2089
      %v3238 = vpop.f32.mrf.mxu0
      %v3239 = vadd.f32 0.0, %v3238
      %v3240 = vpop.f32.mrf.mxu0
      %v3241 = vadd.f32 0.0, %v3240
      %3242 = vmatmul.bf16.gmra.mxu0 %v2090
      %v3243 = vpop.f32.mrf.mxu0
      %v3244 = vadd.f32 0.0, %v3243
      %v3245 = vpop.f32.mrf.mxu0
      %v3246 = vadd.f32 0.0, %v3245
      %3247 = vmatmul.bf16.gmra.mxu0 %v2091
      %v3248 = vpop.f32.mrf.mxu0
      %v3249 = vadd.f32 0.0, %v3248
      %v3250 = vpop.f32.mrf.mxu0
      %v3251 = vadd.f32 0.0, %v3250
      %3252 = vmatmul.bf16.gmra.mxu0 %v2092
      %v3253 = vpop.f32.mrf.mxu0
      %v3254 = vadd.f32 0.0, %v3253
      %v3255 = vpop.f32.mrf.mxu0
      %v3256 = vadd.f32 0.0, %v3255
      %3257 = vmatmul.bf16.gmra.mxu0 %v2093
      %v3258 = vpop.f32.mrf.mxu0
      %v3259 = vadd.f32 0.0, %v3258
      %v3260 = vpop.f32.mrf.mxu0
      %v3261 = vadd.f32 0.0, %v3260
      %3262 = vmatmul.bf16.gmra.mxu0 %v2094
      %v3263 = vpop.f32.mrf.mxu0
      %v3264 = vadd.f32 0.0, %v3263
      %v3265 = vpop.f32.mrf.mxu0
      %v3266 = vadd.f32 0.0, %v3265
      %3267 = vmatmul.bf16.gmra.mxu0 %v2095
      %v3268 = vpop.f32.mrf.mxu0
      %v3269 = vadd.f32 0.0, %v3268
      %v3270 = vpop.f32.mrf.mxu0
      %v3271 = vadd.f32 0.0, %v3270
      %3272 = vmatmul.bf16.gmra.mxu0 %v2096
      %v3273 = vpop.f32.mrf.mxu0
      %v3274 = vadd.f32 0.0, %v3273
      %v3275 = vpop.f32.mrf.mxu0
      %v3276 = vadd.f32 0.0, %v3275
      %3277 = vmatmul.bf16.gmra.mxu0 %v2097
      %v3278 = vpop.f32.mrf.mxu0
      %v3279 = vadd.f32 0.0, %v3278
      %v3280 = vpop.f32.mrf.mxu0
      %v3281 = vadd.f32 0.0, %v3280
      %3282 = vmatmul.bf16.gmra.mxu0 %v2098
      %v3283 = vpop.f32.mrf.mxu0
      %v3284 = vadd.f32 0.0, %v3283
      %v3285 = vpop.f32.mrf.mxu0
      %v3286 = vadd.f32 0.0, %v3285
      %3287 = vmatmul.bf16.gmra.mxu0 %v2099
      %v3288 = vpop.f32.mrf.mxu0
      %v3289 = vadd.f32 0.0, %v3288
      %v3290 = vpop.f32.mrf.mxu0
      %v3291 = vadd.f32 0.0, %v3290
      %3292 = vmatmul.bf16.gmra.mxu0 %v2100
      %v3293 = vpop.f32.mrf.mxu0
      %v3294 = vadd.f32 0.0, %v3293
      %v3295 = vpop.f32.mrf.mxu0
      %v3296 = vadd.f32 0.0, %v3295
      %3297 = vmatmul.bf16.gmra.mxu0 %v2101
      %v3298 = vpop.f32.mrf.mxu0
      %v3299 = vadd.f32 0.0, %v3298
      %v3300 = vpop.f32.mrf.mxu0
      %v3301 = vadd.f32 0.0, %v3300
      %3302 = vdwg.mxu0
      %v3319 = vunpack.c.l.b16 %v3054
      %v3320 = vunpack.c.l.b16 %v3055
      %v3321 = vunpack.c.l.b16 %v3056
      %v3322 = vunpack.c.l.b16 %v3057
      %v3323 = vunpack.c.l.b16 %v3058
      %v3324 = vunpack.c.l.b16 %v3059
      %v3325 = vunpack.c.l.b16 %v3060
      %v3326 = vunpack.c.l.b16 %v3061
      %v3327 = vunpack.c.l.b16 %v3062
      %v3328 = vunpack.c.l.b16 %v3063
      %v3329 = vunpack.c.l.b16 %v3064
      %v3330 = vunpack.c.l.b16 %v3065
      %v3331 = vunpack.c.l.b16 %v3066
      %v3332 = vunpack.c.l.b16 %v3067
      %v3333 = vunpack.c.l.b16 %v3068
      %v3334 = vunpack.c.l.b16 %v3069
      %v3335 = vpack.c.b16 %v3320, %v3319
      %v3336 = vpack.c.b16 %v3322, %v3321
      %v3337 = vpack.c.b16 %v3324, %v3323
      %v3338 = vpack.c.b16 %v3326, %v3325
      %v3339 = vpack.c.b16 %v3328, %v3327
      %v3340 = vpack.c.b16 %v3330, %v3329
      %v3341 = vpack.c.b16 %v3332, %v3331
      %v3342 = vpack.c.b16 %v3334, %v3333
      %3351 = vmatpush.bf16.msra.mxu0 %v3342
      %3352 = vmatpush.bf16.msra.mxu0 %v3341
      %3353 = vmatpush.bf16.msra.mxu0 %v3340
      %3354 = vmatpush.bf16.msra.mxu0 %v3339
      %3355 = vmatpush.bf16.msra.mxu0 %v3338
      %3356 = vmatpush.bf16.msra.mxu0 %v3337
      %3357 = vmatpush.bf16.msra.mxu0 %v3336
      %3358 = vmatpush.bf16.msra.mxu0 %v3335
      %3359 = vmatmul.bf16.gmra.mxu0 %v3022
      %v3360 = vpop.f32.mrf.mxu0
      %v3361 = vadd.f32 %v3144, %v3360
      %v3362 = vpop.f32.mrf.mxu0
      %v3363 = vadd.f32 %v3146, %v3362
      %3364 = vmatmul.bf16.gmra.mxu0 %v3023
      %v3365 = vpop.f32.mrf.mxu0
      %v3366 = vadd.f32 %v3149, %v3365
      %v3367 = vpop.f32.mrf.mxu0
      %v3368 = vadd.f32 %v3151, %v3367
      %3369 = vmatmul.bf16.gmra.mxu0 %v3024
      %v3370 = vpop.f32.mrf.mxu0
      %v3371 = vadd.f32 %v3154, %v3370
      %v3372 = vpop.f32.mrf.mxu0
      %v3373 = vadd.f32 %v3156, %v3372
      %3374 = vmatmul.bf16.gmra.mxu0 %v3025
      %v3375 = vpop.f32.mrf.mxu0
      %v3376 = vadd.f32 %v3159, %v3375
      %v3377 = vpop.f32.mrf.mxu0
      %v3378 = vadd.f32 %v3161, %v3377
      %3379 = vmatmul.bf16.gmra.mxu0 %v3026
      %v3380 = vpop.f32.mrf.mxu0
      %v3381 = vadd.f32 %v3164, %v3380
      %v3382 = vpop.f32.mrf.mxu0
      %v3383 = vadd.f32 %v3166, %v3382
      %3384 = vmatmul.bf16.gmra.mxu0 %v3027
      %v3385 = vpop.f32.mrf.mxu0
      %v3386 = vadd.f32 %v3169, %v3385
      %v3387 = vpop.f32.mrf.mxu0
      %v3388 = vadd.f32 %v3171, %v3387
      %3389 = vmatmul.bf16.gmra.mxu0 %v3028
      %v3390 = vpop.f32.mrf.mxu0
      %v3391 = vadd.f32 %v3174, %v3390
      %v3392 = vpop.f32.mrf.mxu0
      %v3393 = vadd.f32 %v3176, %v3392
      %3394 = vmatmul.bf16.gmra.mxu0 %v3029
      %v3395 = vpop.f32.mrf.mxu0
      %v3396 = vadd.f32 %v3179, %v3395
      %v3397 = vpop.f32.mrf.mxu0
      %v3398 = vadd.f32 %v3181, %v3397
      %3399 = vmatmul.bf16.gmra.mxu0 %v3030
      %v3400 = vpop.f32.mrf.mxu0
      %v3401 = vadd.f32 %v3184, %v3400
      %v3402 = vpop.f32.mrf.mxu0
      %v3403 = vadd.f32 %v3186, %v3402
      %3404 = vmatmul.bf16.gmra.mxu0 %v3031
      %v3405 = vpop.f32.mrf.mxu0
      %v3406 = vadd.f32 %v3189, %v3405
      %v3407 = vpop.f32.mrf.mxu0
      %v3408 = vadd.f32 %v3191, %v3407
      %3409 = vmatmul.bf16.gmra.mxu0 %v3032
      %v3410 = vpop.f32.mrf.mxu0
      %v3411 = vadd.f32 %v3194, %v3410
      %v3412 = vpop.f32.mrf.mxu0
      %v3413 = vadd.f32 %v3196, %v3412
      %3414 = vmatmul.bf16.gmra.mxu0 %v3033
      %v3415 = vpop.f32.mrf.mxu0
      %v3416 = vadd.f32 %v3199, %v3415
      %v3417 = vpop.f32.mrf.mxu0
      %v3418 = vadd.f32 %v3201, %v3417
      %3419 = vmatmul.bf16.gmra.mxu0 %v3034
      %v3420 = vpop.f32.mrf.mxu0
      %v3421 = vadd.f32 %v3204, %v3420
      %v3422 = vpop.f32.mrf.mxu0
      %v3423 = vadd.f32 %v3206, %v3422
      %3424 = vmatmul.bf16.gmra.mxu0 %v3035
      %v3425 = vpop.f32.mrf.mxu0
      %v3426 = vadd.f32 %v3209, %v3425
      %v3427 = vpop.f32.mrf.mxu0
      %v3428 = vadd.f32 %v3211, %v3427
      %3429 = vmatmul.bf16.gmra.mxu0 %v3036
      %v3430 = vpop.f32.mrf.mxu0
      %v3431 = vadd.f32 %v3214, %v3430
      %v3432 = vpop.f32.mrf.mxu0
      %v3433 = vadd.f32 %v3216, %v3432
      %3434 = vmatmul.bf16.gmra.mxu0 %v3037
      %v3435 = vpop.f32.mrf.mxu0
      %v3436 = vadd.f32 %v3219, %v3435
      %v3437 = vpop.f32.mrf.mxu0
      %v3438 = vadd.f32 %v3221, %v3437
      %3439 = vmatmul.bf16.gmra.mxu0 %v3038
      %v3440 = vpop.f32.mrf.mxu0
      %v3441 = vadd.f32 %v3224, %v3440
      %v3442 = vpop.f32.mrf.mxu0
      %v3443 = vadd.f32 %v3226, %v3442
      %3444 = vmatmul.bf16.gmra.mxu0 %v3039
      %v3445 = vpop.f32.mrf.mxu0
      %v3446 = vadd.f32 %v3229, %v3445
      %v3447 = vpop.f32.mrf.mxu0
      %v3448 = vadd.f32 %v3231, %v3447
      %3449 = vmatmul.bf16.gmra.mxu0 %v3040
      %v3450 = vpop.f32.mrf.mxu0
      %v3451 = vadd.f32 %v3234, %v3450
      %v3452 = vpop.f32.mrf.mxu0
      %v3453 = vadd.f32 %v3236, %v3452
      %3454 = vmatmul.bf16.gmra.mxu0 %v3041
      %v3455 = vpop.f32.mrf.mxu0
      %v3456 = vadd.f32 %v3239, %v3455
      %v3457 = vpop.f32.mrf.mxu0
      %v3458 = vadd.f32 %v3241, %v3457
      %3459 = vmatmul.bf16.gmra.mxu0 %v3042
      %v3460 = vpop.f32.mrf.mxu0
      %v3461 = vadd.f32 %v3244, %v3460
      %v3462 = vpop.f32.mrf.mxu0
      %v3463 = vadd.f32 %v3246, %v3462
      %3464 = vmatmul.bf16.gmra.mxu0 %v3043
      %v3465 = vpop.f32.mrf.mxu0
      %v3466 = vadd.f32 %v3249, %v3465
      %v3467 = vpop.f32.mrf.mxu0
      %v3468 = vadd.f32 %v3251, %v3467
      %3469 = vmatmul.bf16.gmra.mxu0 %v3044
      %v3470 = vpop.f32.mrf.mxu0
      %v3471 = vadd.f32 %v3254, %v3470
      %v3472 = vpop.f32.mrf.mxu0
      %v3473 = vadd.f32 %v3256, %v3472
      %3474 = vmatmul.bf16.gmra.mxu0 %v3045
      %v3475 = vpop.f32.mrf.mxu0
      %v3476 = vadd.f32 %v3259, %v3475
      %v3477 = vpop.f32.mrf.mxu0
      %v3478 = vadd.f32 %v3261, %v3477
      %3479 = vmatmul.bf16.gmra.mxu0 %v3046
      %v3480 = vpop.f32.mrf.mxu0
      %v3481 = vadd.f32 %v3264, %v3480
      %v3482 = vpop.f32.mrf.mxu0
      %v3483 = vadd.f32 %v3266, %v3482
      %3484 = vmatmul.bf16.gmra.mxu0 %v3047
      %v3485 = vpop.f32.mrf.mxu0
      %v3486 = vadd.f32 %v3269, %v3485
      %v3487 = vpop.f32.mrf.mxu0
      %v3488 = vadd.f32 %v3271, %v3487
      %3489 = vmatmul.bf16.gmra.mxu0 %v3048
      %v3490 = vpop.f32.mrf.mxu0
      %v3491 = vadd.f32 %v3274, %v3490
      %v3492 = vpop.f32.mrf.mxu0
      %v3493 = vadd.f32 %v3276, %v3492
      %3494 = vmatmul.bf16.gmra.mxu0 %v3049
      %v3495 = vpop.f32.mrf.mxu0
      %v3496 = vadd.f32 %v3279, %v3495
      %v3497 = vpop.f32.mrf.mxu0
      %v3498 = vadd.f32 %v3281, %v3497
      %3499 = vmatmul.bf16.gmra.mxu0 %v3050
      %v3500 = vpop.f32.mrf.mxu0
      %v3501 = vadd.f32 %v3284, %v3500
      %v3502 = vpop.f32.mrf.mxu0
      %v3503 = vadd.f32 %v3286, %v3502
      %3504 = vmatmul.bf16.gmra.mxu0 %v3051
      %v3505 = vpop.f32.mrf.mxu0
      %v3506 = vadd.f32 %v3289, %v3505
      %v3507 = vpop.f32.mrf.mxu0
      %v3508 = vadd.f32 %v3291, %v3507
      %3509 = vmatmul.bf16.gmra.mxu0 %v3052
      %v3510 = vpop.f32.mrf.mxu0
      %v3511 = vadd.f32 %v3294, %v3510
      %v3512 = vpop.f32.mrf.mxu0
      %v3513 = vadd.f32 %v3296, %v3512
      %3514 = vmatmul.bf16.gmra.mxu0 %v3053
      %v3515 = vpop.f32.mrf.mxu0
      %v3516 = vadd.f32 %v3299, %v3515
      %v3517 = vpop.f32.mrf.mxu0
      %v3518 = vadd.f32 %v3301, %v3517
      %3519 = vdwg.mxu0
      %v3520 = vld [vmem:[%s3 + $0x6] sm:$0x1]
      %v3521 = vperm.slane %v3520, 0
      %v3522 = vadd.f32 %v3361, %v3521
      %v3523 = vadd.f32 %v3363, %v3521
      %v3524 = vadd.f32 %v3366, %v3521
      %v3525 = vadd.f32 %v3368, %v3521
      %v3526 = vadd.f32 %v3371, %v3521
      %v3527 = vadd.f32 %v3373, %v3521
      %v3528 = vadd.f32 %v3376, %v3521
      %v3529 = vadd.f32 %v3378, %v3521
      %v3530 = vadd.f32 %v3381, %v3521
      %v3531 = vadd.f32 %v3383, %v3521
      %v3532 = vadd.f32 %v3386, %v3521
      %v3533 = vadd.f32 %v3388, %v3521
      %v3534 = vadd.f32 %v3391, %v3521
      %v3535 = vadd.f32 %v3393, %v3521
      %v3536 = vadd.f32 %v3396, %v3521
      %v3537 = vadd.f32 %v3398, %v3521
      %v3538 = vadd.f32 %v3401, %v3521
      %v3539 = vadd.f32 %v3403, %v3521
      %v3540 = vadd.f32 %v3406, %v3521
      %v3541 = vadd.f32 %v3408, %v3521
      %v3542 = vadd.f32 %v3411, %v3521
      %v3543 = vadd.f32 %v3413, %v3521
      %v3544 = vadd.f32 %v3416, %v3521
      %v3545 = vadd.f32 %v3418, %v3521
      %v3546 = vadd.f32 %v3421, %v3521
      %v3547 = vadd.f32 %v3423, %v3521
      %v3548 = vadd.f32 %v3426, %v3521
      %v3549 = vadd.f32 %v3428, %v3521
      %v3550 = vadd.f32 %v3431, %v3521
      %v3551 = vadd.f32 %v3433, %v3521
      %v3552 = vadd.f32 %v3436, %v3521
      %v3553 = vadd.f32 %v3438, %v3521
      %v3554 = vadd.f32 %v3441, %v3521
      %v3555 = vadd.f32 %v3443, %v3521
      %v3556 = vadd.f32 %v3446, %v3521
      %v3557 = vadd.f32 %v3448, %v3521
      %v3558 = vadd.f32 %v3451, %v3521
      %v3559 = vadd.f32 %v3453, %v3521
      %v3560 = vadd.f32 %v3456, %v3521
      %v3561 = vadd.f32 %v3458, %v3521
      %v3562 = vadd.f32 %v3461, %v3521
      %v3563 = vadd.f32 %v3463, %v3521
      %v3564 = vadd.f32 %v3466, %v3521
      %v3565 = vadd.f32 %v3468, %v3521
      %v3566 = vadd.f32 %v3471, %v3521
      %v3567 = vadd.f32 %v3473, %v3521
      %v3568 = vadd.f32 %v3476, %v3521
      %v3569 = vadd.f32 %v3478, %v3521
      %v3570 = vadd.f32 %v3481, %v3521
      %v3571 = vadd.f32 %v3483, %v3521
      %v3572 = vadd.f32 %v3486, %v3521
      %v3573 = vadd.f32 %v3488, %v3521
      %v3574 = vadd.f32 %v3491, %v3521
      %v3575 = vadd.f32 %v3493, %v3521
      %v3576 = vadd.f32 %v3496, %v3521
      %v3577 = vadd.f32 %v3498, %v3521
      %v3578 = vadd.f32 %v3501, %v3521
      %v3579 = vadd.f32 %v3503, %v3521
      %v3580 = vadd.f32 %v3506, %v3521
      %v3581 = vadd.f32 %v3508, %v3521
      %v3582 = vadd.f32 %v3511, %v3521
      %v3583 = vadd.f32 %v3513, %v3521
      %v3584 = vadd.f32 %v3516, %v3521
      %v3585 = vadd.f32 %v3518, %v3521
      %vm3586 = vcmask 130048
      %3587 = vst.msk [vmem:[%s221] sm:$0xff] %vm3586, %v3522
      %3588 = vst.msk [vmem:[%s221 + $0x8] sm:$0xff] %vm3586, %v3523
      %3589 = vst.msk [vmem:[%s221 + $0x10] sm:$0xff] %vm3586, %v3524
      %3590 = vst.msk [vmem:[%s221 + $0x18] sm:$0xff] %vm3586, %v3525
      %3591 = vst.msk [vmem:[%s221 + $0x20] sm:$0xff] %vm3586, %v3526
      %3592 = vst.msk [vmem:[%s221 + $0x28] sm:$0xff] %vm3586, %v3527
      %3593 = vst.msk [vmem:[%s221 + $0x30] sm:$0xff] %vm3586, %v3528
      %3594 = vst.msk [vmem:[%s221 + $0x38] sm:$0xff] %vm3586, %v3529
      %3595 = vst.msk [vmem:[%s221 + $0x40] sm:$0xff] %vm3586, %v3530
      %3596 = vst.msk [vmem:[%s221 + $0x48] sm:$0xff] %vm3586, %v3531
      %3597 = vst.msk [vmem:[%s221 + $0x50] sm:$0xff] %vm3586, %v3532
      %3598 = vst.msk [vmem:[%s221 + $0x58] sm:$0xff] %vm3586, %v3533
      %3599 = vst.msk [vmem:[%s221 + $0x60] sm:$0xff] %vm3586, %v3534
      %3600 = vst.msk [vmem:[%s221 + $0x68] sm:$0xff] %vm3586, %v3535
      %3601 = vst.msk [vmem:[%s221 + $0x70] sm:$0xff] %vm3586, %v3536
      %3602 = vst.msk [vmem:[%s221 + $0x78] sm:$0xff] %vm3586, %v3537
      %3603 = vst.msk [vmem:[%s221 + $0x80] sm:$0xff] %vm3586, %v3538
      %3604 = vst.msk [vmem:[%s221 + $0x88] sm:$0xff] %vm3586, %v3539
      %3605 = vst.msk [vmem:[%s221 + $0x90] sm:$0xff] %vm3586, %v3540
      %3606 = vst.msk [vmem:[%s221 + $0x98] sm:$0xff] %vm3586, %v3541
      %3607 = vst.msk [vmem:[%s221 + $0xa0] sm:$0xff] %vm3586, %v3542
      %3608 = vst.msk [vmem:[%s221 + $0xa8] sm:$0xff] %vm3586, %v3543
      %3609 = vst.msk [vmem:[%s221 + $0xb0] sm:$0xff] %vm3586, %v3544
      %3610 = vst.msk [vmem:[%s221 + $0xb8] sm:$0xff] %vm3586, %v3545
      %3611 = vst.msk [vmem:[%s221 + $0xc0] sm:$0xff] %vm3586, %v3546
      %3612 = vst.msk [vmem:[%s221 + $0xc8] sm:$0xff] %vm3586, %v3547
      %3613 = vst.msk [vmem:[%s221 + $0xd0] sm:$0xff] %vm3586, %v3548
      %3614 = vst.msk [vmem:[%s221 + $0xd8] sm:$0xff] %vm3586, %v3549
      %3615 = vst.msk [vmem:[%s221 + $0xe0] sm:$0xff] %vm3586, %v3550
      %3616 = vst.msk [vmem:[%s221 + $0xe8] sm:$0xff] %vm3586, %v3551
      %3617 = vst.msk [vmem:[%s221 + $0xf0] sm:$0xff] %vm3586, %v3552
      %3618 = vst.msk [vmem:[%s221 + $0xf8] sm:$0xff] %vm3586, %v3553
      %3619 = vst.msk [vmem:[%s221 + $0x100] sm:$0xff] %vm3586, %v3554
      %3620 = vst.msk [vmem:[%s221 + $0x108] sm:$0xff] %vm3586, %v3555
      %3621 = vst.msk [vmem:[%s221 + $0x110] sm:$0xff] %vm3586, %v3556
      %3622 = vst.msk [vmem:[%s221 + $0x118] sm:$0xff] %vm3586, %v3557
      %3623 = vst.msk [vmem:[%s221 + $0x120] sm:$0xff] %vm3586, %v3558
      %3624 = vst.msk [vmem:[%s221 + $0x128] sm:$0xff] %vm3586, %v3559
      %3625 = vst.msk [vmem:[%s221 + $0x130] sm:$0xff] %vm3586, %v3560
      %3626 = vst.msk [vmem:[%s221 + $0x138] sm:$0xff] %vm3586, %v3561
      %3627 = vst.msk [vmem:[%s221 + $0x140] sm:$0xff] %vm3586, %v3562
      %3628 = vst.msk [vmem:[%s221 + $0x148] sm:$0xff] %vm3586, %v3563
      %3629 = vst.msk [vmem:[%s221 + $0x150] sm:$0xff] %vm3586, %v3564
      %3630 = vst.msk [vmem:[%s221 + $0x158] sm:$0xff] %vm3586, %v3565
      %3631 = vst.msk [vmem:[%s221 + $0x160] sm:$0xff] %vm3586, %v3566
      %3632 = vst.msk [vmem:[%s221 + $0x168] sm:$0xff] %vm3586, %v3567
      %3633 = vst.msk [vmem:[%s221 + $0x170] sm:$0xff] %vm3586, %v3568
      %3634 = vst.msk [vmem:[%s221 + $0x178] sm:$0xff] %vm3586, %v3569
      %3635 = vst.msk [vmem:[%s221 + $0x180] sm:$0xff] %vm3586, %v3570
      %3636 = vst.msk [vmem:[%s221 + $0x188] sm:$0xff] %vm3586, %v3571
      %3637 = vst.msk [vmem:[%s221 + $0x190] sm:$0xff] %vm3586, %v3572
      %3638 = vst.msk [vmem:[%s221 + $0x198] sm:$0xff] %vm3586, %v3573
      %3639 = vst.msk [vmem:[%s221 + $0x1a0] sm:$0xff] %vm3586, %v3574
      %3640 = vst.msk [vmem:[%s221 + $0x1a8] sm:$0xff] %vm3586, %v3575
      %3641 = vst.msk [vmem:[%s221 + $0x1b0] sm:$0xff] %vm3586, %v3576
      %3642 = vst.msk [vmem:[%s221 + $0x1b8] sm:$0xff] %vm3586, %v3577
      %3643 = vst.msk [vmem:[%s221 + $0x1c0] sm:$0xff] %vm3586, %v3578
      %3644 = vst.msk [vmem:[%s221 + $0x1c8] sm:$0xff] %vm3586, %v3579
      %3645 = vst.msk [vmem:[%s221 + $0x1d0] sm:$0xff] %vm3586, %v3580
      %3646 = vst.msk [vmem:[%s221 + $0x1d8] sm:$0xff] %vm3586, %v3581
      %3647 = vst.msk [vmem:[%s221 + $0x1e0] sm:$0xff] %vm3586, %v3582
      %3648 = vst.msk [vmem:[%s221 + $0x1e8] sm:$0xff] %vm3586, %v3583
      %3649 = vst.msk [vmem:[%s221 + $0x1f0] sm:$0xff] %vm3586, %v3584
      %3650 = vst.msk [vmem:[%s221 + $0x1f8] sm:$0xff] %vm3586, %v3585
      %s3651 = smul.u32 64, %s15
      %p3652 = scmp.lt.s32.totalorder %s3651, 255
      %s3653 = scalar_select %p3652, %s3651, 255
      %s3654 = smul.addr %s3653, 8
      %s3655 = scalar_lea.vmem %s4, %s3654
      // Predicated region
      $region37: #{nerf_forward.1} parent=35 // pred_check
        %p3656 = pneg %p127
      $region38: #{nerf_forward.1} parent=35 // pred_check_branch
        %3658 = sbr.rel (%p3656) target = $region40
      $region39: #{nerf_forward.1} parent=35 // pred_region
        %s3659 = smul.u32 64, %s15
      $region40: #{nerf_forward.1} parent=35 // pred_fallthru
        _
    $region36: #{nerf_forward.1} parent=5 // pred_fallthru
      _
    %p3660 = scmp.le.s32.totalorder 2, %s10
    // Predicated region
    $region41: #{nerf_forward.1} parent=5 // pred_check
      %p3661 = pneg %p3660
    $region42: #{nerf_forward.1} parent=5 // pred_check_branch
      %3663 = sbr.rel (%p3661) target = $region44
    $region43: #{nerf_forward.1} parent=5 // pred_region
      %s3664 = ssub.s32 %s10, 2
      // Predicated region
      $region45: #{nerf_forward.1} parent=43 // pred_check
        %p3665 = pneg %p133
      $region46: #{nerf_forward.1} parent=43 // pred_check_branch
        %3667 = sbr.rel (%p3665) target = $region48
      $region47: #{nerf_forward.1} parent=43 // pred_region
        %s3668 = smul.u32 64, %s16
        %p3669 = scmp.lt.s32.totalorder %s3668, 255
        %s3670 = scalar_select %p3669, %s3668, 255
        %s3671 = smul.addr %s3670, 8
        %s3672 = scalar_lea.vmem %s4, %s3671
      $region48: #{nerf_forward.1} parent=43 // pred_fallthru
        _
    $region44: #{nerf_forward.1} parent=5 // pred_fallthru
      _
  $region6: #{nerf_forward.1} parent=0 // loop_footer
    %s14 = sadd.s32 1, %s10
  $region7: #{nerf_forward.1} parent=0 // loop_footer_branch
    %9 = sbr.rel target = $region3
  $region8: #{nerf_forward.1} parent=0 // loop_exit
    _

</llo_original>
